<compile_context>
chip_gen: v7x
topology: tpu7x:2x2x1
jax: 0.10.0
libtpu: 0.0.40
codegen_flags: <defaults>
</compile_context>

<pallas_src>
import jax
import jax.numpy as jnp
from jax.experimental import pallas as pl
from jax.experimental.pallas import tpu as pltpu

EPS = 1e-5            # PyTorch InstanceNorm2d default eps
NEG_SLOPE = 0.2       # LeakyReLU slope
MATMUL_DTYPE = jnp.bfloat16   # MXU operand + output dtype


def _upconv_in_lrelu_kernel(xp_ref, w_ref, g_ref, b_ref, gmat_ref, o_ref):
    """One (batch, channel-tile) grid step.

    xp_ref:   (1, H+2, W+2, Cin)  zero-padded NHWC input block (bf16)
    w_ref:    (9, Cin, 4*TC)      per-tap packed transposed-conv weight (bf16);
                                  tap t = di*3 + dj over the shifted views,
                                  cols channel-major / sub-pixel-parity-minor
    g_ref:    (1, 4*TC)           IN gamma tiled over the 4 parities (f32)
    b_ref:    (1, 4*TC)           IN beta  tiled over the 4 parities (f32)
    gmat_ref: (4*TC, 4*TC)        precomputed 0/1 parity-group sum+broadcast
    o_ref:    (1, H*W, 4*TC)      lane-packed bf16 output (unshuffled in wrapper)
    """
    Hp, Wp, Cin = xp_ref.shape[1], xp_ref.shape[2], xp_ref.shape[3]
    H, W = Hp - 2, Wp - 2
    HW = H * W
    P = o_ref.shape[2]                                   # 4 * channel tile

    # ---- transposed conv: 9 shifted-view matmuls, K = Cin each, fp32 acc ----
    # (no (H*W, 9*Cin) im2col temporary is ever materialized)
    acc = jnp.zeros((HW, P), jnp.float32)
    for t in range(9):                                   # static unroll
        di, dj = t // 3, t % 3
        sl = xp_ref[0, di:di + H, dj:dj + W, :].reshape(HW, Cin)   # bf16
        acc = acc + jnp.dot(sl, w_ref[t], preferred_element_type=jnp.float32)
    # Conv bias omitted: InstanceNorm's mean subtraction cancels it exactly.
    # TODO(synk): for deep compute-bound stages (large Cin*Cout, tiny H*W) use
    # the exact 4-parity 2x2 form (16 vs 36 MACs/pixel) instead of the packed
    # weight with 5/9 structural zeros.

    # ---- InstanceNorm2d: per-channel stats over H*W rows x 4 parity lanes ----
    inv_count = 1.0 / (4.0 * HW)
    s1 = jnp.sum(acc, axis=0, keepdims=True)             # (1, P)
    s2 = jnp.sum(acc * acc, axis=0, keepdims=True)       # (1, P)
    sg = jnp.dot(jnp.concatenate([s1, s2], axis=0), gmat_ref[...],
                 preferred_element_type=jnp.float32)     # (2, P) group-summed
    mean = sg[0:1, :] * inv_count
    var = sg[1:2, :] * inv_count - mean * mean           # biased, as in PyTorch
    inv_std = jax.lax.rsqrt(var + EPS)

    # Fold normalize + affine into one scale / shift per element.
    scale = g_ref[...] * inv_std
    shift = b_ref[...] - mean * scale
    y = acc * scale + shift

    # ---- LeakyReLU(0.2), lane-packed bf16 store -----------------------------
    y = jnp.where(y > 0, y, NEG_SLOPE * y)
    o_ref[...] = y[None].astype(o_ref.dtype)


def _pack_weight(w):
    """Pack ConvTranspose2d weight (Cin, Cout, 4, 4) into per-tap form.

    Returns (9, Cin, 4*Cout) bf16.  Tap t = di*3+dj multiplies the shifted view
    xpad[my+di, mx+dj]; output column c*4 + (py*2+px) holds the weight for
    output pixel (2*my+py, 2*mx+px), i.e. kernel entry (3-2*di+py, 3-2*dj+px)
    for di in {py, py+1}, dj in {px, px+1}; other (tap, parity) pairs are zero.
    """
    Cin, Cout = w.shape[0], w.shape[1]
    wp = jnp.zeros((9, Cin, Cout, 4), jnp.float32)
    for py in range(2):
        for px in range(2):
            p = py * 2 + px
            for di in (py, py + 1):
                for dj in (px, px + 1):
                    ky = 3 - 2 * di + py
                    kx = 3 - 2 * dj + px
                    wp = wp.at[di * 3 + dj, :, :, p].set(w[:, :, ky, kx])
    return wp.reshape(9, Cin, 4 * Cout).astype(MATMUL_DTYPE)


def _device_kind():
    try:
        return jax.devices()[0].device_kind.lower()
    except Exception:
        return ""


def _pick_channel_tile(cout):
    """Matmul N width = 4*tcc: 256 lanes on v6e/v7x, 128 on v5e/older."""
    kind = _device_kind()
    wide_mxu = ("v6" in kind) or ("v7" in kind)
    for t in ((64, 32, 16, 8) if wide_mxu else (32, 16, 8)):
        if cout % t == 0:
            return t
    return cout


def upconv_forward(x_nchw, params):
    """Forward of `upconv`. x_nchw: (N, Cin, H, W) f32 -> (N, Cout, 2H, 2W) bf16."""
    w, gamma, beta = params["w"], params["gamma"], params["beta"]
    N, Cin, H, W = x_nchw.shape
    Cout = w.shape[1]
    HW = H * W

    # Layout plumbing, ONE fused XLA pass: NCHW f32 -> zero-padded NHWC bf16.
    x = jnp.transpose(x_nchw, (0, 2, 3, 1)).astype(MATMUL_DTYPE)
    x_pad = jnp.pad(x, ((0, 0), (1, 1), (1, 1), (0, 0)))

    w_packed = _pack_weight(w)                            # (9, Cin, 4*Cout) bf16
    gamma_p = jnp.repeat(gamma.astype(jnp.float32), 4).reshape(1, 4 * Cout)
    beta_p = jnp.repeat(beta.astype(jnp.float32), 4).reshape(1, 4 * Cout)

    tcc = _pick_channel_tile(Cout)
    P_blk = 4 * tcc
    idx = jnp.arange(P_blk)
    gmat = (idx[:, None] // 4 == idx[None, :] // 4).astype(jnp.float32)

    grid = (N, Cout // tcc)
    # TODO(synk): add a spatial (H) grid axis with persistent s1/s2 scratch for
    # v7x high-resolution decoder stages where one H*W block exceeds VMEM.

    # Per-step VMEM budget (double-buffered pipeline blocks + live fp32 acc).
    est = (2 * (H + 2) * (W + 2) * Cin * 2          # x_pad block (bf16) x2
           + 2 * 9 * Cin * P_blk * 2                # weight block (bf16) x2
           + 2 * HW * P_blk * 2                     # output block (bf16) x2
           + HW * P_blk * 4                         # fp32 accumulator
           + 2 * P_blk * P_blk * 4                  # group-sum matrix x2
           + 4 * P_blk * 4 * 2)                     # gamma / beta blocks
    ceiling = (50 if "v7" in _device_kind() else 96) * 1024 * 1024
    vmem_limit = int(min(max(2 * est, 32 * 1024 * 1024), ceiling))

    out_packed = pl.pallas_call(
        _upconv_in_lrelu_kernel,
        out_shape=jax.ShapeDtypeStruct((N, HW, 4 * Cout), MATMUL_DTYPE),
        grid_spec=pltpu.PrefetchScalarGridSpec(
            num_scalar_prefetch=0,
            grid=grid,
            in_specs=[
                pl.BlockSpec((1, H + 2, W + 2, Cin), lambda n, c: (n, 0, 0, 0)),
                pl.BlockSpec((9, Cin, P_blk), lambda n, c: (0, 0, c)),
                pl.BlockSpec((1, P_blk), lambda n, c: (0, c)),
                pl.BlockSpec((1, P_blk), lambda n, c: (0, c)),
                pl.BlockSpec((P_blk, P_blk), lambda n, c: (0, 0)),
            ],
            out_specs=pl.BlockSpec((1, HW, P_blk), lambda n, c: (n, 0, c)),
        ),
        compiler_params=pltpu.CompilerParams(
            dimension_semantics=("parallel", "parallel"),
            vmem_limit_bytes=vmem_limit),
    )(x_pad, w_packed, gamma_p, beta_p, gmat)

    # Depth-to-space un-shuffle (wrapper-side metadata ops, stays bf16):
    # (N, H*W, Cout*4) -> (n, my, mx, c, py, px) -> (n, c, my, py, mx, px) -> NCHW
    y = out_packed.reshape(N, H, W, Cout, 2, 2)
    y = jnp.transpose(y, (0, 3, 1, 4, 2, 5))
    return y.reshape(N, Cout, 2 * H, 2 * W)


def upconv_reference(x_nchw, params):
    """Pure-JAX reference: ConvTranspose2d(4,2,1) + InstanceNorm2d(affine) + LeakyReLU(0.2)."""
    w, gamma, beta = params["w"], params["gamma"], params["beta"]
    wt = jnp.transpose(jnp.flip(w, (2, 3)), (1, 0, 2, 3))  # (Cout, Cin, 4, 4), flipped
    y = jax.lax.conv_general_dilated(
        x_nchw, wt, window_strides=(1, 1), padding=[(2, 2), (2, 2)],
        lhs_dilation=(2, 2), rhs_dilation=(1, 1),
        dimension_numbers=("NCHW", "OIHW", "NCHW"),
        precision=jax.lax.Precision.HIGHEST)
    mean = jnp.mean(y, axis=(2, 3), keepdims=True)
    var = jnp.var(y, axis=(2, 3), keepdims=True)            # biased, like InstanceNorm2d
    y = (y - mean) * jax.lax.rsqrt(var + EPS)
    y = y * gamma[None, :, None, None] + beta[None, :, None, None]
    return jnp.where(y > 0, y, NEG_SLOPE * y)


def init_params(key, dim_in, dim_out):
    """Deterministic synthetic init (shapes match nn.ConvTranspose2d / InstanceNorm2d)."""
    k1, k2, k3 = jax.random.split(key, 3)
    bound = 1.0 / (dim_in * 16) ** 0.5
    w = jax.random.uniform(k1, (dim_in, dim_out, 4, 4), jnp.float32, -bound, bound)
    # PyTorch inits gamma=1, beta=0; perturb so the affine path is exercised.
    gamma = 1.0 + 0.1 * jax.random.normal(k2, (dim_out,), jnp.float32)
    beta = 0.1 * jax.random.normal(k3, (dim_out,), jnp.float32)
    # ConvTranspose2d bias is cancelled exactly by InstanceNorm's mean subtraction.
    return dict(w=w, gamma=gamma, beta=beta)


if __name__ == "__main__":
    key = jax.random.PRNGKey(0)
    kx, kp = jax.random.split(key)

    N, Cin, Cout, H, W = 2, 4, 8, 16, 16
    x = jax.random.normal(kx, (N, Cin, H, W), jnp.float32)
    params = init_params(kp, Cin, Cout)

    out = jax.jit(upconv_forward)(x, params)
    out = jax.block_until_ready(out)
    assert out.shape == (N, Cout, 2 * H, 2 * W)

    # Self-check against an XLA reference (bf16 MXU operands + bf16 output
    # -> loose tolerance).
    ref = upconv_reference(x, params)
    err = float(jnp.max(jnp.abs(out.astype(jnp.float32) - ref)))
    assert err < 1e-1, f"max abs error vs reference too large: {err}"

    print("KERNEL_OK")
</pallas_src>

<mosaic_0001>
module attributes {stable_mosaic.version = 11 : i64} {
  func.func @_upconv_in_lrelu_kernel(%arg0: i32, %arg1: i32, %arg2: memref<1x18x18x4xbf16, #tpu.memory_space<vmem>>, %arg3: memref<9x4x32xbf16, #tpu.memory_space<vmem>>, %arg4: memref<1x32xf32, #tpu.memory_space<vmem>>, %arg5: memref<1x32xf32, #tpu.memory_space<vmem>>, %arg6: memref<32x32xf32, #tpu.memory_space<vmem>>, %arg7: memref<1x256x32xbf16, #tpu.memory_space<vmem>>) attributes {dimension_semantics = [#tpu.dimension_semantics<parallel>, #tpu.dimension_semantics<parallel>], iteration_bounds = array<i64: 2, 1>, scalar_prefetch = 0 : i64, scratch_operands = 0 : i64, tpu.core_type = #tpu.core_type<tc>, window_params = [{transform_indices = @transform_0, window_bounds = array<i64: 1, 18, 18, 4>}, {transform_indices = @transform_1, window_bounds = array<i64: 9, 4, 32>}, {transform_indices = @transform_2, window_bounds = array<i64: 1, 32>}, {transform_indices = @transform_3, window_bounds = array<i64: 1, 32>}, {pipeline_mode = #tpu.pipeline_mode<synchronous>, transform_indices = @transform_4, window_bounds = array<i64: 32, 32>}, {transform_indices = @transform_5, window_bounds = array<i64: 1, 256, 32>}]} {
    %cst = arith.constant 0.000000e+00 : f32
    %0 = vector.broadcast %cst : f32 to vector<256x32xf32>
    %c0 = arith.constant 0 : index
    %c0_0 = arith.constant 0 : index
    %c0_1 = arith.constant 0 : index
    %c0_2 = arith.constant 0 : index
    %1 = vector.load %arg2[%c0, %c0_0, %c0_1, %c0_2] : memref<1x18x18x4xbf16, #tpu.memory_space<vmem>>, vector<1x16x16x4xbf16>
    %2 = vector.shape_cast %1 : vector<1x16x16x4xbf16> to vector<16x16x4xbf16>
    %3 = vector.shape_cast %2 : vector<16x16x4xbf16> to vector<256x4xbf16>
    %c0_3 = arith.constant 0 : index
    %c0_4 = arith.constant 0 : index
    %c0_5 = arith.constant 0 : index
    %4 = vector.load %arg3[%c0_3, %c0_4, %c0_5] : memref<9x4x32xbf16, #tpu.memory_space<vmem>>, vector<1x4x32xbf16>
    %5 = vector.shape_cast %4 : vector<1x4x32xbf16> to vector<4x32xbf16>
    %cst_6 = arith.constant dense<0.000000e+00> : vector<256x32xf32>
    %6 = tpu.matmul %3, %5, %cst_6 {dimension_numbers = #tpu.dot_dimension_numbers<[1], [0], [0], [1], [0, 0, 1, 1], [], []>} : vector<256x4xbf16>, vector<4x32xbf16>, vector<256x32xf32> -> vector<256x32xf32>
    %7 = arith.addf %0, %6 : vector<256x32xf32>
    %c0_7 = arith.constant 0 : index
    %c0_8 = arith.constant 0 : index
    %c1 = arith.constant 1 : index
    %c0_9 = arith.constant 0 : index
    %8 = vector.load %arg2[%c0_7, %c0_8, %c1, %c0_9] : memref<1x18x18x4xbf16, #tpu.memory_space<vmem>>, vector<1x16x16x4xbf16>
    %9 = vector.shape_cast %8 : vector<1x16x16x4xbf16> to vector<16x16x4xbf16>
    %10 = vector.shape_cast %9 : vector<16x16x4xbf16> to vector<256x4xbf16>
    %c1_10 = arith.constant 1 : index
    %c0_11 = arith.constant 0 : index
    %c0_12 = arith.constant 0 : index
    %11 = vector.load %arg3[%c1_10, %c0_11, %c0_12] : memref<9x4x32xbf16, #tpu.memory_space<vmem>>, vector<1x4x32xbf16>
    %12 = vector.shape_cast %11 : vector<1x4x32xbf16> to vector<4x32xbf16>
    %cst_13 = arith.constant dense<0.000000e+00> : vector<256x32xf32>
    %13 = tpu.matmul %10, %12, %cst_13 {dimension_numbers = #tpu.dot_dimension_numbers<[1], [0], [0], [1], [0, 0, 1, 1], [], []>} : vector<256x4xbf16>, vector<4x32xbf16>, vector<256x32xf32> -> vector<256x32xf32>
    %14 = arith.addf %7, %13 : vector<256x32xf32>
    %c0_14 = arith.constant 0 : index
    %c0_15 = arith.constant 0 : index
    %c2 = arith.constant 2 : index
    %c0_16 = arith.constant 0 : index
    %15 = vector.load %arg2[%c0_14, %c0_15, %c2, %c0_16] : memref<1x18x18x4xbf16, #tpu.memory_space<vmem>>, vector<1x16x16x4xbf16>
    %16 = vector.shape_cast %15 : vector<1x16x16x4xbf16> to vector<16x16x4xbf16>
    %17 = vector.shape_cast %16 : vector<16x16x4xbf16> to vector<256x4xbf16>
    %c2_17 = arith.constant 2 : index
    %c0_18 = arith.constant 0 : index
    %c0_19 = arith.constant 0 : index
    %18 = vector.load %arg3[%c2_17, %c0_18, %c0_19] : memref<9x4x32xbf16, #tpu.memory_space<vmem>>, vector<1x4x32xbf16>
    %19 = vector.shape_cast %18 : vector<1x4x32xbf16> to vector<4x32xbf16>
    %cst_20 = arith.constant dense<0.000000e+00> : vector<256x32xf32>
    %20 = tpu.matmul %17, %19, %cst_20 {dimension_numbers = #tpu.dot_dimension_numbers<[1], [0], [0], [1], [0, 0, 1, 1], [], []>} : vector<256x4xbf16>, vector<4x32xbf16>, vector<256x32xf32> -> vector<256x32xf32>
    %21 = arith.addf %14, %20 : vector<256x32xf32>
    %c0_21 = arith.constant 0 : index
    %c1_22 = arith.constant 1 : index
    %c0_23 = arith.constant 0 : index
    %c0_24 = arith.constant 0 : index
    %22 = vector.load %arg2[%c0_21, %c1_22, %c0_23, %c0_24] : memref<1x18x18x4xbf16, #tpu.memory_space<vmem>>, vector<1x16x16x4xbf16>
    %23 = vector.shape_cast %22 : vector<1x16x16x4xbf16> to vector<16x16x4xbf16>
    %24 = vector.shape_cast %23 : vector<16x16x4xbf16> to vector<256x4xbf16>
    %c3 = arith.constant 3 : index
    %c0_25 = arith.constant 0 : index
    %c0_26 = arith.constant 0 : index
    %25 = vector.load %arg3[%c3, %c0_25, %c0_26] : memref<9x4x32xbf16, #tpu.memory_space<vmem>>, vector<1x4x32xbf16>
    %26 = vector.shape_cast %25 : vector<1x4x32xbf16> to vector<4x32xbf16>
    %cst_27 = arith.constant dense<0.000000e+00> : vector<256x32xf32>
    %27 = tpu.matmul %24, %26, %cst_27 {dimension_numbers = #tpu.dot_dimension_numbers<[1], [0], [0], [1], [0, 0, 1, 1], [], []>} : vector<256x4xbf16>, vector<4x32xbf16>, vector<256x32xf32> -> vector<256x32xf32>
    %28 = arith.addf %21, %27 : vector<256x32xf32>
    %c0_28 = arith.constant 0 : index
    %c1_29 = arith.constant 1 : index
    %c1_30 = arith.constant 1 : index
    %c0_31 = arith.constant 0 : index
    %29 = vector.load %arg2[%c0_28, %c1_29, %c1_30, %c0_31] : memref<1x18x18x4xbf16, #tpu.memory_space<vmem>>, vector<1x16x16x4xbf16>
    %30 = vector.shape_cast %29 : vector<1x16x16x4xbf16> to vector<16x16x4xbf16>
    %31 = vector.shape_cast %30 : vector<16x16x4xbf16> to vector<256x4xbf16>
    %c4 = arith.constant 4 : index
    %c0_32 = arith.constant 0 : index
    %c0_33 = arith.constant 0 : index
    %32 = vector.load %arg3[%c4, %c0_32, %c0_33] : memref<9x4x32xbf16, #tpu.memory_space<vmem>>, vector<1x4x32xbf16>
    %33 = vector.shape_cast %32 : vector<1x4x32xbf16> to vector<4x32xbf16>
    %cst_34 = arith.constant dense<0.000000e+00> : vector<256x32xf32>
    %34 = tpu.matmul %31, %33, %cst_34 {dimension_numbers = #tpu.dot_dimension_numbers<[1], [0], [0], [1], [0, 0, 1, 1], [], []>} : vector<256x4xbf16>, vector<4x32xbf16>, vector<256x32xf32> -> vector<256x32xf32>
    %35 = arith.addf %28, %34 : vector<256x32xf32>
    %c0_35 = arith.constant 0 : index
    %c1_36 = arith.constant 1 : index
    %c2_37 = arith.constant 2 : index
    %c0_38 = arith.constant 0 : index
    %36 = vector.load %arg2[%c0_35, %c1_36, %c2_37, %c0_38] : memref<1x18x18x4xbf16, #tpu.memory_space<vmem>>, vector<1x16x16x4xbf16>
    %37 = vector.shape_cast %36 : vector<1x16x16x4xbf16> to vector<16x16x4xbf16>
    %38 = vector.shape_cast %37 : vector<16x16x4xbf16> to vector<256x4xbf16>
    %c5 = arith.constant 5 : index
    %c0_39 = arith.constant 0 : index
    %c0_40 = arith.constant 0 : index
    %39 = vector.load %arg3[%c5, %c0_39, %c0_40] : memref<9x4x32xbf16, #tpu.memory_space<vmem>>, vector<1x4x32xbf16>
    %40 = vector.shape_cast %39 : vector<1x4x32xbf16> to vector<4x32xbf16>
    %cst_41 = arith.constant dense<0.000000e+00> : vector<256x32xf32>
    %41 = tpu.matmul %38, %40, %cst_41 {dimension_numbers = #tpu.dot_dimension_numbers<[1], [0], [0], [1], [0, 0, 1, 1], [], []>} : vector<256x4xbf16>, vector<4x32xbf16>, vector<256x32xf32> -> vector<256x32xf32>
    %42 = arith.addf %35, %41 : vector<256x32xf32>
    %c0_42 = arith.constant 0 : index
    %c2_43 = arith.constant 2 : index
    %c0_44 = arith.constant 0 : index
    %c0_45 = arith.constant 0 : index
    %43 = vector.load %arg2[%c0_42, %c2_43, %c0_44, %c0_45] : memref<1x18x18x4xbf16, #tpu.memory_space<vmem>>, vector<1x16x16x4xbf16>
    %44 = vector.shape_cast %43 : vector<1x16x16x4xbf16> to vector<16x16x4xbf16>
    %45 = vector.shape_cast %44 : vector<16x16x4xbf16> to vector<256x4xbf16>
    %c6 = arith.constant 6 : index
    %c0_46 = arith.constant 0 : index
    %c0_47 = arith.constant 0 : index
    %46 = vector.load %arg3[%c6, %c0_46, %c0_47] : memref<9x4x32xbf16, #tpu.memory_space<vmem>>, vector<1x4x32xbf16>
    %47 = vector.shape_cast %46 : vector<1x4x32xbf16> to vector<4x32xbf16>
    %cst_48 = arith.constant dense<0.000000e+00> : vector<256x32xf32>
    %48 = tpu.matmul %45, %47, %cst_48 {dimension_numbers = #tpu.dot_dimension_numbers<[1], [0], [0], [1], [0, 0, 1, 1], [], []>} : vector<256x4xbf16>, vector<4x32xbf16>, vector<256x32xf32> -> vector<256x32xf32>
    %49 = arith.addf %42, %48 : vector<256x32xf32>
    %c0_49 = arith.constant 0 : index
    %c2_50 = arith.constant 2 : index
    %c1_51 = arith.constant 1 : index
    %c0_52 = arith.constant 0 : index
    %50 = vector.load %arg2[%c0_49, %c2_50, %c1_51, %c0_52] : memref<1x18x18x4xbf16, #tpu.memory_space<vmem>>, vector<1x16x16x4xbf16>
    %51 = vector.shape_cast %50 : vector<1x16x16x4xbf16> to vector<16x16x4xbf16>
    %52 = vector.shape_cast %51 : vector<16x16x4xbf16> to vector<256x4xbf16>
    %c7 = arith.constant 7 : index
    %c0_53 = arith.constant 0 : index
    %c0_54 = arith.constant 0 : index
    %53 = vector.load %arg3[%c7, %c0_53, %c0_54] : memref<9x4x32xbf16, #tpu.memory_space<vmem>>, vector<1x4x32xbf16>
    %54 = vector.shape_cast %53 : vector<1x4x32xbf16> to vector<4x32xbf16>
    %cst_55 = arith.constant dense<0.000000e+00> : vector<256x32xf32>
    %55 = tpu.matmul %52, %54, %cst_55 {dimension_numbers = #tpu.dot_dimension_numbers<[1], [0], [0], [1], [0, 0, 1, 1], [], []>} : vector<256x4xbf16>, vector<4x32xbf16>, vector<256x32xf32> -> vector<256x32xf32>
    %56 = arith.addf %49, %55 : vector<256x32xf32>
    %c0_56 = arith.constant 0 : index
    %c2_57 = arith.constant 2 : index
    %c2_58 = arith.constant 2 : index
    %c0_59 = arith.constant 0 : index
    %57 = vector.load %arg2[%c0_56, %c2_57, %c2_58, %c0_59] : memref<1x18x18x4xbf16, #tpu.memory_space<vmem>>, vector<1x16x16x4xbf16>
    %58 = vector.shape_cast %57 : vector<1x16x16x4xbf16> to vector<16x16x4xbf16>
    %59 = vector.shape_cast %58 : vector<16x16x4xbf16> to vector<256x4xbf16>
    %c8 = arith.constant 8 : index
    %c0_60 = arith.constant 0 : index
    %c0_61 = arith.constant 0 : index
    %60 = vector.load %arg3[%c8, %c0_60, %c0_61] : memref<9x4x32xbf16, #tpu.memory_space<vmem>>, vector<1x4x32xbf16>
    %61 = vector.shape_cast %60 : vector<1x4x32xbf16> to vector<4x32xbf16>
    %cst_62 = arith.constant dense<0.000000e+00> : vector<256x32xf32>
    %62 = tpu.matmul %59, %61, %cst_62 {dimension_numbers = #tpu.dot_dimension_numbers<[1], [0], [0], [1], [0, 0, 1, 1], [], []>} : vector<256x4xbf16>, vector<4x32xbf16>, vector<256x32xf32> -> vector<256x32xf32>
    %63 = arith.addf %56, %62 : vector<256x32xf32>
    %cst_63 = arith.constant dense<0.000000e+00> : vector<32xf32>
    %64 = vector.multi_reduction <add>, %63, %cst_63 [0] : vector<256x32xf32> to vector<32xf32>
    %65 = vector.shape_cast %64 : vector<32xf32> to vector<1x32xf32>
    %66 = arith.mulf %63, %63 : vector<256x32xf32>
    %cst_64 = arith.constant dense<0.000000e+00> : vector<32xf32>
    %67 = vector.multi_reduction <add>, %66, %cst_64 [0] : vector<256x32xf32> to vector<32xf32>
    %68 = vector.shape_cast %67 : vector<32xf32> to vector<1x32xf32>
    %69 = tpu.concatenate %65, %68 in 0 : vector<1x32xf32>, vector<1x32xf32> -> vector<2x32xf32>
    %c0_65 = arith.constant 0 : index
    %c0_66 = arith.constant 0 : index
    %70 = vector.load %arg6[%c0_65, %c0_66] : memref<32x32xf32, #tpu.memory_space<vmem>>, vector<32x32xf32>
    %cst_67 = arith.constant dense<0.000000e+00> : vector<2x32xf32>
    %71 = tpu.matmul %69, %70, %cst_67 {dimension_numbers = #tpu.dot_dimension_numbers<[1], [0], [0], [1], [0, 0, 1, 1], [], []>} : vector<2x32xf32>, vector<32x32xf32>, vector<2x32xf32> -> vector<2x32xf32>
    %72 = vector.extract_strided_slice %71 {offsets = [0, 0], sizes = [1, 32], strides = [1, 1]} : vector<2x32xf32> to vector<1x32xf32>
    %cst_68 = arith.constant 9.765625E-4 : f32
    %73 = vector.broadcast %cst_68 : f32 to vector<1x32xf32>
    %74 = arith.mulf %72, %73 : vector<1x32xf32>
    %75 = vector.extract_strided_slice %71 {offsets = [1, 0], sizes = [1, 32], strides = [1, 1]} : vector<2x32xf32> to vector<1x32xf32>
    %cst_69 = arith.constant 9.765625E-4 : f32
    %76 = vector.broadcast %cst_69 : f32 to vector<1x32xf32>
    %77 = arith.mulf %75, %76 : vector<1x32xf32>
    %78 = arith.mulf %74, %74 : vector<1x32xf32>
    %79 = arith.subf %77, %78 : vector<1x32xf32>
    %cst_70 = arith.constant 9.99999974E-6 : f32
    %80 = vector.broadcast %cst_70 : f32 to vector<1x32xf32>
    %81 = arith.addf %79, %80 : vector<1x32xf32>
    %82 = math.rsqrt %81 : vector<1x32xf32>
    %c0_71 = arith.constant 0 : index
    %c0_72 = arith.constant 0 : index
    %83 = vector.load %arg4[%c0_71, %c0_72] : memref<1x32xf32, #tpu.memory_space<vmem>>, vector<1x32xf32>
    %84 = arith.mulf %83, %82 : vector<1x32xf32>
    %c0_73 = arith.constant 0 : index
    %c0_74 = arith.constant 0 : index
    %85 = vector.load %arg5[%c0_73, %c0_74] : memref<1x32xf32, #tpu.memory_space<vmem>>, vector<1x32xf32>
    %86 = arith.mulf %74, %84 : vector<1x32xf32>
    %87 = arith.subf %85, %86 : vector<1x32xf32>
    %88 = vector.broadcast %84 : vector<1x32xf32> to vector<256x32xf32>
    %89 = arith.mulf %63, %88 : vector<256x32xf32>
    %90 = vector.broadcast %87 : vector<1x32xf32> to vector<256x32xf32>
    %91 = arith.addf %89, %90 : vector<256x32xf32>
    %cst_75 = arith.constant 0.000000e+00 : f32
    %92 = vector.broadcast %cst_75 : f32 to vector<256x32xf32>
    %93 = arith.cmpf ogt, %91, %92 : vector<256x32xf32>
    %cst_76 = arith.constant 2.000000e-01 : f32
    %94 = vector.broadcast %cst_76 : f32 to vector<256x32xf32>
    %95 = arith.mulf %94, %91 : vector<256x32xf32>
    %96 = arith.select %93, %91, %95 : vector<256x32xi1>, vector<256x32xf32>
    %97 = vector.shape_cast %96 : vector<256x32xf32> to vector<1x256x32xf32>
    %98 = arith.truncf %97 : vector<1x256x32xf32> to vector<1x256x32xbf16>
    %c0_77 = arith.constant 0 : index
    %c0_78 = arith.constant 0 : index
    %c0_79 = arith.constant 0 : index
    %99 = vector.load %arg7[%c0_77, %c0_78, %c0_79] : memref<1x256x32xbf16, #tpu.memory_space<vmem>>, vector<1x256x32xbf16>
    tpu.vector_store %arg7[%c0_77, %c0_78, %c0_79], %98 {strides = array<i32>} : memref<1x256x32xbf16, #tpu.memory_space<vmem>>, vector<1x256x32xbf16>,
    return
  }
  func.func @transform_0(%arg0: i32, %arg1: i32) -> (i32, i32, i32, i32) {
    %c0_i32 = arith.constant 0 : i32
    %c0_i32_0 = arith.constant 0 : i32
    %c0_i32_1 = arith.constant 0 : i32
    %c0_i32_2 = arith.constant 0 : i32
    return %arg0, %c0_i32, %c0_i32_0, %c0_i32_1 : i32, i32, i32, i32
  }
  func.func @transform_1(%arg0: i32, %arg1: i32) -> (i32, i32, i32) {
    %c0_i32 = arith.constant 0 : i32
    %c0_i32_0 = arith.constant 0 : i32
    %c0_i32_1 = arith.constant 0 : i32
    return %c0_i32, %c0_i32_0, %arg1 : i32, i32, i32
  }
  func.func @transform_2(%arg0: i32, %arg1: i32) -> (i32, i32) {
    %c0_i32 = arith.constant 0 : i32
    %c0_i32_0 = arith.constant 0 : i32
    return %c0_i32, %arg1 : i32, i32
  }
  func.func @transform_3(%arg0: i32, %arg1: i32) -> (i32, i32) {
    %c0_i32 = arith.constant 0 : i32
    %c0_i32_0 = arith.constant 0 : i32
    return %c0_i32, %arg1 : i32, i32
  }
  func.func @transform_4(%arg0: i32, %arg1: i32) -> (i32, i32) {
    %c0_i32 = arith.constant 0 : i32
    %c0_i32_0 = arith.constant 0 : i32
    %c0_i32_1 = arith.constant 0 : i32
    return %c0_i32, %c0_i32_0 : i32, i32
  }
  func.func @transform_5(%arg0: i32, %arg1: i32) -> (i32, i32, i32) {
    %c0_i32 = arith.constant 0 : i32
    %c0_i32_0 = arith.constant 0 : i32
    return %arg0, %c0_i32, %arg1 : i32, i32, i32
  }
}

</mosaic_0001>

<llo_original>
// kernel: upconv_forward.1
$region0: #{upconv_forward.1}
  #allocation0 [shape = 'u32[]', space=smem, size = 0x4, offset = 0x4, fixed_abs, tag = 'smem constant byte address 0x4 - core index']
  #allocation1 [shape = 'u32[144,128]{1,0:T(1,128)}', space=vmem, size = 0x12000, scoped, tag = 'internal scratch']
  %s0 = inlined_call_operand.vmem [shape: bf16[2,18,18,4], index: 0, kind: input, shape index: {}]
  %s1 = inlined_call_operand.vmem [shape: bf16[9,4,32], index: 1, kind: input, shape index: {}]
  %s2 = inlined_call_operand.vmem [shape: f32[1,32], index: 2, kind: input, shape index: {}]
  %s3 = inlined_call_operand.vmem [shape: f32[1,32], index: 3, kind: input, shape index: {}]
  %s4 = inlined_call_operand.vmem [shape: f32[32,32], index: 4, kind: input, shape index: {}]
  %s5 = inlined_call_operand.vmem [shape: bf16[2,256,32], index: 5, kind: output, shape index: {}]
  %s6 = sld [smem:[#allocation0]]
  $region53: #{upconv_forward.1} parent=0
    _
  %s8 = ssub.s32 1, %s6
  %s9 = scalar_select 0, %s8, %s6
  loop: start=0, step=1, limit=4
  $region2: #{upconv_forward.1} parent=0 // loop_pre_header
    _
  $region3: #{upconv_forward.1} parent=0 // loop_header
    %s11 = sphi 0, %s15
    %p12 = scmp.ge.s32.totalorder %s11, 4
    %s18 = sphi 0, %s30
    %s19 = sphi 0, %s26
    %s20 = sphi 0, %s18
    %s21 = sphi 0, %s19
    %s22 = sphi 0, %s20
    %s23 = sphi 0, %s21
    %s33 = sphi 0, %s35
    %s36 = sphi 0, %s33
    %s37 = sphi 0, %s36
    %s53 = sphi 0, %s37
    %s59 = sphi 0, %s61
    %s62 = sphi 0, %s59
    %s63 = sphi 0, %s62
    %s79 = sphi 0, %s63
    %s85 = sphi 0, %s87
    %s88 = sphi 0, %s85
    %s89 = sphi 0, %s88
    %s105 = sphi 0, %s89
    %s111 = sphi 0, %s113
    %s114 = sphi 0, %s111
    %s115 = sphi 0, %s114
    %s131 = sphi 0, %s115
    %s135 = sphi 0, %s135
    %s137 = sphi 0, %s135
    %s138 = sphi 0, %s137
    %s152 = sphi 0, %s138
    %s160 = sphi 0, %s162
    %s163 = sphi 0, %s160
    %s164 = sphi 0, %s163
    %s180 = sphi 0, %s164
  $region4: #{upconv_forward.1} parent=0 // loop_header_branch
    %14 = sbr.rel (%p12) target = $region8
  $region5: #{upconv_forward.1} parent=0 // loop_body
    %s16 = ssub.s32 %s11, 1
    %s17 = ssub.s32 %s11, 2
    %s24 = sadd.s32 1, %s19
    %p25 = scmp.ge.s32.totalorder %s24, 1
    %s26 = scalar_select %p25, 0, %s24
    %s27 = sadd.s32 1, %s18
    %s28 = scalar_select %p25, %s27, %s18
    %p29 = scmp.ge.s32.totalorder %s28, 2
    %s30 = scalar_select %p29, 0, %s28
    %s31 = ssub.s32 %s18, %s30
    %p32 = scmp.eq.s32.totalorder %s31, 0
    %s34 = sadd.s32 %s33, 1
    %s35 = scalar_select %p32, %s33, %s34
    %p38 = pneg %p32
    %p39 = scmp.eq.s32.totalorder %s11, 1
    %p40 = por %p38, %p39
    %p41 = scmp.ne.s32.totalorder %s33, %s36
    %p42 = scmp.eq.s32.totalorder %s11, 0
    %p43 = por %p41, %p42
    %p44 = scmp.ne.s32.totalorder %s33, %s36
    %p45 = scmp.eq.s32.totalorder %s16, 1
    %p46 = por %p44, %p45
    %p47 = scmp.ne.s32.totalorder %s36, %s37
    %p48 = scmp.eq.s32.totalorder %s16, 0
    %p49 = por %p47, %p48
    %p50 = scmp.ne.s32.totalorder %s36, %s37
    %p51 = scmp.eq.s32.totalorder %s17, 1
    %p52 = por %p50, %p51
    %p54 = scmp.ne.s32.totalorder %s37, %s53
    %p55 = scmp.eq.s32.totalorder %s17, 0
    %p56 = por %p54, %p55
    %s57 = ssub.s32 %s19, %s26
    %p58 = scmp.eq.s32.totalorder %s57, 0
    %s60 = sadd.s32 %s59, 1
    %s61 = scalar_select %p58, %s59, %s60
    %p64 = pneg %p58
    %p65 = scmp.eq.s32.totalorder %s11, 1
    %p66 = por %p64, %p65
    %p67 = scmp.ne.s32.totalorder %s59, %s62
    %p68 = scmp.eq.s32.totalorder %s11, 0
    %p69 = por %p67, %p68
    %p70 = scmp.ne.s32.totalorder %s59, %s62
    %p71 = scmp.eq.s32.totalorder %s16, 1
    %p72 = por %p70, %p71
    %p73 = scmp.ne.s32.totalorder %s62, %s63
    %p74 = scmp.eq.s32.totalorder %s16, 0
    %p75 = por %p73, %p74
    %p76 = scmp.ne.s32.totalorder %s62, %s63
    %p77 = scmp.eq.s32.totalorder %s17, 1
    %p78 = por %p76, %p77
    %p80 = scmp.ne.s32.totalorder %s63, %s79
    %p81 = scmp.eq.s32.totalorder %s17, 0
    %p82 = por %p80, %p81
    %s83 = ssub.s32 %s19, %s26
    %p84 = scmp.eq.s32.totalorder %s83, 0
    %s86 = sadd.s32 %s85, 1
    %s87 = scalar_select %p84, %s85, %s86
    %p90 = pneg %p84
    %p91 = scmp.eq.s32.totalorder %s11, 1
    %p92 = por %p90, %p91
    %p93 = scmp.ne.s32.totalorder %s85, %s88
    %p94 = scmp.eq.s32.totalorder %s11, 0
    %p95 = por %p93, %p94
    %p96 = scmp.ne.s32.totalorder %s85, %s88
    %p97 = scmp.eq.s32.totalorder %s16, 1
    %p98 = por %p96, %p97
    %p99 = scmp.ne.s32.totalorder %s88, %s89
    %p100 = scmp.eq.s32.totalorder %s16, 0
    %p101 = por %p99, %p100
    %p102 = scmp.ne.s32.totalorder %s88, %s89
    %p103 = scmp.eq.s32.totalorder %s17, 1
    %p104 = por %p102, %p103
    %p106 = scmp.ne.s32.totalorder %s89, %s105
    %p107 = scmp.eq.s32.totalorder %s17, 0
    %p108 = por %p106, %p107
    %s109 = ssub.s32 %s19, %s26
    %p110 = scmp.eq.s32.totalorder %s109, 0
    %s112 = sadd.s32 %s111, 1
    %s113 = scalar_select %p110, %s111, %s112
    %p116 = pneg %p110
    %p117 = scmp.eq.s32.totalorder %s11, 1
    %p118 = por %p116, %p117
    %p119 = scmp.ne.s32.totalorder %s111, %s114
    %p120 = scmp.eq.s32.totalorder %s11, 0
    %p121 = por %p119, %p120
    %p122 = scmp.ne.s32.totalorder %s111, %s114
    %p123 = scmp.eq.s32.totalorder %s16, 1
    %p124 = por %p122, %p123
    %p125 = scmp.ne.s32.totalorder %s114, %s115
    %p126 = scmp.eq.s32.totalorder %s16, 0
    %p127 = por %p125, %p126
    %p128 = scmp.ne.s32.totalorder %s114, %s115
    %p129 = scmp.eq.s32.totalorder %s17, 1
    %p130 = por %p128, %p129
    %p132 = scmp.ne.s32.totalorder %s115, %s131
    %p133 = scmp.eq.s32.totalorder %s17, 0
    %p134 = por %p132, %p133
    %s136 = sadd.s32 %s135, 1
    %p139 = scmp.eq.s32.totalorder %s11, 1
    %p140 = scmp.ne.s32.totalorder %s135, %s137
    %p141 = scmp.eq.s32.totalorder %s11, 0
    %p142 = por %p140, %p141
    %p143 = scmp.ne.s32.totalorder %s135, %s137
    %p144 = scmp.eq.s32.totalorder %s16, 1
    %p145 = por %p143, %p144
    %p146 = scmp.ne.s32.totalorder %s137, %s138
    %p147 = scmp.eq.s32.totalorder %s16, 0
    %p148 = por %p146, %p147
    %p149 = scmp.ne.s32.totalorder %s137, %s138
    %p150 = scmp.eq.s32.totalorder %s17, 1
    %p151 = por %p149, %p150
    %p153 = scmp.ne.s32.totalorder %s138, %s152
    %p154 = scmp.eq.s32.totalorder %s17, 0
    %p155 = por %p153, %p154
    %s156 = ssub.s32 %s18, %s30
    %s157 = ssub.s32 %s19, %s26
    %s158 = sor.u32 %s156, %s157
    %p159 = scmp.eq.s32.totalorder %s158, 0
    %s161 = sadd.s32 %s160, 1
    %s162 = scalar_select %p159, %s160, %s161
    %p165 = pneg %p159
    %p166 = scmp.eq.s32.totalorder %s11, 1
    %p167 = por %p165, %p166
    %p168 = scmp.ne.s32.totalorder %s160, %s163
    %p169 = scmp.eq.s32.totalorder %s11, 0
    %p170 = por %p168, %p169
    %p171 = scmp.ne.s32.totalorder %s160, %s163
    %p172 = scmp.eq.s32.totalorder %s16, 1
    %p173 = por %p171, %p172
    %p174 = scmp.ne.s32.totalorder %s163, %s164
    %p175 = scmp.eq.s32.totalorder %s16, 0
    %p176 = por %p174, %p175
    %p177 = scmp.ne.s32.totalorder %s163, %s164
    %p178 = scmp.eq.s32.totalorder %s17, 1
    %p179 = por %p177, %p178
    %p181 = scmp.ne.s32.totalorder %s164, %s180
    %p182 = scmp.eq.s32.totalorder %s17, 0
    %p183 = por %p181, %p182
    %p184 = scmp.le.s32.totalorder 1, %s11
    %p185 = scmp.lt.s32.totalorder %s11, 3
    %p186 = pnand %p184, %p185
    %p187 = pneg %p186
    // Predicated region
    $region9: #{upconv_forward.1} parent=5 // pred_check
      _
    $region10: #{upconv_forward.1} parent=5 // pred_check_branch
      %189 = sbr.rel (%p186) target = $region12
    $region11: #{upconv_forward.1} parent=5 // pred_region
      %s190 = ssub.s32 %s11, 1
      // Predicated region
      $region13: #{upconv_forward.1} parent=11 // pred_check
        %p191 = pneg %p75
      $region14: #{upconv_forward.1} parent=11 // pred_check_branch
        %193 = sbr.rel (%p191) target = $region16
      $region15: #{upconv_forward.1} parent=11 // pred_region
        %p194 = scmp.lt.s32.totalorder %s21, 0
        %s195 = scalar_select %p194, %s21, 0
        %s196 = smul.addr %s195, 2
        %s197 = scalar_lea.vmem %s1, %s196
      $region16: #{upconv_forward.1} parent=11 // pred_fallthru
        _
      // Predicated region
      $region17: #{upconv_forward.1} parent=11 // pred_check
        %p198 = pneg %p101
      $region18: #{upconv_forward.1} parent=11 // pred_check_branch
        %200 = sbr.rel (%p198) target = $region20
      $region19: #{upconv_forward.1} parent=11 // pred_region
        %p201 = scmp.lt.s32.totalorder %s21, 0
        %s202 = scalar_select %p201, %s21, 0
        %s203 = scalar_lea.vmem %s2, %s202
      $region20: #{upconv_forward.1} parent=11 // pred_fallthru
        _
      // Predicated region
      $region21: #{upconv_forward.1} parent=11 // pred_check
        %p204 = pneg %p127
      $region22: #{upconv_forward.1} parent=11 // pred_check_branch
        %206 = sbr.rel (%p204) target = $region24
      $region23: #{upconv_forward.1} parent=11 // pred_region
        %p207 = scmp.lt.s32.totalorder %s21, 0
        %s208 = scalar_select %p207, %s21, 0
        %s209 = scalar_lea.vmem %s3, %s208
      $region24: #{upconv_forward.1} parent=11 // pred_fallthru
        _
      // Predicated region
      $region25: #{upconv_forward.1} parent=11 // pred_check
        %p210 = pneg %p148
      $region26: #{upconv_forward.1} parent=11 // pred_check_branch
        %212 = sbr.rel (%p210) target = $region28
      $region27: #{upconv_forward.1} parent=11 // pred_region
        _
      $region28: #{upconv_forward.1} parent=11 // pred_fallthru
        _
    $region12: #{upconv_forward.1} parent=5 // pred_fallthru
      _
    %p213 = scmp.lt.s32.totalorder %s11, 2
    // Predicated region
    $region29: #{upconv_forward.1} parent=5 // pred_check
      %p214 = pneg %p213
    $region30: #{upconv_forward.1} parent=5 // pred_check_branch
      %216 = sbr.rel (%p214) target = $region32
    $region31: #{upconv_forward.1} parent=5 // pred_region
      // Predicated region
      $region33: #{upconv_forward.1} parent=31 // pred_check
        %p217 = pneg %p43
      $region34: #{upconv_forward.1} parent=31 // pred_check_branch
        %219 = sbr.rel (%p217) target = $region36
      $region35: #{upconv_forward.1} parent=31 // pred_region
        %p220 = scmp.lt.s32.totalorder %s18, 1
        %s221 = scalar_select %p220, %s18, 1
        %s222 = smul.addr %s221, 54
        %s223 = smul.addr %s222, 4
        %s224 = scalar_lea.vmem %s0, %s223
      $region36: #{upconv_forward.1} parent=31 // pred_fallthru
        _
    $region32: #{upconv_forward.1} parent=5 // pred_fallthru
      _
    %p225 = scmp.le.s32.totalorder 1, %s11
    %p226 = scmp.lt.s32.totalorder %s11, 3
    %p227 = pnand %p225, %p226
    %p228 = pneg %p227
    // Predicated region
    $region37: #{upconv_forward.1} parent=5 // pred_check
      _
    $region38: #{upconv_forward.1} parent=5 // pred_check_branch
      %230 = sbr.rel (%p227) target = $region40
    $region39: #{upconv_forward.1} parent=5 // pred_region
      %s231 = ssub.s32 %s11, 1
      %p232 = scmp.lt.s32.totalorder %s20, 1
      %s233 = scalar_select %p232, %s20, 1
      %s234 = smul.addr %s233, 54
      %s235 = smul.addr %s234, 4
      %s236 = scalar_lea.vmem %s0, %s235
      %p237 = pneg %p49
      %p238 = pneg %p46
      %p239 = scmp.lt.s32.totalorder %s21, 0
      %s240 = scalar_select %p239, %s21, 0
      %s241 = smul.addr %s240, 2
      %s242 = scalar_lea.vmem %s1, %s241
      %p243 = pneg %p75
      %p244 = pneg %p72
      %p245 = scmp.lt.s32.totalorder %s21, 0
      %s246 = scalar_select %p245, %s21, 0
      %s247 = scalar_lea.vmem %s2, %s246
      %p248 = pneg %p101
      %p249 = pneg %p98
      %p250 = scmp.lt.s32.totalorder %s21, 0
      %s251 = scalar_select %p250, %s21, 0
      %s252 = scalar_lea.vmem %s3, %s251
      %p253 = pneg %p127
      %p254 = pneg %p124
      %p255 = pneg %p148
      %p256 = pneg %p145
      %p257 = pneg %p176
      %p258 = pneg %p173
      %p259 = scmp.lt.s32.totalorder %s20, 1
      %s260 = scalar_select %p259, %s20, 1
      %p261 = scmp.lt.s32.totalorder %s21, 0
      %s262 = scalar_select %p261, %s21, 0
      %s263 = smul.addr %s260, 32
      %s264 = sadd.s32 %s262, %s263
      %s265 = smul.addr %s264, 4
      %s266 = scalar_lea.vmem %s5, %s265
      %p267 = scmp.lt.s32.totalorder %s20, 1
      %s268 = scalar_select %p267, %s20, 1
      %s269 = smul.addr %s268, 54
      %s270 = smul.addr %s269, 4
      %s271 = scalar_lea.vmem %s0, %s270
      %p272 = scmp.lt.s32.totalorder %s21, 0
      %s273 = scalar_select %p272, %s21, 0
      %s274 = smul.addr %s273, 2
      %s275 = scalar_lea.vmem %s1, %s274
      %p276 = scmp.lt.s32.totalorder %s21, 0
      %s277 = scalar_select %p276, %s21, 0
      %s278 = scalar_lea.vmem %s2, %s277
      %p279 = scmp.lt.s32.totalorder %s21, 0
      %s280 = scalar_select %p279, %s21, 0
      %s281 = scalar_lea.vmem %s3, %s280
      %p282 = scmp.lt.s32.totalorder %s20, 1
      %s283 = scalar_select %p282, %s20, 1
      %p284 = scmp.lt.s32.totalorder %s21, 0
      %s285 = scalar_select %p284, %s21, 0
      %s286 = smul.addr %s283, 32
      %s287 = sadd.s32 %s285, %s286
      %s288 = smul.addr %s287, 4
      %s289 = scalar_lea.vmem %s5, %s288
      %v291 = vld [vmem:[%s271] sm:$0xf]
      %v292 = vld [vmem:[%s271 + $0x4] sm:$0xf]
      %v293 = vld [vmem:[%s271 + $0xc] sm:$0xf]
      %v294 = vld [vmem:[%s271 + $0x10] sm:$0xf]
      %v295 = vld [vmem:[%s271 + $0x18] sm:$0xf]
      %v296 = vld [vmem:[%s271 + $0x1c] sm:$0xf]
      %v297 = vld [vmem:[%s271 + $0x24] sm:$0xf]
      %v298 = vld [vmem:[%s271 + $0x28] sm:$0xf]
      %v299 = vld [vmem:[%s271 + $0x30] sm:$0xf]
      %v300 = vld [vmem:[%s271 + $0x34] sm:$0xf]
      %v301 = vld [vmem:[%s271 + $0x3c] sm:$0xf]
      %v302 = vld [vmem:[%s271 + $0x40] sm:$0xf]
      %v303 = vld [vmem:[%s271 + $0x48] sm:$0xf]
      %v304 = vld [vmem:[%s271 + $0x4c] sm:$0xf]
      %v305 = vld [vmem:[%s271 + $0x54] sm:$0xf]
      %v306 = vld [vmem:[%s271 + $0x58] sm:$0xf]
      %v307 = vld [vmem:[%s271 + $0x60] sm:$0xf]
      %v308 = vld [vmem:[%s271 + $0x64] sm:$0xf]
      %v309 = vld [vmem:[%s271 + $0x6c] sm:$0xf]
      %v310 = vld [vmem:[%s271 + $0x70] sm:$0xf]
      %v311 = vld [vmem:[%s271 + $0x78] sm:$0xf]
      %v312 = vld [vmem:[%s271 + $0x7c] sm:$0xf]
      %v313 = vld [vmem:[%s271 + $0x84] sm:$0xf]
      %v314 = vld [vmem:[%s271 + $0x88] sm:$0xf]
      %v315 = vld [vmem:[%s271 + $0x90] sm:$0xf]
      %v316 = vld [vmem:[%s271 + $0x94] sm:$0xf]
      %v317 = vld [vmem:[%s271 + $0x9c] sm:$0xf]
      %v318 = vld [vmem:[%s271 + $0xa0] sm:$0xf]
      %v319 = vld [vmem:[%s271 + $0xa8] sm:$0xf]
      %v320 = vld [vmem:[%s271 + $0xac] sm:$0xf]
      %v321 = vld [vmem:[%s271 + $0xb4] sm:$0xf]
      %v322 = vld [vmem:[%s271 + $0xb8] sm:$0xf]
      %v323 = vld [vmem:[%s275] sm:$0x3]
      %v324 = vld [vmem:[%s271 + $0x8] sm:$0x1]
      %v325 = vld [vmem:[%s271 + $0x14] sm:$0x1]
      %v326 = vld [vmem:[%s271 + $0x20] sm:$0x1]
      %v327 = vld [vmem:[%s271 + $0x2c] sm:$0x1]
      %v328 = vld [vmem:[%s271 + $0x38] sm:$0x1]
      %v329 = vld [vmem:[%s271 + $0x44] sm:$0x1]
      %v330 = vld [vmem:[%s271 + $0x50] sm:$0x1]
      %v331 = vld [vmem:[%s271 + $0x5c] sm:$0x1]
      %v332 = vld [vmem:[%s271 + $0x68] sm:$0x1]
      %v333 = vld [vmem:[%s271 + $0x74] sm:$0x1]
      %v334 = vld [vmem:[%s271 + $0x80] sm:$0x1]
      %v335 = vld [vmem:[%s271 + $0x8c] sm:$0x1]
      %v336 = vld [vmem:[%s271 + $0x98] sm:$0x1]
      %v337 = vld [vmem:[%s271 + $0xa4] sm:$0x1]
      %v338 = vld [vmem:[%s271 + $0xb0] sm:$0x1]
      %v339 = vld [vmem:[%s271 + $0xbc] sm:$0x1]
      %vm340 = vsmask.f32 3328
      %vm341 = vsmask.f32 7440
      %vm342 = vmor %vm340, %vm341
      %v344 = vshrl.u32 %v291, 16
      %v346 = vrot.slane %v344, 4
      %v347 = vshll.u32 %v291, 16
      %v349 = vrot.slane %v347, 5
      %v350 = vor.u32 %v346, %v349
      %v351 = vrot.slane %v350, 4
      %v353 = vshll.u32 %v292, 16
      %v355 = vrot.slane %v353, 5
      %v356 = vsel %vm342, %v351, %v355
      %v357 = vshrl.u32 %v292, 16
      %v359 = vrot.slane %v357, 4
      %v360 = vor.u32 %v359, %v355
      %v361 = vrot.slane %v360, 4
      %v363 = vshll.u32 %v324, 16
      %v365 = vrot.slane %v363, 5
      %v366 = vsel %vm342, %v361, %v365
      %v368 = vshrl.u32 %v293, 16
      %v370 = vrot.slane %v368, 4
      %v371 = vshll.u32 %v293, 16
      %v373 = vrot.slane %v371, 5
      %v374 = vor.u32 %v370, %v373
      %v375 = vrot.slane %v374, 4
      %v377 = vshll.u32 %v294, 16
      %v379 = vrot.slane %v377, 5
      %v380 = vsel %vm342, %v375, %v379
      %v381 = vshrl.u32 %v294, 16
      %v383 = vrot.slane %v381, 4
      %v384 = vor.u32 %v383, %v379
      %v385 = vrot.slane %v384, 4
      %v387 = vshll.u32 %v325, 16
      %v389 = vrot.slane %v387, 5
      %v390 = vsel %vm342, %v385, %v389
      %v392 = vshrl.u32 %v295, 16
      %v394 = vrot.slane %v392, 4
      %v395 = vshll.u32 %v295, 16
      %v397 = vrot.slane %v395, 5
      %v398 = vor.u32 %v394, %v397
      %v399 = vrot.slane %v398, 4
      %v401 = vshll.u32 %v296, 16
      %v403 = vrot.slane %v401, 5
      %v404 = vsel %vm342, %v399, %v403
      %v405 = vshrl.u32 %v296, 16
      %v407 = vrot.slane %v405, 4
      %v408 = vor.u32 %v407, %v403
      %v409 = vrot.slane %v408, 4
      %v411 = vshll.u32 %v326, 16
      %v413 = vrot.slane %v411, 5
      %v414 = vsel %vm342, %v409, %v413
      %v416 = vshrl.u32 %v297, 16
      %v418 = vrot.slane %v416, 4
      %v419 = vshll.u32 %v297, 16
      %v421 = vrot.slane %v419, 5
      %v422 = vor.u32 %v418, %v421
      %v423 = vrot.slane %v422, 4
      %v425 = vshll.u32 %v298, 16
      %v427 = vrot.slane %v425, 5
      %v428 = vsel %vm342, %v423, %v427
      %v429 = vshrl.u32 %v298, 16
      %v431 = vrot.slane %v429, 4
      %v432 = vor.u32 %v431, %v427
      %v433 = vrot.slane %v432, 4
      %v435 = vshll.u32 %v327, 16
      %v437 = vrot.slane %v435, 5
      %v438 = vsel %vm342, %v433, %v437
      %v440 = vshrl.u32 %v299, 16
      %v442 = vrot.slane %v440, 4
      %v443 = vshll.u32 %v299, 16
      %v445 = vrot.slane %v443, 5
      %v446 = vor.u32 %v442, %v445
      %v447 = vrot.slane %v446, 4
      %v449 = vshll.u32 %v300, 16
      %v451 = vrot.slane %v449, 5
      %v452 = vsel %vm342, %v447, %v451
      %v453 = vshrl.u32 %v300, 16
      %v455 = vrot.slane %v453, 4
      %v456 = vor.u32 %v455, %v451
      %v457 = vrot.slane %v456, 4
      %v459 = vshll.u32 %v328, 16
      %v461 = vrot.slane %v459, 5
      %v462 = vsel %vm342, %v457, %v461
      %v464 = vshrl.u32 %v301, 16
      %v466 = vrot.slane %v464, 4
      %v467 = vshll.u32 %v301, 16
      %v469 = vrot.slane %v467, 5
      %v470 = vor.u32 %v466, %v469
      %v471 = vrot.slane %v470, 4
      %v473 = vshll.u32 %v302, 16
      %v475 = vrot.slane %v473, 5
      %v476 = vsel %vm342, %v471, %v475
      %v477 = vshrl.u32 %v302, 16
      %v479 = vrot.slane %v477, 4
      %v480 = vor.u32 %v479, %v475
      %v481 = vrot.slane %v480, 4
      %v483 = vshll.u32 %v329, 16
      %v485 = vrot.slane %v483, 5
      %v486 = vsel %vm342, %v481, %v485
      %v488 = vshrl.u32 %v303, 16
      %v490 = vrot.slane %v488, 4
      %v491 = vshll.u32 %v303, 16
      %v493 = vrot.slane %v491, 5
      %v494 = vor.u32 %v490, %v493
      %v495 = vrot.slane %v494, 4
      %v497 = vshll.u32 %v304, 16
      %v499 = vrot.slane %v497, 5
      %v500 = vsel %vm342, %v495, %v499
      %v501 = vshrl.u32 %v304, 16
      %v503 = vrot.slane %v501, 4
      %v504 = vor.u32 %v503, %v499
      %v505 = vrot.slane %v504, 4
      %v507 = vshll.u32 %v330, 16
      %v509 = vrot.slane %v507, 5
      %v510 = vsel %vm342, %v505, %v509
      %v512 = vshrl.u32 %v305, 16
      %v514 = vrot.slane %v512, 4
      %v515 = vshll.u32 %v305, 16
      %v517 = vrot.slane %v515, 5
      %v518 = vor.u32 %v514, %v517
      %v519 = vrot.slane %v518, 4
      %v521 = vshll.u32 %v306, 16
      %v523 = vrot.slane %v521, 5
      %v524 = vsel %vm342, %v519, %v523
      %v525 = vshrl.u32 %v306, 16
      %v527 = vrot.slane %v525, 4
      %v528 = vor.u32 %v527, %v523
      %v529 = vrot.slane %v528, 4
      %v531 = vshll.u32 %v331, 16
      %v533 = vrot.slane %v531, 5
      %v534 = vsel %vm342, %v529, %v533
      %v536 = vshrl.u32 %v307, 16
      %v538 = vrot.slane %v536, 4
      %v539 = vshll.u32 %v307, 16
      %v541 = vrot.slane %v539, 5
      %v542 = vor.u32 %v538, %v541
      %v543 = vrot.slane %v542, 4
      %v545 = vshll.u32 %v308, 16
      %v547 = vrot.slane %v545, 5
      %v548 = vsel %vm342, %v543, %v547
      %v549 = vshrl.u32 %v308, 16
      %v551 = vrot.slane %v549, 4
      %v552 = vor.u32 %v551, %v547
      %v553 = vrot.slane %v552, 4
      %v555 = vshll.u32 %v332, 16
      %v557 = vrot.slane %v555, 5
      %v558 = vsel %vm342, %v553, %v557
      %v560 = vshrl.u32 %v309, 16
      %v562 = vrot.slane %v560, 4
      %v563 = vshll.u32 %v309, 16
      %v565 = vrot.slane %v563, 5
      %v566 = vor.u32 %v562, %v565
      %v567 = vrot.slane %v566, 4
      %v569 = vshll.u32 %v310, 16
      %v571 = vrot.slane %v569, 5
      %v572 = vsel %vm342, %v567, %v571
      %v573 = vshrl.u32 %v310, 16
      %v575 = vrot.slane %v573, 4
      %v576 = vor.u32 %v575, %v571
      %v577 = vrot.slane %v576, 4
      %v579 = vshll.u32 %v333, 16
      %v581 = vrot.slane %v579, 5
      %v582 = vsel %vm342, %v577, %v581
      %v584 = vshrl.u32 %v311, 16
      %v586 = vrot.slane %v584, 4
      %v587 = vshll.u32 %v311, 16
      %v589 = vrot.slane %v587, 5
      %v590 = vor.u32 %v586, %v589
      %v591 = vrot.slane %v590, 4
      %v593 = vshll.u32 %v312, 16
      %v595 = vrot.slane %v593, 5
      %v596 = vsel %vm342, %v591, %v595
      %v597 = vshrl.u32 %v312, 16
      %v599 = vrot.slane %v597, 4
      %v600 = vor.u32 %v599, %v595
      %v601 = vrot.slane %v600, 4
      %v603 = vshll.u32 %v334, 16
      %v605 = vrot.slane %v603, 5
      %v606 = vsel %vm342, %v601, %v605
      %v608 = vshrl.u32 %v313, 16
      %v610 = vrot.slane %v608, 4
      %v611 = vshll.u32 %v313, 16
      %v613 = vrot.slane %v611, 5
      %v614 = vor.u32 %v610, %v613
      %v615 = vrot.slane %v614, 4
      %v617 = vshll.u32 %v314, 16
      %v619 = vrot.slane %v617, 5
      %v620 = vsel %vm342, %v615, %v619
      %v621 = vshrl.u32 %v314, 16
      %v623 = vrot.slane %v621, 4
      %v624 = vor.u32 %v623, %v619
      %v625 = vrot.slane %v624, 4
      %v627 = vshll.u32 %v335, 16
      %v629 = vrot.slane %v627, 5
      %v630 = vsel %vm342, %v625, %v629
      %v632 = vshrl.u32 %v315, 16
      %v634 = vrot.slane %v632, 4
      %v635 = vshll.u32 %v315, 16
      %v637 = vrot.slane %v635, 5
      %v638 = vor.u32 %v634, %v637
      %v639 = vrot.slane %v638, 4
      %v641 = vshll.u32 %v316, 16
      %v643 = vrot.slane %v641, 5
      %v644 = vsel %vm342, %v639, %v643
      %v645 = vshrl.u32 %v316, 16
      %v647 = vrot.slane %v645, 4
      %v648 = vor.u32 %v647, %v643
      %v649 = vrot.slane %v648, 4
      %v651 = vshll.u32 %v336, 16
      %v653 = vrot.slane %v651, 5
      %v654 = vsel %vm342, %v649, %v653
      %v656 = vshrl.u32 %v317, 16
      %v658 = vrot.slane %v656, 4
      %v659 = vshll.u32 %v317, 16
      %v661 = vrot.slane %v659, 5
      %v662 = vor.u32 %v658, %v661
      %v663 = vrot.slane %v662, 4
      %v665 = vshll.u32 %v318, 16
      %v667 = vrot.slane %v665, 5
      %v668 = vsel %vm342, %v663, %v667
      %v669 = vshrl.u32 %v318, 16
      %v671 = vrot.slane %v669, 4
      %v672 = vor.u32 %v671, %v667
      %v673 = vrot.slane %v672, 4
      %v675 = vshll.u32 %v337, 16
      %v677 = vrot.slane %v675, 5
      %v678 = vsel %vm342, %v673, %v677
      %v680 = vshrl.u32 %v319, 16
      %v682 = vrot.slane %v680, 4
      %v683 = vshll.u32 %v319, 16
      %v685 = vrot.slane %v683, 5
      %v686 = vor.u32 %v682, %v685
      %v687 = vrot.slane %v686, 4
      %v689 = vshll.u32 %v320, 16
      %v691 = vrot.slane %v689, 5
      %v692 = vsel %vm342, %v687, %v691
      %v693 = vshrl.u32 %v320, 16
      %v695 = vrot.slane %v693, 4
      %v696 = vor.u32 %v695, %v691
      %v697 = vrot.slane %v696, 4
      %v699 = vshll.u32 %v338, 16
      %v701 = vrot.slane %v699, 5
      %v702 = vsel %vm342, %v697, %v701
      %v704 = vshrl.u32 %v321, 16
      %v706 = vrot.slane %v704, 4
      %v707 = vshll.u32 %v321, 16
      %v709 = vrot.slane %v707, 5
      %v710 = vor.u32 %v706, %v709
      %v711 = vrot.slane %v710, 4
      %v713 = vshll.u32 %v322, 16
      %v715 = vrot.slane %v713, 5
      %v716 = vsel %vm342, %v711, %v715
      %v717 = vshrl.u32 %v322, 16
      %v719 = vrot.slane %v717, 4
      %v720 = vor.u32 %v719, %v715
      %v721 = vrot.slane %v720, 4
      %v723 = vshll.u32 %v339, 16
      %v725 = vrot.slane %v723, 5
      %v726 = vsel %vm342, %v721, %v725
      %s727 = scalar_lea.vmem %s275, 2
      %v728 = vld [vmem:[%s727] sm:$0x3]
      %v729 = vunpack.c.l.b16 %v356
      %v730 = vunpack.c.l.b16 %v366
      %v731 = vunpack.c.l.b16 %v380
      %v732 = vunpack.c.l.b16 %v390
      %v733 = vunpack.c.l.b16 %v404
      %v734 = vunpack.c.l.b16 %v414
      %v735 = vunpack.c.l.b16 %v428
      %v736 = vunpack.c.l.b16 %v438
      %v737 = vunpack.c.l.b16 %v452
      %v738 = vunpack.c.l.b16 %v462
      %v739 = vunpack.c.l.b16 %v476
      %v740 = vunpack.c.l.b16 %v486
      %v741 = vunpack.c.l.b16 %v500
      %v742 = vunpack.c.l.b16 %v510
      %v743 = vunpack.c.l.b16 %v524
      %v744 = vunpack.c.l.b16 %v534
      %v745 = vunpack.c.l.b16 %v548
      %v746 = vunpack.c.l.b16 %v558
      %v747 = vunpack.c.l.b16 %v572
      %v748 = vunpack.c.l.b16 %v582
      %v749 = vunpack.c.l.b16 %v596
      %v750 = vunpack.c.l.b16 %v606
      %v751 = vunpack.c.l.b16 %v620
      %v752 = vunpack.c.l.b16 %v630
      %v753 = vunpack.c.l.b16 %v644
      %v754 = vunpack.c.l.b16 %v654
      %v755 = vunpack.c.l.b16 %v668
      %v756 = vunpack.c.l.b16 %v678
      %v757 = vunpack.c.l.b16 %v692
      %v758 = vunpack.c.l.b16 %v702
      %v759 = vunpack.c.l.b16 %v716
      %v760 = vunpack.c.l.b16 %v726
      %v761 = vpack.c.b16 %v730, %v729
      %v762 = vpack.c.b16 %v732, %v731
      %v763 = vpack.c.b16 %v734, %v733
      %v764 = vpack.c.b16 %v736, %v735
      %v765 = vpack.c.b16 %v738, %v737
      %v766 = vpack.c.b16 %v740, %v739
      %v767 = vpack.c.b16 %v742, %v741
      %v768 = vpack.c.b16 %v744, %v743
      %v769 = vpack.c.b16 %v746, %v745
      %v770 = vpack.c.b16 %v748, %v747
      %v771 = vpack.c.b16 %v750, %v749
      %v772 = vpack.c.b16 %v752, %v751
      %v773 = vpack.c.b16 %v754, %v753
      %v774 = vpack.c.b16 %v756, %v755
      %v775 = vpack.c.b16 %v758, %v757
      %v776 = vpack.c.b16 %v760, %v759
      %vm777 = vcmask 31744
      %v779 = vsel %vm777, %v761, 0
      %v782 = vsel %vm777, %v762, 0
      %v785 = vsel %vm777, %v763, 0
      %v788 = vsel %vm777, %v764, 0
      %v791 = vsel %vm777, %v765, 0
      %v794 = vsel %vm777, %v766, 0
      %v797 = vsel %vm777, %v767, 0
      %v800 = vsel %vm777, %v768, 0
      %v803 = vsel %vm777, %v769, 0
      %v806 = vsel %vm777, %v770, 0
      %v809 = vsel %vm777, %v771, 0
      %v812 = vsel %vm777, %v772, 0
      %v815 = vsel %vm777, %v773, 0
      %v818 = vsel %vm777, %v774, 0
      %v821 = vsel %vm777, %v775, 0
      %v824 = vsel %vm777, %v776, 0
      %vm826 = vcmask 1041408
      %v828 = vsel %vm826, %v728, 0
      %830 = vmatprep.subr.bf16.mxu0 0
      %831 = vmatpush1.bf16.msra.mxu0 %v828
      %832 = vmatprep.subr.bf16.mxu0 0
      %833 = vmatpush1.bf16.msra.mxu0 0
      %834 = vmatprep.subr.bf16.mxu0 0
      %835 = vmatpush1.bf16.msra.mxu0 0
      %836 = vmatprep.subr.bf16.mxu0 0
      %837 = vmatpush1.bf16.msra.mxu0 0
      %838 = vmatprep.subr.bf16.mxu0 0
      %839 = vmatpush1.bf16.msra.mxu0 0
      %840 = vmatprep.subr.bf16.mxu0 0
      %841 = vmatpush1.bf16.msra.mxu0 0
      %842 = vmatprep.subr.bf16.mxu0 0
      %843 = vmatpush1.bf16.msra.mxu0 0
      %844 = vmatprep.subr.bf16.mxu0 0
      %845 = vmatpush1.bf16.msra.mxu0 0
      %846 = vmatprep.subr.bf16.mxu0 0
      %847 = vmatpush1.bf16.msra.mxu0 0
      %848 = vmatprep.subr.bf16.mxu0 0
      %849 = vmatpush1.bf16.msra.mxu0 0
      %850 = vmatprep.subr.bf16.mxu0 0
      %851 = vmatpush1.bf16.msra.mxu0 0
      %852 = vmatprep.subr.bf16.mxu0 0
      %853 = vmatpush1.bf16.msra.mxu0 0
      %854 = vmatprep.subr.bf16.mxu0 0
      %855 = vmatpush1.bf16.msra.mxu0 0
      %856 = vmatprep.subr.bf16.mxu0 0
      %857 = vmatpush1.bf16.msra.mxu0 0
      %858 = vmatprep.subr.bf16.mxu0 0
      %859 = vmatpush1.bf16.msra.mxu0 0
      %860 = vmatprep.subr.bf16.mxu0 0
      %861 = vmatpush1.bf16.msra.mxu0 0
      %862 = vmatprep.mubr.bf16.mxu0 0
      %863 = vmatmul.mubr.bf16.gmra.mrb[0].mxu0 %v779
      %v864 = vpop.f32.mrb[0].mxu0
      %v865 = vadd.f32 0.0, %v864
      %v866 = vpop.f32.mrb[0].mxu0
      %v867 = vpop.f32.mrb[0].mxu0
      %v868 = vadd.f32 0.0, %v867
      %v869 = vpop.f32.mrb[0].mxu0
      %870 = vmatprep.mubr.bf16.mxu0 0
      %871 = vmatmul.mubr.bf16.gmra.mrb[0].mxu0 %v782
      %v872 = vpop.f32.mrb[0].mxu0
      %v873 = vadd.f32 0.0, %v872
      %v874 = vpop.f32.mrb[0].mxu0
      %v875 = vpop.f32.mrb[0].mxu0
      %v876 = vadd.f32 0.0, %v875
      %v877 = vpop.f32.mrb[0].mxu0
      %878 = vmatprep.mubr.bf16.mxu0 0
      %879 = vmatmul.mubr.bf16.gmra.mrb[0].mxu0 %v785
      %v880 = vpop.f32.mrb[0].mxu0
      %v881 = vadd.f32 0.0, %v880
      %v882 = vpop.f32.mrb[0].mxu0
      %v883 = vpop.f32.mrb[0].mxu0
      %v884 = vadd.f32 0.0, %v883
      %v885 = vpop.f32.mrb[0].mxu0
      %886 = vmatprep.mubr.bf16.mxu0 0
      %887 = vmatmul.mubr.bf16.gmra.mrb[0].mxu0 %v788
      %v888 = vpop.f32.mrb[0].mxu0
      %v889 = vadd.f32 0.0, %v888
      %v890 = vpop.f32.mrb[0].mxu0
      %v891 = vpop.f32.mrb[0].mxu0
      %v892 = vadd.f32 0.0, %v891
      %v893 = vpop.f32.mrb[0].mxu0
      %894 = vmatprep.mubr.bf16.mxu0 0
      %895 = vmatmul.mubr.bf16.gmra.mrb[0].mxu0 %v791
      %v896 = vpop.f32.mrb[0].mxu0
      %v897 = vadd.f32 0.0, %v896
      %v898 = vpop.f32.mrb[0].mxu0
      %v899 = vpop.f32.mrb[0].mxu0
      %v900 = vadd.f32 0.0, %v899
      %v901 = vpop.f32.mrb[0].mxu0
      %902 = vmatprep.mubr.bf16.mxu0 0
      %903 = vmatmul.mubr.bf16.gmra.mrb[0].mxu0 %v794
      %v904 = vpop.f32.mrb[0].mxu0
      %v905 = vadd.f32 0.0, %v904
      %v906 = vpop.f32.mrb[0].mxu0
      %v907 = vpop.f32.mrb[0].mxu0
      %v908 = vadd.f32 0.0, %v907
      %v909 = vpop.f32.mrb[0].mxu0
      %910 = vmatprep.mubr.bf16.mxu0 0
      %911 = vmatmul.mubr.bf16.gmra.mrb[0].mxu0 %v797
      %v912 = vpop.f32.mrb[0].mxu0
      %v913 = vadd.f32 0.0, %v912
      %v914 = vpop.f32.mrb[0].mxu0
      %v915 = vpop.f32.mrb[0].mxu0
      %v916 = vadd.f32 0.0, %v915
      %v917 = vpop.f32.mrb[0].mxu0
      %918 = vmatprep.mubr.bf16.mxu0 0
      %919 = vmatmul.mubr.bf16.gmra.mrb[0].mxu0 %v800
      %v920 = vpop.f32.mrb[0].mxu0
      %v921 = vadd.f32 0.0, %v920
      %v922 = vpop.f32.mrb[0].mxu0
      %v923 = vpop.f32.mrb[0].mxu0
      %v924 = vadd.f32 0.0, %v923
      %v925 = vpop.f32.mrb[0].mxu0
      %926 = vmatprep.mubr.bf16.mxu0 0
      %927 = vmatmul.mubr.bf16.gmra.mrb[0].mxu0 %v803
      %v928 = vpop.f32.mrb[0].mxu0
      %v929 = vadd.f32 0.0, %v928
      %v930 = vpop.f32.mrb[0].mxu0
      %v931 = vpop.f32.mrb[0].mxu0
      %v932 = vadd.f32 0.0, %v931
      %v933 = vpop.f32.mrb[0].mxu0
      %934 = vmatprep.mubr.bf16.mxu0 0
      %935 = vmatmul.mubr.bf16.gmra.mrb[0].mxu0 %v806
      %v936 = vpop.f32.mrb[0].mxu0
      %v937 = vadd.f32 0.0, %v936
      %v938 = vpop.f32.mrb[0].mxu0
      %v939 = vpop.f32.mrb[0].mxu0
      %v940 = vadd.f32 0.0, %v939
      %v941 = vpop.f32.mrb[0].mxu0
      %942 = vmatprep.mubr.bf16.mxu0 0
      %943 = vmatmul.mubr.bf16.gmra.mrb[0].mxu0 %v809
      %v944 = vpop.f32.mrb[0].mxu0
      %v945 = vadd.f32 0.0, %v944
      %v946 = vpop.f32.mrb[0].mxu0
      %v947 = vpop.f32.mrb[0].mxu0
      %v948 = vadd.f32 0.0, %v947
      %v949 = vpop.f32.mrb[0].mxu0
      %950 = vmatprep.mubr.bf16.mxu0 0
      %951 = vmatmul.mubr.bf16.gmra.mrb[0].mxu0 %v812
      %v952 = vpop.f32.mrb[0].mxu0
      %v953 = vadd.f32 0.0, %v952
      %v954 = vpop.f32.mrb[0].mxu0
      %v955 = vpop.f32.mrb[0].mxu0
      %v956 = vadd.f32 0.0, %v955
      %v957 = vpop.f32.mrb[0].mxu0
      %958 = vmatprep.mubr.bf16.mxu0 0
      %959 = vmatmul.mubr.bf16.gmra.mrb[0].mxu0 %v815
      %v960 = vpop.f32.mrb[0].mxu0
      %v961 = vadd.f32 0.0, %v960
      %v962 = vpop.f32.mrb[0].mxu0
      %v963 = vpop.f32.mrb[0].mxu0
      %v964 = vadd.f32 0.0, %v963
      %v965 = vpop.f32.mrb[0].mxu0
      %966 = vmatprep.mubr.bf16.mxu0 0
      %967 = vmatmul.mubr.bf16.gmra.mrb[0].mxu0 %v818
      %v968 = vpop.f32.mrb[0].mxu0
      %v969 = vadd.f32 0.0, %v968
      %v970 = vpop.f32.mrb[0].mxu0
      %v971 = vpop.f32.mrb[0].mxu0
      %v972 = vadd.f32 0.0, %v971
      %v973 = vpop.f32.mrb[0].mxu0
      %974 = vmatprep.mubr.bf16.mxu0 0
      %975 = vmatmul.mubr.bf16.gmra.mrb[0].mxu0 %v821
      %v976 = vpop.f32.mrb[0].mxu0
      %v977 = vadd.f32 0.0, %v976
      %v978 = vpop.f32.mrb[0].mxu0
      %v979 = vpop.f32.mrb[0].mxu0
      %v980 = vadd.f32 0.0, %v979
      %v981 = vpop.f32.mrb[0].mxu0
      %982 = vmatprep.mubr.bf16.mxu0 0
      %983 = vmatmul.mubr.bf16.gmra.mrb[0].mxu0 %v824
      %v984 = vpop.f32.mrb[0].mxu0
      %v985 = vadd.f32 0.0, %v984
      %v986 = vpop.f32.mrb[0].mxu0
      %v987 = vpop.f32.mrb[0].mxu0
      %v988 = vadd.f32 0.0, %v987
      %v989 = vpop.f32.mrb[0].mxu0
      %990 = vdwg.mxu0
      %v1023 = vunpack.c.l.b16 %v291
      %v1024 = vunpack.c.l.b16 %v292
      %v1025 = vunpack.c.l.b16 %v293
      %v1026 = vunpack.c.l.b16 %v294
      %v1027 = vunpack.c.l.b16 %v295
      %v1028 = vunpack.c.l.b16 %v296
      %v1029 = vunpack.c.l.b16 %v297
      %v1030 = vunpack.c.l.b16 %v298
      %v1031 = vunpack.c.l.b16 %v299
      %v1032 = vunpack.c.l.b16 %v300
      %v1033 = vunpack.c.l.b16 %v301
      %v1034 = vunpack.c.l.b16 %v302
      %v1035 = vunpack.c.l.b16 %v303
      %v1036 = vunpack.c.l.b16 %v304
      %v1037 = vunpack.c.l.b16 %v305
      %v1038 = vunpack.c.l.b16 %v306
      %v1039 = vunpack.c.l.b16 %v307
      %v1040 = vunpack.c.l.b16 %v308
      %v1041 = vunpack.c.l.b16 %v309
      %v1042 = vunpack.c.l.b16 %v310
      %v1043 = vunpack.c.l.b16 %v311
      %v1044 = vunpack.c.l.b16 %v312
      %v1045 = vunpack.c.l.b16 %v313
      %v1046 = vunpack.c.l.b16 %v314
      %v1047 = vunpack.c.l.b16 %v315
      %v1048 = vunpack.c.l.b16 %v316
      %v1049 = vunpack.c.l.b16 %v317
      %v1050 = vunpack.c.l.b16 %v318
      %v1051 = vunpack.c.l.b16 %v319
      %v1052 = vunpack.c.l.b16 %v320
      %v1053 = vunpack.c.l.b16 %v321
      %v1054 = vunpack.c.l.b16 %v322
      %v1055 = vpack.c.b16 %v1024, %v1023
      %v1056 = vpack.c.b16 %v1026, %v1025
      %v1057 = vpack.c.b16 %v1028, %v1027
      %v1058 = vpack.c.b16 %v1030, %v1029
      %v1059 = vpack.c.b16 %v1032, %v1031
      %v1060 = vpack.c.b16 %v1034, %v1033
      %v1061 = vpack.c.b16 %v1036, %v1035
      %v1062 = vpack.c.b16 %v1038, %v1037
      %v1063 = vpack.c.b16 %v1040, %v1039
      %v1064 = vpack.c.b16 %v1042, %v1041
      %v1065 = vpack.c.b16 %v1044, %v1043
      %v1066 = vpack.c.b16 %v1046, %v1045
      %v1067 = vpack.c.b16 %v1048, %v1047
      %v1068 = vpack.c.b16 %v1050, %v1049
      %v1069 = vpack.c.b16 %v1052, %v1051
      %v1070 = vpack.c.b16 %v1054, %v1053
      %v1072 = vsel %vm777, %v1055, 0
      %v1075 = vsel %vm777, %v1056, 0
      %v1078 = vsel %vm777, %v1057, 0
      %v1081 = vsel %vm777, %v1058, 0
      %v1084 = vsel %vm777, %v1059, 0
      %v1087 = vsel %vm777, %v1060, 0
      %v1090 = vsel %vm777, %v1061, 0
      %v1093 = vsel %vm777, %v1062, 0
      %v1096 = vsel %vm777, %v1063, 0
      %v1099 = vsel %vm777, %v1064, 0
      %v1102 = vsel %vm777, %v1065, 0
      %v1105 = vsel %vm777, %v1066, 0
      %v1108 = vsel %vm777, %v1067, 0
      %v1111 = vsel %vm777, %v1068, 0
      %v1114 = vsel %vm777, %v1069, 0
      %v1117 = vsel %vm777, %v1070, 0
      %v1120 = vsel %vm826, %v323, 0
      %1122 = vmatprep.subr.bf16.mxu0 0
      %1123 = vmatpush1.bf16.msra.mxu0 %v1120
      %1124 = vmatprep.subr.bf16.mxu0 0
      %1125 = vmatpush1.bf16.msra.mxu0 0
      %1126 = vmatprep.subr.bf16.mxu0 0
      %1127 = vmatpush1.bf16.msra.mxu0 0
      %1128 = vmatprep.subr.bf16.mxu0 0
      %1129 = vmatpush1.bf16.msra.mxu0 0
      %1130 = vmatprep.subr.bf16.mxu0 0
      %1131 = vmatpush1.bf16.msra.mxu0 0
      %1132 = vmatprep.subr.bf16.mxu0 0
      %1133 = vmatpush1.bf16.msra.mxu0 0
      %1134 = vmatprep.subr.bf16.mxu0 0
      %1135 = vmatpush1.bf16.msra.mxu0 0
      %1136 = vmatprep.subr.bf16.mxu0 0
      %1137 = vmatpush1.bf16.msra.mxu0 0
      %1138 = vmatprep.subr.bf16.mxu0 0
      %1139 = vmatpush1.bf16.msra.mxu0 0
      %1140 = vmatprep.subr.bf16.mxu0 0
      %1141 = vmatpush1.bf16.msra.mxu0 0
      %1142 = vmatprep.subr.bf16.mxu0 0
      %1143 = vmatpush1.bf16.msra.mxu0 0
      %1144 = vmatprep.subr.bf16.mxu0 0
      %1145 = vmatpush1.bf16.msra.mxu0 0
      %1146 = vmatprep.subr.bf16.mxu0 0
      %1147 = vmatpush1.bf16.msra.mxu0 0
      %1148 = vmatprep.subr.bf16.mxu0 0
      %1149 = vmatpush1.bf16.msra.mxu0 0
      %1150 = vmatprep.subr.bf16.mxu0 0
      %1151 = vmatpush1.bf16.msra.mxu0 0
      %1152 = vmatprep.subr.bf16.mxu0 0
      %1153 = vmatpush1.bf16.msra.mxu0 0
      %1154 = vmatprep.mubr.bf16.mxu0 0
      %1155 = vmatmul.mubr.bf16.gmra.mrb[0].mxu0 %v1072
      %v1156 = vpop.f32.mrb[0].mxu0
      %v1157 = vadd.f32 %v865, %v1156
      %v1158 = vpop.f32.mrb[0].mxu0
      %v1159 = vpop.f32.mrb[0].mxu0
      %v1160 = vadd.f32 %v868, %v1159
      %v1161 = vpop.f32.mrb[0].mxu0
      %1162 = vmatprep.mubr.bf16.mxu0 0
      %1163 = vmatmul.mubr.bf16.gmra.mrb[0].mxu0 %v1075
      %v1164 = vpop.f32.mrb[0].mxu0
      %v1165 = vadd.f32 %v873, %v1164
      %v1166 = vpop.f32.mrb[0].mxu0
      %v1167 = vpop.f32.mrb[0].mxu0
      %v1168 = vadd.f32 %v876, %v1167
      %v1169 = vpop.f32.mrb[0].mxu0
      %1170 = vmatprep.mubr.bf16.mxu0 0
      %1171 = vmatmul.mubr.bf16.gmra.mrb[0].mxu0 %v1078
      %v1172 = vpop.f32.mrb[0].mxu0
      %v1173 = vadd.f32 %v881, %v1172
      %v1174 = vpop.f32.mrb[0].mxu0
      %v1175 = vpop.f32.mrb[0].mxu0
      %v1176 = vadd.f32 %v884, %v1175
      %v1177 = vpop.f32.mrb[0].mxu0
      %1178 = vmatprep.mubr.bf16.mxu0 0
      %1179 = vmatmul.mubr.bf16.gmra.mrb[0].mxu0 %v1081
      %v1180 = vpop.f32.mrb[0].mxu0
      %v1181 = vadd.f32 %v889, %v1180
      %v1182 = vpop.f32.mrb[0].mxu0
      %v1183 = vpop.f32.mrb[0].mxu0
      %v1184 = vadd.f32 %v892, %v1183
      %v1185 = vpop.f32.mrb[0].mxu0
      %1186 = vmatprep.mubr.bf16.mxu0 0
      %1187 = vmatmul.mubr.bf16.gmra.mrb[0].mxu0 %v1084
      %v1188 = vpop.f32.mrb[0].mxu0
      %v1189 = vadd.f32 %v897, %v1188
      %v1190 = vpop.f32.mrb[0].mxu0
      %v1191 = vpop.f32.mrb[0].mxu0
      %v1192 = vadd.f32 %v900, %v1191
      %v1193 = vpop.f32.mrb[0].mxu0
      %1194 = vmatprep.mubr.bf16.mxu0 0
      %1195 = vmatmul.mubr.bf16.gmra.mrb[0].mxu0 %v1087
      %v1196 = vpop.f32.mrb[0].mxu0
      %v1197 = vadd.f32 %v905, %v1196
      %v1198 = vpop.f32.mrb[0].mxu0
      %v1199 = vpop.f32.mrb[0].mxu0
      %v1200 = vadd.f32 %v908, %v1199
      %v1201 = vpop.f32.mrb[0].mxu0
      %1202 = vmatprep.mubr.bf16.mxu0 0
      %1203 = vmatmul.mubr.bf16.gmra.mrb[0].mxu0 %v1090
      %v1204 = vpop.f32.mrb[0].mxu0
      %v1205 = vadd.f32 %v913, %v1204
      %v1206 = vpop.f32.mrb[0].mxu0
      %v1207 = vpop.f32.mrb[0].mxu0
      %v1208 = vadd.f32 %v916, %v1207
      %v1209 = vpop.f32.mrb[0].mxu0
      %1210 = vmatprep.mubr.bf16.mxu0 0
      %1211 = vmatmul.mubr.bf16.gmra.mrb[0].mxu0 %v1093
      %v1212 = vpop.f32.mrb[0].mxu0
      %v1213 = vadd.f32 %v921, %v1212
      %v1214 = vpop.f32.mrb[0].mxu0
      %v1215 = vpop.f32.mrb[0].mxu0
      %v1216 = vadd.f32 %v924, %v1215
      %v1217 = vpop.f32.mrb[0].mxu0
      %1218 = vmatprep.mubr.bf16.mxu0 0
      %1219 = vmatmul.mubr.bf16.gmra.mrb[0].mxu0 %v1096
      %v1220 = vpop.f32.mrb[0].mxu0
      %v1221 = vadd.f32 %v929, %v1220
      %v1222 = vpop.f32.mrb[0].mxu0
      %v1223 = vpop.f32.mrb[0].mxu0
      %v1224 = vadd.f32 %v932, %v1223
      %v1225 = vpop.f32.mrb[0].mxu0
      %1226 = vmatprep.mubr.bf16.mxu0 0
      %1227 = vmatmul.mubr.bf16.gmra.mrb[0].mxu0 %v1099
      %v1228 = vpop.f32.mrb[0].mxu0
      %v1229 = vadd.f32 %v937, %v1228
      %v1230 = vpop.f32.mrb[0].mxu0
      %v1231 = vpop.f32.mrb[0].mxu0
      %v1232 = vadd.f32 %v940, %v1231
      %v1233 = vpop.f32.mrb[0].mxu0
      %1234 = vmatprep.mubr.bf16.mxu0 0
      %1235 = vmatmul.mubr.bf16.gmra.mrb[0].mxu0 %v1102
      %v1236 = vpop.f32.mrb[0].mxu0
      %v1237 = vadd.f32 %v945, %v1236
      %v1238 = vpop.f32.mrb[0].mxu0
      %v1239 = vpop.f32.mrb[0].mxu0
      %v1240 = vadd.f32 %v948, %v1239
      %v1241 = vpop.f32.mrb[0].mxu0
      %1242 = vmatprep.mubr.bf16.mxu0 0
      %1243 = vmatmul.mubr.bf16.gmra.mrb[0].mxu0 %v1105
      %v1244 = vpop.f32.mrb[0].mxu0
      %v1245 = vadd.f32 %v953, %v1244
      %v1246 = vpop.f32.mrb[0].mxu0
      %v1247 = vpop.f32.mrb[0].mxu0
      %v1248 = vadd.f32 %v956, %v1247
      %v1249 = vpop.f32.mrb[0].mxu0
      %1250 = vmatprep.mubr.bf16.mxu0 0
      %1251 = vmatmul.mubr.bf16.gmra.mrb[0].mxu0 %v1108
      %v1252 = vpop.f32.mrb[0].mxu0
      %v1253 = vadd.f32 %v961, %v1252
      %v1254 = vpop.f32.mrb[0].mxu0
      %v1255 = vpop.f32.mrb[0].mxu0
      %v1256 = vadd.f32 %v964, %v1255
      %v1257 = vpop.f32.mrb[0].mxu0
      %1258 = vmatprep.mubr.bf16.mxu0 0
      %1259 = vmatmul.mubr.bf16.gmra.mrb[0].mxu0 %v1111
      %v1260 = vpop.f32.mrb[0].mxu0
      %v1261 = vadd.f32 %v969, %v1260
      %v1262 = vpop.f32.mrb[0].mxu0
      %v1263 = vpop.f32.mrb[0].mxu0
      %v1264 = vadd.f32 %v972, %v1263
      %v1265 = vpop.f32.mrb[0].mxu0
      %1266 = vmatprep.mubr.bf16.mxu0 0
      %1267 = vmatmul.mubr.bf16.gmra.mrb[0].mxu0 %v1114
      %v1268 = vpop.f32.mrb[0].mxu0
      %v1269 = vadd.f32 %v977, %v1268
      %v1270 = vpop.f32.mrb[0].mxu0
      %v1271 = vpop.f32.mrb[0].mxu0
      %v1272 = vadd.f32 %v980, %v1271
      %v1273 = vpop.f32.mrb[0].mxu0
      %1274 = vmatprep.mubr.bf16.mxu0 0
      %1275 = vmatmul.mubr.bf16.gmra.mrb[0].mxu0 %v1117
      %v1276 = vpop.f32.mrb[0].mxu0
      %v1277 = vadd.f32 %v985, %v1276
      %v1278 = vpop.f32.mrb[0].mxu0
      %v1279 = vpop.f32.mrb[0].mxu0
      %v1280 = vadd.f32 %v988, %v1279
      %v1281 = vpop.f32.mrb[0].mxu0
      %1282 = vdwg.mxu0
      %v1283 = vld [vmem:[%s271] sm:$0xe]
      %v1284 = vld [vmem:[%s271 + $0xc] sm:$0xe]
      %v1285 = vld [vmem:[%s271 + $0x18] sm:$0xe]
      %v1286 = vld [vmem:[%s271 + $0x24] sm:$0xe]
      %v1287 = vld [vmem:[%s271 + $0x30] sm:$0xe]
      %v1288 = vld [vmem:[%s271 + $0x3c] sm:$0xe]
      %v1289 = vld [vmem:[%s271 + $0x48] sm:$0xe]
      %v1290 = vld [vmem:[%s271 + $0x54] sm:$0xe]
      %v1291 = vld [vmem:[%s271 + $0x60] sm:$0xe]
      %v1292 = vld [vmem:[%s271 + $0x6c] sm:$0xe]
      %v1293 = vld [vmem:[%s271 + $0x78] sm:$0xe]
      %v1294 = vld [vmem:[%s271 + $0x84] sm:$0xe]
      %v1295 = vld [vmem:[%s271 + $0x90] sm:$0xe]
      %v1296 = vld [vmem:[%s271 + $0x9c] sm:$0xe]
      %v1297 = vld [vmem:[%s271 + $0xa8] sm:$0xe]
      %v1298 = vld [vmem:[%s271 + $0xb4] sm:$0xe]
      %vm1331 = vcmask 1042432
      %vm1332 = vcmask 1046532
      %vm1333 = vmor %vm1331, %vm1332
      %v1334 = vrot.slane %v1283, 5
      %v1335 = vrot.slane %v1334, 4
      %v1336 = vrot.slane %v292, 5
      %v1337 = vsel %vm1333, %v1335, %v1336
      %v1338 = vrot.slane %v1336, 4
      %v1339 = vrot.slane %v324, 5
      %v1340 = vsel %vm1333, %v1338, %v1339
      %v1341 = vrot.slane %v1284, 5
      %v1342 = vrot.slane %v1341, 4
      %v1343 = vrot.slane %v294, 5
      %v1344 = vsel %vm1333, %v1342, %v1343
      %v1345 = vrot.slane %v1343, 4
      %v1346 = vrot.slane %v325, 5
      %v1347 = vsel %vm1333, %v1345, %v1346
      %v1348 = vrot.slane %v1285, 5
      %v1349 = vrot.slane %v1348, 4
      %v1350 = vrot.slane %v296, 5
      %v1351 = vsel %vm1333, %v1349, %v1350
      %v1352 = vrot.slane %v1350, 4
      %v1353 = vrot.slane %v326, 5
      %v1354 = vsel %vm1333, %v1352, %v1353
      %v1355 = vrot.slane %v1286, 5
      %v1356 = vrot.slane %v1355, 4
      %v1357 = vrot.slane %v298, 5
      %v1358 = vsel %vm1333, %v1356, %v1357
      %v1359 = vrot.slane %v1357, 4
      %v1360 = vrot.slane %v327, 5
      %v1361 = vsel %vm1333, %v1359, %v1360
      %v1362 = vrot.slane %v1287, 5
      %v1363 = vrot.slane %v1362, 4
      %v1364 = vrot.slane %v300, 5
      %v1365 = vsel %vm1333, %v1363, %v1364
      %v1366 = vrot.slane %v1364, 4
      %v1367 = vrot.slane %v328, 5
      %v1368 = vsel %vm1333, %v1366, %v1367
      %v1369 = vrot.slane %v1288, 5
      %v1370 = vrot.slane %v1369, 4
      %v1371 = vrot.slane %v302, 5
      %v1372 = vsel %vm1333, %v1370, %v1371
      %v1373 = vrot.slane %v1371, 4
      %v1374 = vrot.slane %v329, 5
      %v1375 = vsel %vm1333, %v1373, %v1374
      %v1376 = vrot.slane %v1289, 5
      %v1377 = vrot.slane %v1376, 4
      %v1378 = vrot.slane %v304, 5
      %v1379 = vsel %vm1333, %v1377, %v1378
      %v1380 = vrot.slane %v1378, 4
      %v1381 = vrot.slane %v330, 5
      %v1382 = vsel %vm1333, %v1380, %v1381
      %v1383 = vrot.slane %v1290, 5
      %v1384 = vrot.slane %v1383, 4
      %v1385 = vrot.slane %v306, 5
      %v1386 = vsel %vm1333, %v1384, %v1385
      %v1387 = vrot.slane %v1385, 4
      %v1388 = vrot.slane %v331, 5
      %v1389 = vsel %vm1333, %v1387, %v1388
      %v1390 = vrot.slane %v1291, 5
      %v1391 = vrot.slane %v1390, 4
      %v1392 = vrot.slane %v308, 5
      %v1393 = vsel %vm1333, %v1391, %v1392
      %v1394 = vrot.slane %v1392, 4
      %v1395 = vrot.slane %v332, 5
      %v1396 = vsel %vm1333, %v1394, %v1395
      %v1397 = vrot.slane %v1292, 5
      %v1398 = vrot.slane %v1397, 4
      %v1399 = vrot.slane %v310, 5
      %v1400 = vsel %vm1333, %v1398, %v1399
      %v1401 = vrot.slane %v1399, 4
      %v1402 = vrot.slane %v333, 5
      %v1403 = vsel %vm1333, %v1401, %v1402
      %v1404 = vrot.slane %v1293, 5
      %v1405 = vrot.slane %v1404, 4
      %v1406 = vrot.slane %v312, 5
      %v1407 = vsel %vm1333, %v1405, %v1406
      %v1408 = vrot.slane %v1406, 4
      %v1409 = vrot.slane %v334, 5
      %v1410 = vsel %vm1333, %v1408, %v1409
      %v1411 = vrot.slane %v1294, 5
      %v1412 = vrot.slane %v1411, 4
      %v1413 = vrot.slane %v314, 5
      %v1414 = vsel %vm1333, %v1412, %v1413
      %v1415 = vrot.slane %v1413, 4
      %v1416 = vrot.slane %v335, 5
      %v1417 = vsel %vm1333, %v1415, %v1416
      %v1418 = vrot.slane %v1295, 5
      %v1419 = vrot.slane %v1418, 4
      %v1420 = vrot.slane %v316, 5
      %v1421 = vsel %vm1333, %v1419, %v1420
      %v1422 = vrot.slane %v1420, 4
      %v1423 = vrot.slane %v336, 5
      %v1424 = vsel %vm1333, %v1422, %v1423
      %v1425 = vrot.slane %v1296, 5
      %v1426 = vrot.slane %v1425, 4
      %v1427 = vrot.slane %v318, 5
      %v1428 = vsel %vm1333, %v1426, %v1427
      %v1429 = vrot.slane %v1427, 4
      %v1430 = vrot.slane %v337, 5
      %v1431 = vsel %vm1333, %v1429, %v1430
      %v1432 = vrot.slane %v1297, 5
      %v1433 = vrot.slane %v1432, 4
      %v1434 = vrot.slane %v320, 5
      %v1435 = vsel %vm1333, %v1433, %v1434
      %v1436 = vrot.slane %v1434, 4
      %v1437 = vrot.slane %v338, 5
      %v1438 = vsel %vm1333, %v1436, %v1437
      %v1439 = vrot.slane %v1298, 5
      %v1440 = vrot.slane %v1439, 4
      %v1441 = vrot.slane %v322, 5
      %v1442 = vsel %vm1333, %v1440, %v1441
      %v1443 = vrot.slane %v1441, 4
      %v1444 = vrot.slane %v339, 5
      %v1445 = vsel %vm1333, %v1443, %v1444
      %s1446 = scalar_lea.vmem %s275, 4
      %v1447 = vld [vmem:[%s1446] sm:$0x3]
      %v1448 = vunpack.c.l.b16 %v1337
      %v1449 = vunpack.c.l.b16 %v1340
      %v1450 = vunpack.c.l.b16 %v1344
      %v1451 = vunpack.c.l.b16 %v1347
      %v1452 = vunpack.c.l.b16 %v1351
      %v1453 = vunpack.c.l.b16 %v1354
      %v1454 = vunpack.c.l.b16 %v1358
      %v1455 = vunpack.c.l.b16 %v1361
      %v1456 = vunpack.c.l.b16 %v1365
      %v1457 = vunpack.c.l.b16 %v1368
      %v1458 = vunpack.c.l.b16 %v1372
      %v1459 = vunpack.c.l.b16 %v1375
      %v1460 = vunpack.c.l.b16 %v1379
      %v1461 = vunpack.c.l.b16 %v1382
      %v1462 = vunpack.c.l.b16 %v1386
      %v1463 = vunpack.c.l.b16 %v1389
      %v1464 = vunpack.c.l.b16 %v1393
      %v1465 = vunpack.c.l.b16 %v1396
      %v1466 = vunpack.c.l.b16 %v1400
      %v1467 = vunpack.c.l.b16 %v1403
      %v1468 = vunpack.c.l.b16 %v1407
      %v1469 = vunpack.c.l.b16 %v1410
      %v1470 = vunpack.c.l.b16 %v1414
      %v1471 = vunpack.c.l.b16 %v1417
      %v1472 = vunpack.c.l.b16 %v1421
      %v1473 = vunpack.c.l.b16 %v1424
      %v1474 = vunpack.c.l.b16 %v1428
      %v1475 = vunpack.c.l.b16 %v1431
      %v1476 = vunpack.c.l.b16 %v1435
      %v1477 = vunpack.c.l.b16 %v1438
      %v1478 = vunpack.c.l.b16 %v1442
      %v1479 = vunpack.c.l.b16 %v1445
      %v1480 = vpack.c.b16 %v1449, %v1448
      %v1481 = vpack.c.b16 %v1451, %v1450
      %v1482 = vpack.c.b16 %v1453, %v1452
      %v1483 = vpack.c.b16 %v1455, %v1454
      %v1484 = vpack.c.b16 %v1457, %v1456
      %v1485 = vpack.c.b16 %v1459, %v1458
      %v1486 = vpack.c.b16 %v1461, %v1460
      %v1487 = vpack.c.b16 %v1463, %v1462
      %v1488 = vpack.c.b16 %v1465, %v1464
      %v1489 = vpack.c.b16 %v1467, %v1466
      %v1490 = vpack.c.b16 %v1469, %v1468
      %v1491 = vpack.c.b16 %v1471, %v1470
      %v1492 = vpack.c.b16 %v1473, %v1472
      %v1493 = vpack.c.b16 %v1475, %v1474
      %v1494 = vpack.c.b16 %v1477, %v1476
      %v1495 = vpack.c.b16 %v1479, %v1478
      %v1497 = vsel %vm777, %v1480, 0
      %v1500 = vsel %vm777, %v1481, 0
      %v1503 = vsel %vm777, %v1482, 0
      %v1506 = vsel %vm777, %v1483, 0
      %v1509 = vsel %vm777, %v1484, 0
      %v1512 = vsel %vm777, %v1485, 0
      %v1515 = vsel %vm777, %v1486, 0
      %v1518 = vsel %vm777, %v1487, 0
      %v1521 = vsel %vm777, %v1488, 0
      %v1524 = vsel %vm777, %v1489, 0
      %v1527 = vsel %vm777, %v1490, 0
      %v1530 = vsel %vm777, %v1491, 0
      %v1533 = vsel %vm777, %v1492, 0
      %v1536 = vsel %vm777, %v1493, 0
      %v1539 = vsel %vm777, %v1494, 0
      %v1542 = vsel %vm777, %v1495, 0
      %v1545 = vsel %vm826, %v1447, 0
      %1547 = vmatprep.subr.bf16.mxu0 0
      %1548 = vmatpush1.bf16.msra.mxu0 %v1545
      %1549 = vmatprep.subr.bf16.mxu0 0
      %1550 = vmatpush1.bf16.msra.mxu0 0
      %1551 = vmatprep.subr.bf16.mxu0 0
      %1552 = vmatpush1.bf16.msra.mxu0 0
      %1553 = vmatprep.subr.bf16.mxu0 0
      %1554 = vmatpush1.bf16.msra.mxu0 0
      %1555 = vmatprep.subr.bf16.mxu0 0
      %1556 = vmatpush1.bf16.msra.mxu0 0
      %1557 = vmatprep.subr.bf16.mxu0 0
      %1558 = vmatpush1.bf16.msra.mxu0 0
      %1559 = vmatprep.subr.bf16.mxu0 0
      %1560 = vmatpush1.bf16.msra.mxu0 0
      %1561 = vmatprep.subr.bf16.mxu0 0
      %1562 = vmatpush1.bf16.msra.mxu0 0
      %1563 = vmatprep.subr.bf16.mxu0 0
      %1564 = vmatpush1.bf16.msra.mxu0 0
      %1565 = vmatprep.subr.bf16.mxu0 0
      %1566 = vmatpush1.bf16.msra.mxu0 0
      %1567 = vmatprep.subr.bf16.mxu0 0
      %1568 = vmatpush1.bf16.msra.mxu0 0
      %1569 = vmatprep.subr.bf16.mxu0 0
      %1570 = vmatpush1.bf16.msra.mxu0 0
      %1571 = vmatprep.subr.bf16.mxu0 0
      %1572 = vmatpush1.bf16.msra.mxu0 0
      %1573 = vmatprep.subr.bf16.mxu0 0
      %1574 = vmatpush1.bf16.msra.mxu0 0
      %1575 = vmatprep.subr.bf16.mxu0 0
      %1576 = vmatpush1.bf16.msra.mxu0 0
      %1577 = vmatprep.subr.bf16.mxu0 0
      %1578 = vmatpush1.bf16.msra.mxu0 0
      %1579 = vmatprep.mubr.bf16.mxu0 0
      %1580 = vmatmul.mubr.bf16.gmra.mrb[0].mxu0 %v1497
      %v1581 = vpop.f32.mrb[0].mxu0
      %v1582 = vadd.f32 0.0, %v1581
      %v1583 = vpop.f32.mrb[0].mxu0
      %v1584 = vpop.f32.mrb[0].mxu0
      %v1585 = vadd.f32 0.0, %v1584
      %v1586 = vpop.f32.mrb[0].mxu0
      %1587 = vmatprep.mubr.bf16.mxu0 0
      %1588 = vmatmul.mubr.bf16.gmra.mrb[0].mxu0 %v1500
      %v1589 = vpop.f32.mrb[0].mxu0
      %v1590 = vadd.f32 0.0, %v1589
      %v1591 = vpop.f32.mrb[0].mxu0
      %v1592 = vpop.f32.mrb[0].mxu0
      %v1593 = vadd.f32 0.0, %v1592
      %v1594 = vpop.f32.mrb[0].mxu0
      %1595 = vmatprep.mubr.bf16.mxu0 0
      %1596 = vmatmul.mubr.bf16.gmra.mrb[0].mxu0 %v1503
      %v1597 = vpop.f32.mrb[0].mxu0
      %v1598 = vadd.f32 0.0, %v1597
      %v1599 = vpop.f32.mrb[0].mxu0
      %v1600 = vpop.f32.mrb[0].mxu0
      %v1601 = vadd.f32 0.0, %v1600
      %v1602 = vpop.f32.mrb[0].mxu0
      %1603 = vmatprep.mubr.bf16.mxu0 0
      %1604 = vmatmul.mubr.bf16.gmra.mrb[0].mxu0 %v1506
      %v1605 = vpop.f32.mrb[0].mxu0
      %v1606 = vadd.f32 0.0, %v1605
      %v1607 = vpop.f32.mrb[0].mxu0
      %v1608 = vpop.f32.mrb[0].mxu0
      %v1609 = vadd.f32 0.0, %v1608
      %v1610 = vpop.f32.mrb[0].mxu0
      %1611 = vmatprep.mubr.bf16.mxu0 0
      %1612 = vmatmul.mubr.bf16.gmra.mrb[0].mxu0 %v1509
      %v1613 = vpop.f32.mrb[0].mxu0
      %v1614 = vadd.f32 0.0, %v1613
      %v1615 = vpop.f32.mrb[0].mxu0
      %v1616 = vpop.f32.mrb[0].mxu0
      %v1617 = vadd.f32 0.0, %v1616
      %v1618 = vpop.f32.mrb[0].mxu0
      %1619 = vmatprep.mubr.bf16.mxu0 0
      %1620 = vmatmul.mubr.bf16.gmra.mrb[0].mxu0 %v1512
      %v1621 = vpop.f32.mrb[0].mxu0
      %v1622 = vadd.f32 0.0, %v1621
      %v1623 = vpop.f32.mrb[0].mxu0
      %v1624 = vpop.f32.mrb[0].mxu0
      %v1625 = vadd.f32 0.0, %v1624
      %v1626 = vpop.f32.mrb[0].mxu0
      %1627 = vmatprep.mubr.bf16.mxu0 0
      %1628 = vmatmul.mubr.bf16.gmra.mrb[0].mxu0 %v1515
      %v1629 = vpop.f32.mrb[0].mxu0
      %v1630 = vadd.f32 0.0, %v1629
      %v1631 = vpop.f32.mrb[0].mxu0
      %v1632 = vpop.f32.mrb[0].mxu0
      %v1633 = vadd.f32 0.0, %v1632
      %v1634 = vpop.f32.mrb[0].mxu0
      %1635 = vmatprep.mubr.bf16.mxu0 0
      %1636 = vmatmul.mubr.bf16.gmra.mrb[0].mxu0 %v1518
      %v1637 = vpop.f32.mrb[0].mxu0
      %v1638 = vadd.f32 0.0, %v1637
      %v1639 = vpop.f32.mrb[0].mxu0
      %v1640 = vpop.f32.mrb[0].mxu0
      %v1641 = vadd.f32 0.0, %v1640
      %v1642 = vpop.f32.mrb[0].mxu0
      %1643 = vmatprep.mubr.bf16.mxu0 0
      %1644 = vmatmul.mubr.bf16.gmra.mrb[0].mxu0 %v1521
      %v1645 = vpop.f32.mrb[0].mxu0
      %v1646 = vadd.f32 0.0, %v1645
      %v1647 = vpop.f32.mrb[0].mxu0
      %v1648 = vpop.f32.mrb[0].mxu0
      %v1649 = vadd.f32 0.0, %v1648
      %v1650 = vpop.f32.mrb[0].mxu0
      %1651 = vmatprep.mubr.bf16.mxu0 0
      %1652 = vmatmul.mubr.bf16.gmra.mrb[0].mxu0 %v1524
      %v1653 = vpop.f32.mrb[0].mxu0
      %v1654 = vadd.f32 0.0, %v1653
      %v1655 = vpop.f32.mrb[0].mxu0
      %v1656 = vpop.f32.mrb[0].mxu0
      %v1657 = vadd.f32 0.0, %v1656
      %v1658 = vpop.f32.mrb[0].mxu0
      %1659 = vmatprep.mubr.bf16.mxu0 0
      %1660 = vmatmul.mubr.bf16.gmra.mrb[0].mxu0 %v1527
      %v1661 = vpop.f32.mrb[0].mxu0
      %v1662 = vadd.f32 0.0, %v1661
      %v1663 = vpop.f32.mrb[0].mxu0
      %v1664 = vpop.f32.mrb[0].mxu0
      %v1665 = vadd.f32 0.0, %v1664
      %v1666 = vpop.f32.mrb[0].mxu0
      %1667 = vmatprep.mubr.bf16.mxu0 0
      %1668 = vmatmul.mubr.bf16.gmra.mrb[0].mxu0 %v1530
      %v1669 = vpop.f32.mrb[0].mxu0
      %v1670 = vadd.f32 0.0, %v1669
      %v1671 = vpop.f32.mrb[0].mxu0
      %v1672 = vpop.f32.mrb[0].mxu0
      %v1673 = vadd.f32 0.0, %v1672
      %v1674 = vpop.f32.mrb[0].mxu0
      %1675 = vmatprep.mubr.bf16.mxu0 0
      %1676 = vmatmul.mubr.bf16.gmra.mrb[0].mxu0 %v1533
      %v1677 = vpop.f32.mrb[0].mxu0
      %v1678 = vadd.f32 0.0, %v1677
      %v1679 = vpop.f32.mrb[0].mxu0
      %v1680 = vpop.f32.mrb[0].mxu0
      %v1681 = vadd.f32 0.0, %v1680
      %v1682 = vpop.f32.mrb[0].mxu0
      %1683 = vmatprep.mubr.bf16.mxu0 0
      %1684 = vmatmul.mubr.bf16.gmra.mrb[0].mxu0 %v1536
      %v1685 = vpop.f32.mrb[0].mxu0
      %v1686 = vadd.f32 0.0, %v1685
      %v1687 = vpop.f32.mrb[0].mxu0
      %v1688 = vpop.f32.mrb[0].mxu0
      %v1689 = vadd.f32 0.0, %v1688
      %v1690 = vpop.f32.mrb[0].mxu0
      %1691 = vmatprep.mubr.bf16.mxu0 0
      %1692 = vmatmul.mubr.bf16.gmra.mrb[0].mxu0 %v1539
      %v1693 = vpop.f32.mrb[0].mxu0
      %v1694 = vadd.f32 0.0, %v1693
      %v1695 = vpop.f32.mrb[0].mxu0
      %v1696 = vpop.f32.mrb[0].mxu0
      %v1697 = vadd.f32 0.0, %v1696
      %v1698 = vpop.f32.mrb[0].mxu0
      %1699 = vmatprep.mubr.bf16.mxu0 0
      %1700 = vmatmul.mubr.bf16.gmra.mrb[0].mxu0 %v1542
      %v1701 = vpop.f32.mrb[0].mxu0
      %v1702 = vadd.f32 0.0, %v1701
      %v1703 = vpop.f32.mrb[0].mxu0
      %v1704 = vpop.f32.mrb[0].mxu0
      %v1705 = vadd.f32 0.0, %v1704
      %v1706 = vpop.f32.mrb[0].mxu0
      %1707 = vdwg.mxu0
      %v1708 = vadd.f32 %v1157, %v1582
      %v1709 = vadd.f32 %v1160, %v1585
      %v1710 = vadd.f32 %v1165, %v1590
      %v1711 = vadd.f32 %v1168, %v1593
      %v1712 = vadd.f32 %v1173, %v1598
      %v1713 = vadd.f32 %v1176, %v1601
      %v1714 = vadd.f32 %v1181, %v1606
      %v1715 = vadd.f32 %v1184, %v1609
      %v1716 = vadd.f32 %v1189, %v1614
      %v1717 = vadd.f32 %v1192, %v1617
      %v1718 = vadd.f32 %v1197, %v1622
      %v1719 = vadd.f32 %v1200, %v1625
      %v1720 = vadd.f32 %v1205, %v1630
      %v1721 = vadd.f32 %v1208, %v1633
      %v1722 = vadd.f32 %v1213, %v1638
      %v1723 = vadd.f32 %v1216, %v1641
      %v1724 = vadd.f32 %v1221, %v1646
      %v1725 = vadd.f32 %v1224, %v1649
      %v1726 = vadd.f32 %v1229, %v1654
      %v1727 = vadd.f32 %v1232, %v1657
      %v1728 = vadd.f32 %v1237, %v1662
      %v1729 = vadd.f32 %v1240, %v1665
      %v1730 = vadd.f32 %v1245, %v1670
      %v1731 = vadd.f32 %v1248, %v1673
      %v1732 = vadd.f32 %v1253, %v1678
      %v1733 = vadd.f32 %v1256, %v1681
      %v1734 = vadd.f32 %v1261, %v1686
      %v1735 = vadd.f32 %v1264, %v1689
      %v1736 = vadd.f32 %v1269, %v1694
      %v1737 = vadd.f32 %v1272, %v1697
      %v1738 = vadd.f32 %v1277, %v1702
      %v1739 = vadd.f32 %v1280, %v1705
      %s1740 = scalar_lea.vmem %s271, 12
      %v1741 = vld [vmem:[%s1740] sm:$0xf]
      %v1742 = vld [vmem:[%s1740 + $0x4] sm:$0xf]
      %v1743 = vld [vmem:[%s1740 + $0xc] sm:$0xf]
      %v1744 = vld [vmem:[%s1740 + $0x10] sm:$0xf]
      %v1745 = vld [vmem:[%s1740 + $0x18] sm:$0xf]
      %v1746 = vld [vmem:[%s1740 + $0x1c] sm:$0xf]
      %v1747 = vld [vmem:[%s1740 + $0x24] sm:$0xf]
      %v1748 = vld [vmem:[%s1740 + $0x28] sm:$0xf]
      %v1749 = vld [vmem:[%s1740 + $0x30] sm:$0xf]
      %v1750 = vld [vmem:[%s1740 + $0x34] sm:$0xf]
      %v1751 = vld [vmem:[%s1740 + $0x3c] sm:$0xf]
      %v1752 = vld [vmem:[%s1740 + $0x40] sm:$0xf]
      %v1753 = vld [vmem:[%s1740 + $0x48] sm:$0xf]
      %v1754 = vld [vmem:[%s1740 + $0x4c] sm:$0xf]
      %v1755 = vld [vmem:[%s1740 + $0x54] sm:$0xf]
      %v1756 = vld [vmem:[%s1740 + $0x58] sm:$0xf]
      %v1757 = vld [vmem:[%s1740 + $0x60] sm:$0xf]
      %v1758 = vld [vmem:[%s1740 + $0x64] sm:$0xf]
      %v1759 = vld [vmem:[%s1740 + $0x6c] sm:$0xf]
      %v1760 = vld [vmem:[%s1740 + $0x70] sm:$0xf]
      %v1761 = vld [vmem:[%s1740 + $0x78] sm:$0xf]
      %v1762 = vld [vmem:[%s1740 + $0x7c] sm:$0xf]
      %v1763 = vld [vmem:[%s1740 + $0x84] sm:$0xf]
      %v1764 = vld [vmem:[%s1740 + $0x88] sm:$0xf]
      %v1765 = vld [vmem:[%s1740 + $0x90] sm:$0xf]
      %v1766 = vld [vmem:[%s1740 + $0x94] sm:$0xf]
      %v1767 = vld [vmem:[%s1740 + $0x9c] sm:$0xf]
      %v1768 = vld [vmem:[%s1740 + $0xa0] sm:$0xf]
      %v1769 = vld [vmem:[%s1740 + $0xa8] sm:$0xf]
      %v1770 = vld [vmem:[%s1740 + $0xac] sm:$0xf]
      %v1771 = vld [vmem:[%s1740 + $0xb4] sm:$0xf]
      %v1772 = vld [vmem:[%s1740 + $0xb8] sm:$0xf]
      %s1773 = scalar_lea.vmem %s275, 6
      %v1774 = vld [vmem:[%s1773] sm:$0x3]
      %v1807 = vunpack.c.l.b16 %v1741
      %v1808 = vunpack.c.l.b16 %v1742
      %v1809 = vunpack.c.l.b16 %v1743
      %v1810 = vunpack.c.l.b16 %v1744
      %v1811 = vunpack.c.l.b16 %v1745
      %v1812 = vunpack.c.l.b16 %v1746
      %v1813 = vunpack.c.l.b16 %v1747
      %v1814 = vunpack.c.l.b16 %v1748
      %v1815 = vunpack.c.l.b16 %v1749
      %v1816 = vunpack.c.l.b16 %v1750
      %v1817 = vunpack.c.l.b16 %v1751
      %v1818 = vunpack.c.l.b16 %v1752
      %v1819 = vunpack.c.l.b16 %v1753
      %v1820 = vunpack.c.l.b16 %v1754
      %v1821 = vunpack.c.l.b16 %v1755
      %v1822 = vunpack.c.l.b16 %v1756
      %v1823 = vunpack.c.l.b16 %v1757
      %v1824 = vunpack.c.l.b16 %v1758
      %v1825 = vunpack.c.l.b16 %v1759
      %v1826 = vunpack.c.l.b16 %v1760
      %v1827 = vunpack.c.l.b16 %v1761
      %v1828 = vunpack.c.l.b16 %v1762
      %v1829 = vunpack.c.l.b16 %v1763
      %v1830 = vunpack.c.l.b16 %v1764
      %v1831 = vunpack.c.l.b16 %v1765
      %v1832 = vunpack.c.l.b16 %v1766
      %v1833 = vunpack.c.l.b16 %v1767
      %v1834 = vunpack.c.l.b16 %v1768
      %v1835 = vunpack.c.l.b16 %v1769
      %v1836 = vunpack.c.l.b16 %v1770
      %v1837 = vunpack.c.l.b16 %v1771
      %v1838 = vunpack.c.l.b16 %v1772
      %v1839 = vpack.c.b16 %v1808, %v1807
      %v1840 = vpack.c.b16 %v1810, %v1809
      %v1841 = vpack.c.b16 %v1812, %v1811
      %v1842 = vpack.c.b16 %v1814, %v1813
      %v1843 = vpack.c.b16 %v1816, %v1815
      %v1844 = vpack.c.b16 %v1818, %v1817
      %v1845 = vpack.c.b16 %v1820, %v1819
      %v1846 = vpack.c.b16 %v1822, %v1821
      %v1847 = vpack.c.b16 %v1824, %v1823
      %v1848 = vpack.c.b16 %v1826, %v1825
      %v1849 = vpack.c.b16 %v1828, %v1827
      %v1850 = vpack.c.b16 %v1830, %v1829
      %v1851 = vpack.c.b16 %v1832, %v1831
      %v1852 = vpack.c.b16 %v1834, %v1833
      %v1853 = vpack.c.b16 %v1836, %v1835
      %v1854 = vpack.c.b16 %v1838, %v1837
      %v1856 = vsel %vm777, %v1839, 0
      %v1859 = vsel %vm777, %v1840, 0
      %v1862 = vsel %vm777, %v1841, 0
      %v1865 = vsel %vm777, %v1842, 0
      %v1868 = vsel %vm777, %v1843, 0
      %v1871 = vsel %vm777, %v1844, 0
      %v1874 = vsel %vm777, %v1845, 0
      %v1877 = vsel %vm777, %v1846, 0
      %v1880 = vsel %vm777, %v1847, 0
      %v1883 = vsel %vm777, %v1848, 0
      %v1886 = vsel %vm777, %v1849, 0
      %v1889 = vsel %vm777, %v1850, 0
      %v1892 = vsel %vm777, %v1851, 0
      %v1895 = vsel %vm777, %v1852, 0
      %v1898 = vsel %vm777, %v1853, 0
      %v1901 = vsel %vm777, %v1854, 0
      %v1904 = vsel %vm826, %v1774, 0
      %1906 = vmatprep.subr.bf16.mxu0 0
      %1907 = vmatpush1.bf16.msra.mxu0 %v1904
      %1908 = vmatprep.subr.bf16.mxu0 0
      %1909 = vmatpush1.bf16.msra.mxu0 0
      %1910 = vmatprep.subr.bf16.mxu0 0
      %1911 = vmatpush1.bf16.msra.mxu0 0
      %1912 = vmatprep.subr.bf16.mxu0 0
      %1913 = vmatpush1.bf16.msra.mxu0 0
      %1914 = vmatprep.subr.bf16.mxu0 0
      %1915 = vmatpush1.bf16.msra.mxu0 0
      %1916 = vmatprep.subr.bf16.mxu0 0
      %1917 = vmatpush1.bf16.msra.mxu0 0
      %1918 = vmatprep.subr.bf16.mxu0 0
      %1919 = vmatpush1.bf16.msra.mxu0 0
      %1920 = vmatprep.subr.bf16.mxu0 0
      %1921 = vmatpush1.bf16.msra.mxu0 0
      %1922 = vmatprep.subr.bf16.mxu0 0
      %1923 = vmatpush1.bf16.msra.mxu0 0
      %1924 = vmatprep.subr.bf16.mxu0 0
      %1925 = vmatpush1.bf16.msra.mxu0 0
      %1926 = vmatprep.subr.bf16.mxu0 0
      %1927 = vmatpush1.bf16.msra.mxu0 0
      %1928 = vmatprep.subr.bf16.mxu0 0
      %1929 = vmatpush1.bf16.msra.mxu0 0
      %1930 = vmatprep.subr.bf16.mxu0 0
      %1931 = vmatpush1.bf16.msra.mxu0 0
      %1932 = vmatprep.subr.bf16.mxu0 0
      %1933 = vmatpush1.bf16.msra.mxu0 0
      %1934 = vmatprep.subr.bf16.mxu0 0
      %1935 = vmatpush1.bf16.msra.mxu0 0
      %1936 = vmatprep.subr.bf16.mxu0 0
      %1937 = vmatpush1.bf16.msra.mxu0 0
      %1938 = vmatprep.mubr.bf16.mxu0 0
      %1939 = vmatmul.mubr.bf16.gmra.mrb[0].mxu0 %v1856
      %v1940 = vpop.f32.mrb[0].mxu0
      %v1941 = vadd.f32 0.0, %v1940
      %v1942 = vpop.f32.mrb[0].mxu0
      %v1943 = vpop.f32.mrb[0].mxu0
      %v1944 = vadd.f32 0.0, %v1943
      %v1945 = vpop.f32.mrb[0].mxu0
      %1946 = vmatprep.mubr.bf16.mxu0 0
      %1947 = vmatmul.mubr.bf16.gmra.mrb[0].mxu0 %v1859
      %v1948 = vpop.f32.mrb[0].mxu0
      %v1949 = vadd.f32 0.0, %v1948
      %v1950 = vpop.f32.mrb[0].mxu0
      %v1951 = vpop.f32.mrb[0].mxu0
      %v1952 = vadd.f32 0.0, %v1951
      %v1953 = vpop.f32.mrb[0].mxu0
      %1954 = vmatprep.mubr.bf16.mxu0 0
      %1955 = vmatmul.mubr.bf16.gmra.mrb[0].mxu0 %v1862
      %v1956 = vpop.f32.mrb[0].mxu0
      %v1957 = vadd.f32 0.0, %v1956
      %v1958 = vpop.f32.mrb[0].mxu0
      %v1959 = vpop.f32.mrb[0].mxu0
      %v1960 = vadd.f32 0.0, %v1959
      %v1961 = vpop.f32.mrb[0].mxu0
      %1962 = vmatprep.mubr.bf16.mxu0 0
      %1963 = vmatmul.mubr.bf16.gmra.mrb[0].mxu0 %v1865
      %v1964 = vpop.f32.mrb[0].mxu0
      %v1965 = vadd.f32 0.0, %v1964
      %v1966 = vpop.f32.mrb[0].mxu0
      %v1967 = vpop.f32.mrb[0].mxu0
      %v1968 = vadd.f32 0.0, %v1967
      %v1969 = vpop.f32.mrb[0].mxu0
      %1970 = vmatprep.mubr.bf16.mxu0 0
      %1971 = vmatmul.mubr.bf16.gmra.mrb[0].mxu0 %v1868
      %v1972 = vpop.f32.mrb[0].mxu0
      %v1973 = vadd.f32 0.0, %v1972
      %v1974 = vpop.f32.mrb[0].mxu0
      %v1975 = vpop.f32.mrb[0].mxu0
      %v1976 = vadd.f32 0.0, %v1975
      %v1977 = vpop.f32.mrb[0].mxu0
      %1978 = vmatprep.mubr.bf16.mxu0 0
      %1979 = vmatmul.mubr.bf16.gmra.mrb[0].mxu0 %v1871
      %v1980 = vpop.f32.mrb[0].mxu0
      %v1981 = vadd.f32 0.0, %v1980
      %v1982 = vpop.f32.mrb[0].mxu0
      %v1983 = vpop.f32.mrb[0].mxu0
      %v1984 = vadd.f32 0.0, %v1983
      %v1985 = vpop.f32.mrb[0].mxu0
      %1986 = vmatprep.mubr.bf16.mxu0 0
      %1987 = vmatmul.mubr.bf16.gmra.mrb[0].mxu0 %v1874
      %v1988 = vpop.f32.mrb[0].mxu0
      %v1989 = vadd.f32 0.0, %v1988
      %v1990 = vpop.f32.mrb[0].mxu0
      %v1991 = vpop.f32.mrb[0].mxu0
      %v1992 = vadd.f32 0.0, %v1991
      %v1993 = vpop.f32.mrb[0].mxu0
      %1994 = vmatprep.mubr.bf16.mxu0 0
      %1995 = vmatmul.mubr.bf16.gmra.mrb[0].mxu0 %v1877
      %v1996 = vpop.f32.mrb[0].mxu0
      %v1997 = vadd.f32 0.0, %v1996
      %v1998 = vpop.f32.mrb[0].mxu0
      %v1999 = vpop.f32.mrb[0].mxu0
      %v2000 = vadd.f32 0.0, %v1999
      %v2001 = vpop.f32.mrb[0].mxu0
      %2002 = vmatprep.mubr.bf16.mxu0 0
      %2003 = vmatmul.mubr.bf16.gmra.mrb[0].mxu0 %v1880
      %v2004 = vpop.f32.mrb[0].mxu0
      %v2005 = vadd.f32 0.0, %v2004
      %v2006 = vpop.f32.mrb[0].mxu0
      %v2007 = vpop.f32.mrb[0].mxu0
      %v2008 = vadd.f32 0.0, %v2007
      %v2009 = vpop.f32.mrb[0].mxu0
      %2010 = vmatprep.mubr.bf16.mxu0 0
      %2011 = vmatmul.mubr.bf16.gmra.mrb[0].mxu0 %v1883
      %v2012 = vpop.f32.mrb[0].mxu0
      %v2013 = vadd.f32 0.0, %v2012
      %v2014 = vpop.f32.mrb[0].mxu0
      %v2015 = vpop.f32.mrb[0].mxu0
      %v2016 = vadd.f32 0.0, %v2015
      %v2017 = vpop.f32.mrb[0].mxu0
      %2018 = vmatprep.mubr.bf16.mxu0 0
      %2019 = vmatmul.mubr.bf16.gmra.mrb[0].mxu0 %v1886
      %v2020 = vpop.f32.mrb[0].mxu0
      %v2021 = vadd.f32 0.0, %v2020
      %v2022 = vpop.f32.mrb[0].mxu0
      %v2023 = vpop.f32.mrb[0].mxu0
      %v2024 = vadd.f32 0.0, %v2023
      %v2025 = vpop.f32.mrb[0].mxu0
      %2026 = vmatprep.mubr.bf16.mxu0 0
      %2027 = vmatmul.mubr.bf16.gmra.mrb[0].mxu0 %v1889
      %v2028 = vpop.f32.mrb[0].mxu0
      %v2029 = vadd.f32 0.0, %v2028
      %v2030 = vpop.f32.mrb[0].mxu0
      %v2031 = vpop.f32.mrb[0].mxu0
      %v2032 = vadd.f32 0.0, %v2031
      %v2033 = vpop.f32.mrb[0].mxu0
      %2034 = vmatprep.mubr.bf16.mxu0 0
      %2035 = vmatmul.mubr.bf16.gmra.mrb[0].mxu0 %v1892
      %v2036 = vpop.f32.mrb[0].mxu0
      %v2037 = vadd.f32 0.0, %v2036
      %v2038 = vpop.f32.mrb[0].mxu0
      %v2039 = vpop.f32.mrb[0].mxu0
      %v2040 = vadd.f32 0.0, %v2039
      %v2041 = vpop.f32.mrb[0].mxu0
      %2042 = vmatprep.mubr.bf16.mxu0 0
      %2043 = vmatmul.mubr.bf16.gmra.mrb[0].mxu0 %v1895
      %v2044 = vpop.f32.mrb[0].mxu0
      %v2045 = vadd.f32 0.0, %v2044
      %v2046 = vpop.f32.mrb[0].mxu0
      %v2047 = vpop.f32.mrb[0].mxu0
      %v2048 = vadd.f32 0.0, %v2047
      %v2049 = vpop.f32.mrb[0].mxu0
      %2050 = vmatprep.mubr.bf16.mxu0 0
      %2051 = vmatmul.mubr.bf16.gmra.mrb[0].mxu0 %v1898
      %v2052 = vpop.f32.mrb[0].mxu0
      %v2053 = vadd.f32 0.0, %v2052
      %v2054 = vpop.f32.mrb[0].mxu0
      %v2055 = vpop.f32.mrb[0].mxu0
      %v2056 = vadd.f32 0.0, %v2055
      %v2057 = vpop.f32.mrb[0].mxu0
      %2058 = vmatprep.mubr.bf16.mxu0 0
      %2059 = vmatmul.mubr.bf16.gmra.mrb[0].mxu0 %v1901
      %v2060 = vpop.f32.mrb[0].mxu0
      %v2061 = vadd.f32 0.0, %v2060
      %v2062 = vpop.f32.mrb[0].mxu0
      %v2063 = vpop.f32.mrb[0].mxu0
      %v2064 = vadd.f32 0.0, %v2063
      %v2065 = vpop.f32.mrb[0].mxu0
      %2066 = vdwg.mxu0
      %v2067 = vadd.f32 %v1708, %v1941
      %v2068 = vadd.f32 %v1709, %v1944
      %v2069 = vadd.f32 %v1710, %v1949
      %v2070 = vadd.f32 %v1711, %v1952
      %v2071 = vadd.f32 %v1712, %v1957
      %v2072 = vadd.f32 %v1713, %v1960
      %v2073 = vadd.f32 %v1714, %v1965
      %v2074 = vadd.f32 %v1715, %v1968
      %v2075 = vadd.f32 %v1716, %v1973
      %v2076 = vadd.f32 %v1717, %v1976
      %v2077 = vadd.f32 %v1718, %v1981
      %v2078 = vadd.f32 %v1719, %v1984
      %v2079 = vadd.f32 %v1720, %v1989
      %v2080 = vadd.f32 %v1721, %v1992
      %v2081 = vadd.f32 %v1722, %v1997
      %v2082 = vadd.f32 %v1723, %v2000
      %v2083 = vadd.f32 %v1724, %v2005
      %v2084 = vadd.f32 %v1725, %v2008
      %v2085 = vadd.f32 %v1726, %v2013
      %v2086 = vadd.f32 %v1727, %v2016
      %v2087 = vadd.f32 %v1728, %v2021
      %v2088 = vadd.f32 %v1729, %v2024
      %v2089 = vadd.f32 %v1730, %v2029
      %v2090 = vadd.f32 %v1731, %v2032
      %v2091 = vadd.f32 %v1732, %v2037
      %v2092 = vadd.f32 %v1733, %v2040
      %v2093 = vadd.f32 %v1734, %v2045
      %v2094 = vadd.f32 %v1735, %v2048
      %v2095 = vadd.f32 %v1736, %v2053
      %v2096 = vadd.f32 %v1737, %v2056
      %v2097 = vadd.f32 %v1738, %v2061
      %v2098 = vadd.f32 %v1739, %v2064
      %v2099 = vld [vmem:[%s1740] sm:$0xf]
      %v2100 = vld [vmem:[%s1740 + $0x4] sm:$0xf]
      %v2101 = vld [vmem:[%s1740 + $0x8] sm:$0x1]
      %v2102 = vld [vmem:[%s1740 + $0xc] sm:$0xf]
      %v2103 = vld [vmem:[%s1740 + $0x10] sm:$0xf]
      %v2104 = vld [vmem:[%s1740 + $0x14] sm:$0x1]
      %v2105 = vld [vmem:[%s1740 + $0x18] sm:$0xf]
      %v2106 = vld [vmem:[%s1740 + $0x1c] sm:$0xf]
      %v2107 = vld [vmem:[%s1740 + $0x20] sm:$0x1]
      %v2108 = vld [vmem:[%s1740 + $0x24] sm:$0xf]
      %v2109 = vld [vmem:[%s1740 + $0x28] sm:$0xf]
      %v2110 = vld [vmem:[%s1740 + $0x2c] sm:$0x1]
      %v2111 = vld [vmem:[%s1740 + $0x30] sm:$0xf]
      %v2112 = vld [vmem:[%s1740 + $0x34] sm:$0xf]
      %v2113 = vld [vmem:[%s1740 + $0x38] sm:$0x1]
      %v2114 = vld [vmem:[%s1740 + $0x3c] sm:$0xf]
      %v2115 = vld [vmem:[%s1740 + $0x40] sm:$0xf]
      %v2116 = vld [vmem:[%s1740 + $0x44] sm:$0x1]
      %v2117 = vld [vmem:[%s1740 + $0x48] sm:$0xf]
      %v2118 = vld [vmem:[%s1740 + $0x4c] sm:$0xf]
      %v2119 = vld [vmem:[%s1740 + $0x50] sm:$0x1]
      %v2120 = vld [vmem:[%s1740 + $0x54] sm:$0xf]
      %v2121 = vld [vmem:[%s1740 + $0x58] sm:$0xf]
      %v2122 = vld [vmem:[%s1740 + $0x5c] sm:$0x1]
      %v2123 = vld [vmem:[%s1740 + $0x60] sm:$0xf]
      %v2124 = vld [vmem:[%s1740 + $0x64] sm:$0xf]
      %v2125 = vld [vmem:[%s1740 + $0x68] sm:$0x1]
      %v2126 = vld [vmem:[%s1740 + $0x6c] sm:$0xf]
      %v2127 = vld [vmem:[%s1740 + $0x70] sm:$0xf]
      %v2128 = vld [vmem:[%s1740 + $0x74] sm:$0x1]
      %v2129 = vld [vmem:[%s1740 + $0x78] sm:$0xf]
      %v2130 = vld [vmem:[%s1740 + $0x7c] sm:$0xf]
      %v2131 = vld [vmem:[%s1740 + $0x80] sm:$0x1]
      %v2132 = vld [vmem:[%s1740 + $0x84] sm:$0xf]
      %v2133 = vld [vmem:[%s1740 + $0x88] sm:$0xf]
      %v2134 = vld [vmem:[%s1740 + $0x8c] sm:$0x1]
      %v2135 = vld [vmem:[%s1740 + $0x90] sm:$0xf]
      %v2136 = vld [vmem:[%s1740 + $0x94] sm:$0xf]
      %v2137 = vld [vmem:[%s1740 + $0x98] sm:$0x1]
      %v2138 = vld [vmem:[%s1740 + $0x9c] sm:$0xf]
      %v2139 = vld [vmem:[%s1740 + $0xa0] sm:$0xf]
      %v2140 = vld [vmem:[%s1740 + $0xa4] sm:$0x1]
      %v2141 = vld [vmem:[%s1740 + $0xa8] sm:$0xf]
      %v2142 = vld [vmem:[%s1740 + $0xac] sm:$0xf]
      %v2143 = vld [vmem:[%s1740 + $0xb0] sm:$0x1]
      %v2144 = vld [vmem:[%s1740 + $0xb4] sm:$0xf]
      %v2145 = vld [vmem:[%s1740 + $0xb8] sm:$0xf]
      %v2146 = vld [vmem:[%s1740 + $0xbc] sm:$0x1]
      %v2148 = vshrl.u32 %v2099, 16
      %v2150 = vrot.slane %v2148, 4
      %v2151 = vshll.u32 %v2099, 16
      %v2153 = vrot.slane %v2151, 5
      %v2154 = vor.u32 %v2150, %v2153
      %v2155 = vrot.slane %v2154, 4
      %v2157 = vshll.u32 %v2100, 16
      %v2159 = vrot.slane %v2157, 5
      %v2160 = vsel %vm342, %v2155, %v2159
      %v2161 = vshrl.u32 %v2100, 16
      %v2163 = vrot.slane %v2161, 4
      %v2164 = vor.u32 %v2163, %v2159
      %v2165 = vrot.slane %v2164, 4
      %v2167 = vshll.u32 %v2101, 16
      %v2169 = vrot.slane %v2167, 5
      %v2170 = vsel %vm342, %v2165, %v2169
      %v2172 = vshrl.u32 %v2102, 16
      %v2174 = vrot.slane %v2172, 4
      %v2175 = vshll.u32 %v2102, 16
      %v2177 = vrot.slane %v2175, 5
      %v2178 = vor.u32 %v2174, %v2177
      %v2179 = vrot.slane %v2178, 4
      %v2181 = vshll.u32 %v2103, 16
      %v2183 = vrot.slane %v2181, 5
      %v2184 = vsel %vm342, %v2179, %v2183
      %v2185 = vshrl.u32 %v2103, 16
      %v2187 = vrot.slane %v2185, 4
      %v2188 = vor.u32 %v2187, %v2183
      %v2189 = vrot.slane %v2188, 4
      %v2191 = vshll.u32 %v2104, 16
      %v2193 = vrot.slane %v2191, 5
      %v2194 = vsel %vm342, %v2189, %v2193
      %v2196 = vshrl.u32 %v2105, 16
      %v2198 = vrot.slane %v2196, 4
      %v2199 = vshll.u32 %v2105, 16
      %v2201 = vrot.slane %v2199, 5
      %v2202 = vor.u32 %v2198, %v2201
      %v2203 = vrot.slane %v2202, 4
      %v2205 = vshll.u32 %v2106, 16
      %v2207 = vrot.slane %v2205, 5
      %v2208 = vsel %vm342, %v2203, %v2207
      %v2209 = vshrl.u32 %v2106, 16
      %v2211 = vrot.slane %v2209, 4
      %v2212 = vor.u32 %v2211, %v2207
      %v2213 = vrot.slane %v2212, 4
      %v2215 = vshll.u32 %v2107, 16
      %v2217 = vrot.slane %v2215, 5
      %v2218 = vsel %vm342, %v2213, %v2217
      %v2220 = vshrl.u32 %v2108, 16
      %v2222 = vrot.slane %v2220, 4
      %v2223 = vshll.u32 %v2108, 16
      %v2225 = vrot.slane %v2223, 5
      %v2226 = vor.u32 %v2222, %v2225
      %v2227 = vrot.slane %v2226, 4
      %v2229 = vshll.u32 %v2109, 16
      %v2231 = vrot.slane %v2229, 5
      %v2232 = vsel %vm342, %v2227, %v2231
      %v2233 = vshrl.u32 %v2109, 16
      %v2235 = vrot.slane %v2233, 4
      %v2236 = vor.u32 %v2235, %v2231
      %v2237 = vrot.slane %v2236, 4
      %v2239 = vshll.u32 %v2110, 16
      %v2241 = vrot.slane %v2239, 5
      %v2242 = vsel %vm342, %v2237, %v2241
      %v2244 = vshrl.u32 %v2111, 16
      %v2246 = vrot.slane %v2244, 4
      %v2247 = vshll.u32 %v2111, 16
      %v2249 = vrot.slane %v2247, 5
      %v2250 = vor.u32 %v2246, %v2249
      %v2251 = vrot.slane %v2250, 4
      %v2253 = vshll.u32 %v2112, 16
      %v2255 = vrot.slane %v2253, 5
      %v2256 = vsel %vm342, %v2251, %v2255
      %v2257 = vshrl.u32 %v2112, 16
      %v2259 = vrot.slane %v2257, 4
      %v2260 = vor.u32 %v2259, %v2255
      %v2261 = vrot.slane %v2260, 4
      %v2263 = vshll.u32 %v2113, 16
      %v2265 = vrot.slane %v2263, 5
      %v2266 = vsel %vm342, %v2261, %v2265
      %v2268 = vshrl.u32 %v2114, 16
      %v2270 = vrot.slane %v2268, 4
      %v2271 = vshll.u32 %v2114, 16
      %v2273 = vrot.slane %v2271, 5
      %v2274 = vor.u32 %v2270, %v2273
      %v2275 = vrot.slane %v2274, 4
      %v2277 = vshll.u32 %v2115, 16
      %v2279 = vrot.slane %v2277, 5
      %v2280 = vsel %vm342, %v2275, %v2279
      %v2281 = vshrl.u32 %v2115, 16
      %v2283 = vrot.slane %v2281, 4
      %v2284 = vor.u32 %v2283, %v2279
      %v2285 = vrot.slane %v2284, 4
      %v2287 = vshll.u32 %v2116, 16
      %v2289 = vrot.slane %v2287, 5
      %v2290 = vsel %vm342, %v2285, %v2289
      %v2292 = vshrl.u32 %v2117, 16
      %v2294 = vrot.slane %v2292, 4
      %v2295 = vshll.u32 %v2117, 16
      %v2297 = vrot.slane %v2295, 5
      %v2298 = vor.u32 %v2294, %v2297
      %v2299 = vrot.slane %v2298, 4
      %v2301 = vshll.u32 %v2118, 16
      %v2303 = vrot.slane %v2301, 5
      %v2304 = vsel %vm342, %v2299, %v2303
      %v2305 = vshrl.u32 %v2118, 16
      %v2307 = vrot.slane %v2305, 4
      %v2308 = vor.u32 %v2307, %v2303
      %v2309 = vrot.slane %v2308, 4
      %v2311 = vshll.u32 %v2119, 16
      %v2313 = vrot.slane %v2311, 5
      %v2314 = vsel %vm342, %v2309, %v2313
      %v2316 = vshrl.u32 %v2120, 16
      %v2318 = vrot.slane %v2316, 4
      %v2319 = vshll.u32 %v2120, 16
      %v2321 = vrot.slane %v2319, 5
      %v2322 = vor.u32 %v2318, %v2321
      %v2323 = vrot.slane %v2322, 4
      %v2325 = vshll.u32 %v2121, 16
      %v2327 = vrot.slane %v2325, 5
      %v2328 = vsel %vm342, %v2323, %v2327
      %v2329 = vshrl.u32 %v2121, 16
      %v2331 = vrot.slane %v2329, 4
      %v2332 = vor.u32 %v2331, %v2327
      %v2333 = vrot.slane %v2332, 4
      %v2335 = vshll.u32 %v2122, 16
      %v2337 = vrot.slane %v2335, 5
      %v2338 = vsel %vm342, %v2333, %v2337
      %v2340 = vshrl.u32 %v2123, 16
      %v2342 = vrot.slane %v2340, 4
      %v2343 = vshll.u32 %v2123, 16
      %v2345 = vrot.slane %v2343, 5
      %v2346 = vor.u32 %v2342, %v2345
      %v2347 = vrot.slane %v2346, 4
      %v2349 = vshll.u32 %v2124, 16
      %v2351 = vrot.slane %v2349, 5
      %v2352 = vsel %vm342, %v2347, %v2351
      %v2353 = vshrl.u32 %v2124, 16
      %v2355 = vrot.slane %v2353, 4
      %v2356 = vor.u32 %v2355, %v2351
      %v2357 = vrot.slane %v2356, 4
      %v2359 = vshll.u32 %v2125, 16
      %v2361 = vrot.slane %v2359, 5
      %v2362 = vsel %vm342, %v2357, %v2361
      %v2364 = vshrl.u32 %v2126, 16
      %v2366 = vrot.slane %v2364, 4
      %v2367 = vshll.u32 %v2126, 16
      %v2369 = vrot.slane %v2367, 5
      %v2370 = vor.u32 %v2366, %v2369
      %v2371 = vrot.slane %v2370, 4
      %v2373 = vshll.u32 %v2127, 16
      %v2375 = vrot.slane %v2373, 5
      %v2376 = vsel %vm342, %v2371, %v2375
      %v2377 = vshrl.u32 %v2127, 16
      %v2379 = vrot.slane %v2377, 4
      %v2380 = vor.u32 %v2379, %v2375
      %v2381 = vrot.slane %v2380, 4
      %v2383 = vshll.u32 %v2128, 16
      %v2385 = vrot.slane %v2383, 5
      %v2386 = vsel %vm342, %v2381, %v2385
      %v2388 = vshrl.u32 %v2129, 16
      %v2390 = vrot.slane %v2388, 4
      %v2391 = vshll.u32 %v2129, 16
      %v2393 = vrot.slane %v2391, 5
      %v2394 = vor.u32 %v2390, %v2393
      %v2395 = vrot.slane %v2394, 4
      %v2397 = vshll.u32 %v2130, 16
      %v2399 = vrot.slane %v2397, 5
      %v2400 = vsel %vm342, %v2395, %v2399
      %v2401 = vshrl.u32 %v2130, 16
      %v2403 = vrot.slane %v2401, 4
      %v2404 = vor.u32 %v2403, %v2399
      %v2405 = vrot.slane %v2404, 4
      %v2407 = vshll.u32 %v2131, 16
      %v2409 = vrot.slane %v2407, 5
      %v2410 = vsel %vm342, %v2405, %v2409
      %v2412 = vshrl.u32 %v2132, 16
      %v2414 = vrot.slane %v2412, 4
      %v2415 = vshll.u32 %v2132, 16
      %v2417 = vrot.slane %v2415, 5
      %v2418 = vor.u32 %v2414, %v2417
      %v2419 = vrot.slane %v2418, 4
      %v2421 = vshll.u32 %v2133, 16
      %v2423 = vrot.slane %v2421, 5
      %v2424 = vsel %vm342, %v2419, %v2423
      %v2425 = vshrl.u32 %v2133, 16
      %v2427 = vrot.slane %v2425, 4
      %v2428 = vor.u32 %v2427, %v2423
      %v2429 = vrot.slane %v2428, 4
      %v2431 = vshll.u32 %v2134, 16
      %v2433 = vrot.slane %v2431, 5
      %v2434 = vsel %vm342, %v2429, %v2433
      %v2436 = vshrl.u32 %v2135, 16
      %v2438 = vrot.slane %v2436, 4
      %v2439 = vshll.u32 %v2135, 16
      %v2441 = vrot.slane %v2439, 5
      %v2442 = vor.u32 %v2438, %v2441
      %v2443 = vrot.slane %v2442, 4
      %v2445 = vshll.u32 %v2136, 16
      %v2447 = vrot.slane %v2445, 5
      %v2448 = vsel %vm342, %v2443, %v2447
      %v2449 = vshrl.u32 %v2136, 16
      %v2451 = vrot.slane %v2449, 4
      %v2452 = vor.u32 %v2451, %v2447
      %v2453 = vrot.slane %v2452, 4
      %v2455 = vshll.u32 %v2137, 16
      %v2457 = vrot.slane %v2455, 5
      %v2458 = vsel %vm342, %v2453, %v2457
      %v2460 = vshrl.u32 %v2138, 16
      %v2462 = vrot.slane %v2460, 4
      %v2463 = vshll.u32 %v2138, 16
      %v2465 = vrot.slane %v2463, 5
      %v2466 = vor.u32 %v2462, %v2465
      %v2467 = vrot.slane %v2466, 4
      %v2469 = vshll.u32 %v2139, 16
      %v2471 = vrot.slane %v2469, 5
      %v2472 = vsel %vm342, %v2467, %v2471
      %v2473 = vshrl.u32 %v2139, 16
      %v2475 = vrot.slane %v2473, 4
      %v2476 = vor.u32 %v2475, %v2471
      %v2477 = vrot.slane %v2476, 4
      %v2479 = vshll.u32 %v2140, 16
      %v2481 = vrot.slane %v2479, 5
      %v2482 = vsel %vm342, %v2477, %v2481
      %v2484 = vshrl.u32 %v2141, 16
      %v2486 = vrot.slane %v2484, 4
      %v2487 = vshll.u32 %v2141, 16
      %v2489 = vrot.slane %v2487, 5
      %v2490 = vor.u32 %v2486, %v2489
      %v2491 = vrot.slane %v2490, 4
      %v2493 = vshll.u32 %v2142, 16
      %v2495 = vrot.slane %v2493, 5
      %v2496 = vsel %vm342, %v2491, %v2495
      %v2497 = vshrl.u32 %v2142, 16
      %v2499 = vrot.slane %v2497, 4
      %v2500 = vor.u32 %v2499, %v2495
      %v2501 = vrot.slane %v2500, 4
      %v2503 = vshll.u32 %v2143, 16
      %v2505 = vrot.slane %v2503, 5
      %v2506 = vsel %vm342, %v2501, %v2505
      %v2508 = vshrl.u32 %v2144, 16
      %v2510 = vrot.slane %v2508, 4
      %v2511 = vshll.u32 %v2144, 16
      %v2513 = vrot.slane %v2511, 5
      %v2514 = vor.u32 %v2510, %v2513
      %v2515 = vrot.slane %v2514, 4
      %v2517 = vshll.u32 %v2145, 16
      %v2519 = vrot.slane %v2517, 5
      %v2520 = vsel %vm342, %v2515, %v2519
      %v2521 = vshrl.u32 %v2145, 16
      %v2523 = vrot.slane %v2521, 4
      %v2524 = vor.u32 %v2523, %v2519
      %v2525 = vrot.slane %v2524, 4
      %v2527 = vshll.u32 %v2146, 16
      %v2529 = vrot.slane %v2527, 5
      %v2530 = vsel %vm342, %v2525, %v2529
      %s2531 = scalar_lea.vmem %s275, 8
      %v2532 = vld [vmem:[%s2531] sm:$0x3]
      %v2533 = vunpack.c.l.b16 %v2160
      %v2534 = vunpack.c.l.b16 %v2170
      %v2535 = vunpack.c.l.b16 %v2184
      %v2536 = vunpack.c.l.b16 %v2194
      %v2537 = vunpack.c.l.b16 %v2208
      %v2538 = vunpack.c.l.b16 %v2218
      %v2539 = vunpack.c.l.b16 %v2232
      %v2540 = vunpack.c.l.b16 %v2242
      %v2541 = vunpack.c.l.b16 %v2256
      %v2542 = vunpack.c.l.b16 %v2266
      %v2543 = vunpack.c.l.b16 %v2280
      %v2544 = vunpack.c.l.b16 %v2290
      %v2545 = vunpack.c.l.b16 %v2304
      %v2546 = vunpack.c.l.b16 %v2314
      %v2547 = vunpack.c.l.b16 %v2328
      %v2548 = vunpack.c.l.b16 %v2338
      %v2549 = vunpack.c.l.b16 %v2352
      %v2550 = vunpack.c.l.b16 %v2362
      %v2551 = vunpack.c.l.b16 %v2376
      %v2552 = vunpack.c.l.b16 %v2386
      %v2553 = vunpack.c.l.b16 %v2400
      %v2554 = vunpack.c.l.b16 %v2410
      %v2555 = vunpack.c.l.b16 %v2424
      %v2556 = vunpack.c.l.b16 %v2434
      %v2557 = vunpack.c.l.b16 %v2448
      %v2558 = vunpack.c.l.b16 %v2458
      %v2559 = vunpack.c.l.b16 %v2472
      %v2560 = vunpack.c.l.b16 %v2482
      %v2561 = vunpack.c.l.b16 %v2496
      %v2562 = vunpack.c.l.b16 %v2506
      %v2563 = vunpack.c.l.b16 %v2520
      %v2564 = vunpack.c.l.b16 %v2530
      %v2565 = vpack.c.b16 %v2534, %v2533
      %v2566 = vpack.c.b16 %v2536, %v2535
      %v2567 = vpack.c.b16 %v2538, %v2537
      %v2568 = vpack.c.b16 %v2540, %v2539
      %v2569 = vpack.c.b16 %v2542, %v2541
      %v2570 = vpack.c.b16 %v2544, %v2543
      %v2571 = vpack.c.b16 %v2546, %v2545
      %v2572 = vpack.c.b16 %v2548, %v2547
      %v2573 = vpack.c.b16 %v2550, %v2549
      %v2574 = vpack.c.b16 %v2552, %v2551
      %v2575 = vpack.c.b16 %v2554, %v2553
      %v2576 = vpack.c.b16 %v2556, %v2555
      %v2577 = vpack.c.b16 %v2558, %v2557
      %v2578 = vpack.c.b16 %v2560, %v2559
      %v2579 = vpack.c.b16 %v2562, %v2561
      %v2580 = vpack.c.b16 %v2564, %v2563
      %v2582 = vsel %vm777, %v2565, 0
      %v2585 = vsel %vm777, %v2566, 0
      %v2588 = vsel %vm777, %v2567, 0
      %v2591 = vsel %vm777, %v2568, 0
      %v2594 = vsel %vm777, %v2569, 0
      %v2597 = vsel %vm777, %v2570, 0
      %v2600 = vsel %vm777, %v2571, 0
      %v2603 = vsel %vm777, %v2572, 0
      %v2606 = vsel %vm777, %v2573, 0
      %v2609 = vsel %vm777, %v2574, 0
      %v2612 = vsel %vm777, %v2575, 0
      %v2615 = vsel %vm777, %v2576, 0
      %v2618 = vsel %vm777, %v2577, 0
      %v2621 = vsel %vm777, %v2578, 0
      %v2624 = vsel %vm777, %v2579, 0
      %v2627 = vsel %vm777, %v2580, 0
      %v2630 = vsel %vm826, %v2532, 0
      %2632 = vmatprep.subr.bf16.mxu0 0
      %2633 = vmatpush1.bf16.msra.mxu0 %v2630
      %2634 = vmatprep.subr.bf16.mxu0 0
      %2635 = vmatpush1.bf16.msra.mxu0 0
      %2636 = vmatprep.subr.bf16.mxu0 0
      %2637 = vmatpush1.bf16.msra.mxu0 0
      %2638 = vmatprep.subr.bf16.mxu0 0
      %2639 = vmatpush1.bf16.msra.mxu0 0
      %2640 = vmatprep.subr.bf16.mxu0 0
      %2641 = vmatpush1.bf16.msra.mxu0 0
      %2642 = vmatprep.subr.bf16.mxu0 0
      %2643 = vmatpush1.bf16.msra.mxu0 0
      %2644 = vmatprep.subr.bf16.mxu0 0
      %2645 = vmatpush1.bf16.msra.mxu0 0
      %2646 = vmatprep.subr.bf16.mxu0 0
      %2647 = vmatpush1.bf16.msra.mxu0 0
      %2648 = vmatprep.subr.bf16.mxu0 0
      %2649 = vmatpush1.bf16.msra.mxu0 0
      %2650 = vmatprep.subr.bf16.mxu0 0
      %2651 = vmatpush1.bf16.msra.mxu0 0
      %2652 = vmatprep.subr.bf16.mxu0 0
      %2653 = vmatpush1.bf16.msra.mxu0 0
      %2654 = vmatprep.subr.bf16.mxu0 0
      %2655 = vmatpush1.bf16.msra.mxu0 0
      %2656 = vmatprep.subr.bf16.mxu0 0
      %2657 = vmatpush1.bf16.msra.mxu0 0
      %2658 = vmatprep.subr.bf16.mxu0 0
      %2659 = vmatpush1.bf16.msra.mxu0 0
      %2660 = vmatprep.subr.bf16.mxu0 0
      %2661 = vmatpush1.bf16.msra.mxu0 0
      %2662 = vmatprep.subr.bf16.mxu0 0
      %2663 = vmatpush1.bf16.msra.mxu0 0
      %2664 = vmatprep.mubr.bf16.mxu0 0
      %2665 = vmatmul.mubr.bf16.gmra.mrb[0].mxu0 %v2582
      %v2666 = vpop.f32.mrb[0].mxu0
      %v2667 = vadd.f32 0.0, %v2666
      %v2668 = vpop.f32.mrb[0].mxu0
      %v2669 = vpop.f32.mrb[0].mxu0
      %v2670 = vadd.f32 0.0, %v2669
      %v2671 = vpop.f32.mrb[0].mxu0
      %2672 = vmatprep.mubr.bf16.mxu0 0
      %2673 = vmatmul.mubr.bf16.gmra.mrb[0].mxu0 %v2585
      %v2674 = vpop.f32.mrb[0].mxu0
      %v2675 = vadd.f32 0.0, %v2674
      %v2676 = vpop.f32.mrb[0].mxu0
      %v2677 = vpop.f32.mrb[0].mxu0
      %v2678 = vadd.f32 0.0, %v2677
      %v2679 = vpop.f32.mrb[0].mxu0
      %2680 = vmatprep.mubr.bf16.mxu0 0
      %2681 = vmatmul.mubr.bf16.gmra.mrb[0].mxu0 %v2588
      %v2682 = vpop.f32.mrb[0].mxu0
      %v2683 = vadd.f32 0.0, %v2682
      %v2684 = vpop.f32.mrb[0].mxu0
      %v2685 = vpop.f32.mrb[0].mxu0
      %v2686 = vadd.f32 0.0, %v2685
      %v2687 = vpop.f32.mrb[0].mxu0
      %2688 = vmatprep.mubr.bf16.mxu0 0
      %2689 = vmatmul.mubr.bf16.gmra.mrb[0].mxu0 %v2591
      %v2690 = vpop.f32.mrb[0].mxu0
      %v2691 = vadd.f32 0.0, %v2690
      %v2692 = vpop.f32.mrb[0].mxu0
      %v2693 = vpop.f32.mrb[0].mxu0
      %v2694 = vadd.f32 0.0, %v2693
      %v2695 = vpop.f32.mrb[0].mxu0
      %2696 = vmatprep.mubr.bf16.mxu0 0
      %2697 = vmatmul.mubr.bf16.gmra.mrb[0].mxu0 %v2594
      %v2698 = vpop.f32.mrb[0].mxu0
      %v2699 = vadd.f32 0.0, %v2698
      %v2700 = vpop.f32.mrb[0].mxu0
      %v2701 = vpop.f32.mrb[0].mxu0
      %v2702 = vadd.f32 0.0, %v2701
      %v2703 = vpop.f32.mrb[0].mxu0
      %2704 = vmatprep.mubr.bf16.mxu0 0
      %2705 = vmatmul.mubr.bf16.gmra.mrb[0].mxu0 %v2597
      %v2706 = vpop.f32.mrb[0].mxu0
      %v2707 = vadd.f32 0.0, %v2706
      %v2708 = vpop.f32.mrb[0].mxu0
      %v2709 = vpop.f32.mrb[0].mxu0
      %v2710 = vadd.f32 0.0, %v2709
      %v2711 = vpop.f32.mrb[0].mxu0
      %2712 = vmatprep.mubr.bf16.mxu0 0
      %2713 = vmatmul.mubr.bf16.gmra.mrb[0].mxu0 %v2600
      %v2714 = vpop.f32.mrb[0].mxu0
      %v2715 = vadd.f32 0.0, %v2714
      %v2716 = vpop.f32.mrb[0].mxu0
      %v2717 = vpop.f32.mrb[0].mxu0
      %v2718 = vadd.f32 0.0, %v2717
      %v2719 = vpop.f32.mrb[0].mxu0
      %2720 = vmatprep.mubr.bf16.mxu0 0
      %2721 = vmatmul.mubr.bf16.gmra.mrb[0].mxu0 %v2603
      %v2722 = vpop.f32.mrb[0].mxu0
      %v2723 = vadd.f32 0.0, %v2722
      %v2724 = vpop.f32.mrb[0].mxu0
      %v2725 = vpop.f32.mrb[0].mxu0
      %v2726 = vadd.f32 0.0, %v2725
      %v2727 = vpop.f32.mrb[0].mxu0
      %2728 = vmatprep.mubr.bf16.mxu0 0
      %2729 = vmatmul.mubr.bf16.gmra.mrb[0].mxu0 %v2606
      %v2730 = vpop.f32.mrb[0].mxu0
      %v2731 = vadd.f32 0.0, %v2730
      %v2732 = vpop.f32.mrb[0].mxu0
      %v2733 = vpop.f32.mrb[0].mxu0
      %v2734 = vadd.f32 0.0, %v2733
      %v2735 = vpop.f32.mrb[0].mxu0
      %2736 = vmatprep.mubr.bf16.mxu0 0
      %2737 = vmatmul.mubr.bf16.gmra.mrb[0].mxu0 %v2609
      %v2738 = vpop.f32.mrb[0].mxu0
      %v2739 = vadd.f32 0.0, %v2738
      %v2740 = vpop.f32.mrb[0].mxu0
      %v2741 = vpop.f32.mrb[0].mxu0
      %v2742 = vadd.f32 0.0, %v2741
      %v2743 = vpop.f32.mrb[0].mxu0
      %2744 = vmatprep.mubr.bf16.mxu0 0
      %2745 = vmatmul.mubr.bf16.gmra.mrb[0].mxu0 %v2612
      %v2746 = vpop.f32.mrb[0].mxu0
      %v2747 = vadd.f32 0.0, %v2746
      %v2748 = vpop.f32.mrb[0].mxu0
      %v2749 = vpop.f32.mrb[0].mxu0
      %v2750 = vadd.f32 0.0, %v2749
      %v2751 = vpop.f32.mrb[0].mxu0
      %2752 = vmatprep.mubr.bf16.mxu0 0
      %2753 = vmatmul.mubr.bf16.gmra.mrb[0].mxu0 %v2615
      %v2754 = vpop.f32.mrb[0].mxu0
      %v2755 = vadd.f32 0.0, %v2754
      %v2756 = vpop.f32.mrb[0].mxu0
      %v2757 = vpop.f32.mrb[0].mxu0
      %v2758 = vadd.f32 0.0, %v2757
      %v2759 = vpop.f32.mrb[0].mxu0
      %2760 = vmatprep.mubr.bf16.mxu0 0
      %2761 = vmatmul.mubr.bf16.gmra.mrb[0].mxu0 %v2618
      %v2762 = vpop.f32.mrb[0].mxu0
      %v2763 = vadd.f32 0.0, %v2762
      %v2764 = vpop.f32.mrb[0].mxu0
      %v2765 = vpop.f32.mrb[0].mxu0
      %v2766 = vadd.f32 0.0, %v2765
      %v2767 = vpop.f32.mrb[0].mxu0
      %2768 = vmatprep.mubr.bf16.mxu0 0
      %2769 = vmatmul.mubr.bf16.gmra.mrb[0].mxu0 %v2621
      %v2770 = vpop.f32.mrb[0].mxu0
      %v2771 = vadd.f32 0.0, %v2770
      %v2772 = vpop.f32.mrb[0].mxu0
      %v2773 = vpop.f32.mrb[0].mxu0
      %v2774 = vadd.f32 0.0, %v2773
      %v2775 = vpop.f32.mrb[0].mxu0
      %2776 = vmatprep.mubr.bf16.mxu0 0
      %2777 = vmatmul.mubr.bf16.gmra.mrb[0].mxu0 %v2624
      %v2778 = vpop.f32.mrb[0].mxu0
      %v2779 = vadd.f32 0.0, %v2778
      %v2780 = vpop.f32.mrb[0].mxu0
      %v2781 = vpop.f32.mrb[0].mxu0
      %v2782 = vadd.f32 0.0, %v2781
      %v2783 = vpop.f32.mrb[0].mxu0
      %2784 = vmatprep.mubr.bf16.mxu0 0
      %2785 = vmatmul.mubr.bf16.gmra.mrb[0].mxu0 %v2627
      %v2786 = vpop.f32.mrb[0].mxu0
      %v2787 = vadd.f32 0.0, %v2786
      %v2788 = vpop.f32.mrb[0].mxu0
      %v2789 = vpop.f32.mrb[0].mxu0
      %v2790 = vadd.f32 0.0, %v2789
      %v2791 = vpop.f32.mrb[0].mxu0
      %2792 = vdwg.mxu0
      %v2793 = vadd.f32 %v2067, %v2667
      %v2794 = vadd.f32 %v2068, %v2670
      %v2795 = vadd.f32 %v2069, %v2675
      %v2796 = vadd.f32 %v2070, %v2678
      %v2797 = vadd.f32 %v2071, %v2683
      %v2798 = vadd.f32 %v2072, %v2686
      %v2799 = vadd.f32 %v2073, %v2691
      %v2800 = vadd.f32 %v2074, %v2694
      %v2801 = vadd.f32 %v2075, %v2699
      %v2802 = vadd.f32 %v2076, %v2702
      %v2803 = vadd.f32 %v2077, %v2707
      %v2804 = vadd.f32 %v2078, %v2710
      %v2805 = vadd.f32 %v2079, %v2715
      %v2806 = vadd.f32 %v2080, %v2718
      %v2807 = vadd.f32 %v2081, %v2723
      %v2808 = vadd.f32 %v2082, %v2726
      %v2809 = vadd.f32 %v2083, %v2731
      %v2810 = vadd.f32 %v2084, %v2734
      %v2811 = vadd.f32 %v2085, %v2739
      %v2812 = vadd.f32 %v2086, %v2742
      %v2813 = vadd.f32 %v2087, %v2747
      %v2814 = vadd.f32 %v2088, %v2750
      %v2815 = vadd.f32 %v2089, %v2755
      %v2816 = vadd.f32 %v2090, %v2758
      %v2817 = vadd.f32 %v2091, %v2763
      %v2818 = vadd.f32 %v2092, %v2766
      %v2819 = vadd.f32 %v2093, %v2771
      %v2820 = vadd.f32 %v2094, %v2774
      %v2821 = vadd.f32 %v2095, %v2779
      %v2822 = vadd.f32 %v2096, %v2782
      %v2823 = vadd.f32 %v2097, %v2787
      %v2824 = vadd.f32 %v2098, %v2790
      %v2825 = vld [vmem:[%s1740] sm:$0xe]
      %v2826 = vld [vmem:[%s1740 + $0xc] sm:$0xe]
      %v2827 = vld [vmem:[%s1740 + $0x18] sm:$0xe]
      %v2828 = vld [vmem:[%s1740 + $0x24] sm:$0xe]
      %v2829 = vld [vmem:[%s1740 + $0x30] sm:$0xe]
      %v2830 = vld [vmem:[%s1740 + $0x3c] sm:$0xe]
      %v2831 = vld [vmem:[%s1740 + $0x48] sm:$0xe]
      %v2832 = vld [vmem:[%s1740 + $0x54] sm:$0xe]
      %v2833 = vld [vmem:[%s1740 + $0x60] sm:$0xe]
      %v2834 = vld [vmem:[%s1740 + $0x6c] sm:$0xe]
      %v2835 = vld [vmem:[%s1740 + $0x78] sm:$0xe]
      %v2836 = vld [vmem:[%s1740 + $0x84] sm:$0xe]
      %v2837 = vld [vmem:[%s1740 + $0x90] sm:$0xe]
      %v2838 = vld [vmem:[%s1740 + $0x9c] sm:$0xe]
      %v2839 = vld [vmem:[%s1740 + $0xa8] sm:$0xe]
      %v2840 = vld [vmem:[%s1740 + $0xb4] sm:$0xe]
      %v2889 = vrot.slane %v2825, 5
      %v2890 = vrot.slane %v2889, 4
      %v2891 = vrot.slane %v2100, 5
      %v2892 = vsel %vm1333, %v2890, %v2891
      %v2893 = vrot.slane %v2891, 4
      %v2894 = vrot.slane %v2101, 5
      %v2895 = vsel %vm1333, %v2893, %v2894
      %v2896 = vrot.slane %v2826, 5
      %v2897 = vrot.slane %v2896, 4
      %v2898 = vrot.slane %v2103, 5
      %v2899 = vsel %vm1333, %v2897, %v2898
      %v2900 = vrot.slane %v2898, 4
      %v2901 = vrot.slane %v2104, 5
      %v2902 = vsel %vm1333, %v2900, %v2901
      %v2903 = vrot.slane %v2827, 5
      %v2904 = vrot.slane %v2903, 4
      %v2905 = vrot.slane %v2106, 5
      %v2906 = vsel %vm1333, %v2904, %v2905
      %v2907 = vrot.slane %v2905, 4
      %v2908 = vrot.slane %v2107, 5
      %v2909 = vsel %vm1333, %v2907, %v2908
      %v2910 = vrot.slane %v2828, 5
      %v2911 = vrot.slane %v2910, 4
      %v2912 = vrot.slane %v2109, 5
      %v2913 = vsel %vm1333, %v2911, %v2912
      %v2914 = vrot.slane %v2912, 4
      %v2915 = vrot.slane %v2110, 5
      %v2916 = vsel %vm1333, %v2914, %v2915
      %v2917 = vrot.slane %v2829, 5
      %v2918 = vrot.slane %v2917, 4
      %v2919 = vrot.slane %v2112, 5
      %v2920 = vsel %vm1333, %v2918, %v2919
      %v2921 = vrot.slane %v2919, 4
      %v2922 = vrot.slane %v2113, 5
      %v2923 = vsel %vm1333, %v2921, %v2922
      %v2924 = vrot.slane %v2830, 5
      %v2925 = vrot.slane %v2924, 4
      %v2926 = vrot.slane %v2115, 5
      %v2927 = vsel %vm1333, %v2925, %v2926
      %v2928 = vrot.slane %v2926, 4
      %v2929 = vrot.slane %v2116, 5
      %v2930 = vsel %vm1333, %v2928, %v2929
      %v2931 = vrot.slane %v2831, 5
      %v2932 = vrot.slane %v2931, 4
      %v2933 = vrot.slane %v2118, 5
      %v2934 = vsel %vm1333, %v2932, %v2933
      %v2935 = vrot.slane %v2933, 4
      %v2936 = vrot.slane %v2119, 5
      %v2937 = vsel %vm1333, %v2935, %v2936
      %v2938 = vrot.slane %v2832, 5
      %v2939 = vrot.slane %v2938, 4
      %v2940 = vrot.slane %v2121, 5
      %v2941 = vsel %vm1333, %v2939, %v2940
      %v2942 = vrot.slane %v2940, 4
      %v2943 = vrot.slane %v2122, 5
      %v2944 = vsel %vm1333, %v2942, %v2943
      %v2945 = vrot.slane %v2833, 5
      %v2946 = vrot.slane %v2945, 4
      %v2947 = vrot.slane %v2124, 5
      %v2948 = vsel %vm1333, %v2946, %v2947
      %v2949 = vrot.slane %v2947, 4
      %v2950 = vrot.slane %v2125, 5
      %v2951 = vsel %vm1333, %v2949, %v2950
      %v2952 = vrot.slane %v2834, 5
      %v2953 = vrot.slane %v2952, 4
      %v2954 = vrot.slane %v2127, 5
      %v2955 = vsel %vm1333, %v2953, %v2954
      %v2956 = vrot.slane %v2954, 4
      %v2957 = vrot.slane %v2128, 5
      %v2958 = vsel %vm1333, %v2956, %v2957
      %v2959 = vrot.slane %v2835, 5
      %v2960 = vrot.slane %v2959, 4
      %v2961 = vrot.slane %v2130, 5
      %v2962 = vsel %vm1333, %v2960, %v2961
      %v2963 = vrot.slane %v2961, 4
      %v2964 = vrot.slane %v2131, 5
      %v2965 = vsel %vm1333, %v2963, %v2964
      %v2966 = vrot.slane %v2836, 5
      %v2967 = vrot.slane %v2966, 4
      %v2968 = vrot.slane %v2133, 5
      %v2969 = vsel %vm1333, %v2967, %v2968
      %v2970 = vrot.slane %v2968, 4
      %v2971 = vrot.slane %v2134, 5
      %v2972 = vsel %vm1333, %v2970, %v2971
      %v2973 = vrot.slane %v2837, 5
      %v2974 = vrot.slane %v2973, 4
      %v2975 = vrot.slane %v2136, 5
      %v2976 = vsel %vm1333, %v2974, %v2975
      %v2977 = vrot.slane %v2975, 4
      %v2978 = vrot.slane %v2137, 5
      %v2979 = vsel %vm1333, %v2977, %v2978
      %v2980 = vrot.slane %v2838, 5
      %v2981 = vrot.slane %v2980, 4
      %v2982 = vrot.slane %v2139, 5
      %v2983 = vsel %vm1333, %v2981, %v2982
      %v2984 = vrot.slane %v2982, 4
      %v2985 = vrot.slane %v2140, 5
      %v2986 = vsel %vm1333, %v2984, %v2985
      %v2987 = vrot.slane %v2839, 5
      %v2988 = vrot.slane %v2987, 4
      %v2989 = vrot.slane %v2142, 5
      %v2990 = vsel %vm1333, %v2988, %v2989
      %v2991 = vrot.slane %v2989, 4
      %v2992 = vrot.slane %v2143, 5
      %v2993 = vsel %vm1333, %v2991, %v2992
      %v2994 = vrot.slane %v2840, 5
      %v2995 = vrot.slane %v2994, 4
      %v2996 = vrot.slane %v2145, 5
      %v2997 = vsel %vm1333, %v2995, %v2996
      %v2998 = vrot.slane %v2996, 4
      %v2999 = vrot.slane %v2146, 5
      %v3000 = vsel %vm1333, %v2998, %v2999
      %s3001 = scalar_lea.vmem %s275, 10
      %v3002 = vld [vmem:[%s3001] sm:$0x3]
      %v3003 = vunpack.c.l.b16 %v2892
      %v3004 = vunpack.c.l.b16 %v2895
      %v3005 = vunpack.c.l.b16 %v2899
      %v3006 = vunpack.c.l.b16 %v2902
      %v3007 = vunpack.c.l.b16 %v2906
      %v3008 = vunpack.c.l.b16 %v2909
      %v3009 = vunpack.c.l.b16 %v2913
      %v3010 = vunpack.c.l.b16 %v2916
      %v3011 = vunpack.c.l.b16 %v2920
      %v3012 = vunpack.c.l.b16 %v2923
      %v3013 = vunpack.c.l.b16 %v2927
      %v3014 = vunpack.c.l.b16 %v2930
      %v3015 = vunpack.c.l.b16 %v2934
      %v3016 = vunpack.c.l.b16 %v2937
      %v3017 = vunpack.c.l.b16 %v2941
      %v3018 = vunpack.c.l.b16 %v2944
      %v3019 = vunpack.c.l.b16 %v2948
      %v3020 = vunpack.c.l.b16 %v2951
      %v3021 = vunpack.c.l.b16 %v2955
      %v3022 = vunpack.c.l.b16 %v2958
      %v3023 = vunpack.c.l.b16 %v2962
      %v3024 = vunpack.c.l.b16 %v2965
      %v3025 = vunpack.c.l.b16 %v2969
      %v3026 = vunpack.c.l.b16 %v2972
      %v3027 = vunpack.c.l.b16 %v2976
      %v3028 = vunpack.c.l.b16 %v2979
      %v3029 = vunpack.c.l.b16 %v2983
      %v3030 = vunpack.c.l.b16 %v2986
      %v3031 = vunpack.c.l.b16 %v2990
      %v3032 = vunpack.c.l.b16 %v2993
      %v3033 = vunpack.c.l.b16 %v2997
      %v3034 = vunpack.c.l.b16 %v3000
      %v3035 = vpack.c.b16 %v3004, %v3003
      %v3036 = vpack.c.b16 %v3006, %v3005
      %v3037 = vpack.c.b16 %v3008, %v3007
      %v3038 = vpack.c.b16 %v3010, %v3009
      %v3039 = vpack.c.b16 %v3012, %v3011
      %v3040 = vpack.c.b16 %v3014, %v3013
      %v3041 = vpack.c.b16 %v3016, %v3015
      %v3042 = vpack.c.b16 %v3018, %v3017
      %v3043 = vpack.c.b16 %v3020, %v3019
      %v3044 = vpack.c.b16 %v3022, %v3021
      %v3045 = vpack.c.b16 %v3024, %v3023
      %v3046 = vpack.c.b16 %v3026, %v3025
      %v3047 = vpack.c.b16 %v3028, %v3027
      %v3048 = vpack.c.b16 %v3030, %v3029
      %v3049 = vpack.c.b16 %v3032, %v3031
      %v3050 = vpack.c.b16 %v3034, %v3033
      %v3052 = vsel %vm777, %v3035, 0
      %v3055 = vsel %vm777, %v3036, 0
      %v3058 = vsel %vm777, %v3037, 0
      %v3061 = vsel %vm777, %v3038, 0
      %v3064 = vsel %vm777, %v3039, 0
      %v3067 = vsel %vm777, %v3040, 0
      %v3070 = vsel %vm777, %v3041, 0
      %v3073 = vsel %vm777, %v3042, 0
      %v3076 = vsel %vm777, %v3043, 0
      %v3079 = vsel %vm777, %v3044, 0
      %v3082 = vsel %vm777, %v3045, 0
      %v3085 = vsel %vm777, %v3046, 0
      %v3088 = vsel %vm777, %v3047, 0
      %v3091 = vsel %vm777, %v3048, 0
      %v3094 = vsel %vm777, %v3049, 0
      %v3097 = vsel %vm777, %v3050, 0
      %v3100 = vsel %vm826, %v3002, 0
      %3102 = vmatprep.subr.bf16.mxu0 0
      %3103 = vmatpush1.bf16.msra.mxu0 %v3100
      %3104 = vmatprep.subr.bf16.mxu0 0
      %3105 = vmatpush1.bf16.msra.mxu0 0
      %3106 = vmatprep.subr.bf16.mxu0 0
      %3107 = vmatpush1.bf16.msra.mxu0 0
      %3108 = vmatprep.subr.bf16.mxu0 0
      %3109 = vmatpush1.bf16.msra.mxu0 0
      %3110 = vmatprep.subr.bf16.mxu0 0
      %3111 = vmatpush1.bf16.msra.mxu0 0
      %3112 = vmatprep.subr.bf16.mxu0 0
      %3113 = vmatpush1.bf16.msra.mxu0 0
      %3114 = vmatprep.subr.bf16.mxu0 0
      %3115 = vmatpush1.bf16.msra.mxu0 0
      %3116 = vmatprep.subr.bf16.mxu0 0
      %3117 = vmatpush1.bf16.msra.mxu0 0
      %3118 = vmatprep.subr.bf16.mxu0 0
      %3119 = vmatpush1.bf16.msra.mxu0 0
      %3120 = vmatprep.subr.bf16.mxu0 0
      %3121 = vmatpush1.bf16.msra.mxu0 0
      %3122 = vmatprep.subr.bf16.mxu0 0
      %3123 = vmatpush1.bf16.msra.mxu0 0
      %3124 = vmatprep.subr.bf16.mxu0 0
      %3125 = vmatpush1.bf16.msra.mxu0 0
      %3126 = vmatprep.subr.bf16.mxu0 0
      %3127 = vmatpush1.bf16.msra.mxu0 0
      %3128 = vmatprep.subr.bf16.mxu0 0
      %3129 = vmatpush1.bf16.msra.mxu0 0
      %3130 = vmatprep.subr.bf16.mxu0 0
      %3131 = vmatpush1.bf16.msra.mxu0 0
      %3132 = vmatprep.subr.bf16.mxu0 0
      %3133 = vmatpush1.bf16.msra.mxu0 0
      %3134 = vmatprep.mubr.bf16.mxu0 0
      %3135 = vmatmul.mubr.bf16.gmra.mrb[0].mxu0 %v3052
      %v3136 = vpop.f32.mrb[0].mxu0
      %v3137 = vadd.f32 0.0, %v3136
      %v3138 = vpop.f32.mrb[0].mxu0
      %v3139 = vpop.f32.mrb[0].mxu0
      %v3140 = vadd.f32 0.0, %v3139
      %v3141 = vpop.f32.mrb[0].mxu0
      %3142 = vmatprep.mubr.bf16.mxu0 0
      %3143 = vmatmul.mubr.bf16.gmra.mrb[0].mxu0 %v3055
      %v3144 = vpop.f32.mrb[0].mxu0
      %v3145 = vadd.f32 0.0, %v3144
      %v3146 = vpop.f32.mrb[0].mxu0
      %v3147 = vpop.f32.mrb[0].mxu0
      %v3148 = vadd.f32 0.0, %v3147
      %v3149 = vpop.f32.mrb[0].mxu0
      %3150 = vmatprep.mubr.bf16.mxu0 0
      %3151 = vmatmul.mubr.bf16.gmra.mrb[0].mxu0 %v3058
      %v3152 = vpop.f32.mrb[0].mxu0
      %v3153 = vadd.f32 0.0, %v3152
      %v3154 = vpop.f32.mrb[0].mxu0
      %v3155 = vpop.f32.mrb[0].mxu0
      %v3156 = vadd.f32 0.0, %v3155
      %v3157 = vpop.f32.mrb[0].mxu0
      %3158 = vmatprep.mubr.bf16.mxu0 0
      %3159 = vmatmul.mubr.bf16.gmra.mrb[0].mxu0 %v3061
      %v3160 = vpop.f32.mrb[0].mxu0
      %v3161 = vadd.f32 0.0, %v3160
      %v3162 = vpop.f32.mrb[0].mxu0
      %v3163 = vpop.f32.mrb[0].mxu0
      %v3164 = vadd.f32 0.0, %v3163
      %v3165 = vpop.f32.mrb[0].mxu0
      %3166 = vmatprep.mubr.bf16.mxu0 0
      %3167 = vmatmul.mubr.bf16.gmra.mrb[0].mxu0 %v3064
      %v3168 = vpop.f32.mrb[0].mxu0
      %v3169 = vadd.f32 0.0, %v3168
      %v3170 = vpop.f32.mrb[0].mxu0
      %v3171 = vpop.f32.mrb[0].mxu0
      %v3172 = vadd.f32 0.0, %v3171
      %v3173 = vpop.f32.mrb[0].mxu0
      %3174 = vmatprep.mubr.bf16.mxu0 0
      %3175 = vmatmul.mubr.bf16.gmra.mrb[0].mxu0 %v3067
      %v3176 = vpop.f32.mrb[0].mxu0
      %v3177 = vadd.f32 0.0, %v3176
      %v3178 = vpop.f32.mrb[0].mxu0
      %v3179 = vpop.f32.mrb[0].mxu0
      %v3180 = vadd.f32 0.0, %v3179
      %v3181 = vpop.f32.mrb[0].mxu0
      %3182 = vmatprep.mubr.bf16.mxu0 0
      %3183 = vmatmul.mubr.bf16.gmra.mrb[0].mxu0 %v3070
      %v3184 = vpop.f32.mrb[0].mxu0
      %v3185 = vadd.f32 0.0, %v3184
      %v3186 = vpop.f32.mrb[0].mxu0
      %v3187 = vpop.f32.mrb[0].mxu0
      %v3188 = vadd.f32 0.0, %v3187
      %v3189 = vpop.f32.mrb[0].mxu0
      %3190 = vmatprep.mubr.bf16.mxu0 0
      %3191 = vmatmul.mubr.bf16.gmra.mrb[0].mxu0 %v3073
      %v3192 = vpop.f32.mrb[0].mxu0
      %v3193 = vadd.f32 0.0, %v3192
      %v3194 = vpop.f32.mrb[0].mxu0
      %v3195 = vpop.f32.mrb[0].mxu0
      %v3196 = vadd.f32 0.0, %v3195
      %v3197 = vpop.f32.mrb[0].mxu0
      %3198 = vmatprep.mubr.bf16.mxu0 0
      %3199 = vmatmul.mubr.bf16.gmra.mrb[0].mxu0 %v3076
      %v3200 = vpop.f32.mrb[0].mxu0
      %v3201 = vadd.f32 0.0, %v3200
      %v3202 = vpop.f32.mrb[0].mxu0
      %v3203 = vpop.f32.mrb[0].mxu0
      %v3204 = vadd.f32 0.0, %v3203
      %v3205 = vpop.f32.mrb[0].mxu0
      %3206 = vmatprep.mubr.bf16.mxu0 0
      %3207 = vmatmul.mubr.bf16.gmra.mrb[0].mxu0 %v3079
      %v3208 = vpop.f32.mrb[0].mxu0
      %v3209 = vadd.f32 0.0, %v3208
      %v3210 = vpop.f32.mrb[0].mxu0
      %v3211 = vpop.f32.mrb[0].mxu0
      %v3212 = vadd.f32 0.0, %v3211
      %v3213 = vpop.f32.mrb[0].mxu0
      %3214 = vmatprep.mubr.bf16.mxu0 0
      %3215 = vmatmul.mubr.bf16.gmra.mrb[0].mxu0 %v3082
      %v3216 = vpop.f32.mrb[0].mxu0
      %v3217 = vadd.f32 0.0, %v3216
      %v3218 = vpop.f32.mrb[0].mxu0
      %v3219 = vpop.f32.mrb[0].mxu0
      %v3220 = vadd.f32 0.0, %v3219
      %v3221 = vpop.f32.mrb[0].mxu0
      %3222 = vmatprep.mubr.bf16.mxu0 0
      %3223 = vmatmul.mubr.bf16.gmra.mrb[0].mxu0 %v3085
      %v3224 = vpop.f32.mrb[0].mxu0
      %v3225 = vadd.f32 0.0, %v3224
      %v3226 = vpop.f32.mrb[0].mxu0
      %v3227 = vpop.f32.mrb[0].mxu0
      %v3228 = vadd.f32 0.0, %v3227
      %v3229 = vpop.f32.mrb[0].mxu0
      %3230 = vmatprep.mubr.bf16.mxu0 0
      %3231 = vmatmul.mubr.bf16.gmra.mrb[0].mxu0 %v3088
      %v3232 = vpop.f32.mrb[0].mxu0
      %v3233 = vadd.f32 0.0, %v3232
      %v3234 = vpop.f32.mrb[0].mxu0
      %v3235 = vpop.f32.mrb[0].mxu0
      %v3236 = vadd.f32 0.0, %v3235
      %v3237 = vpop.f32.mrb[0].mxu0
      %3238 = vmatprep.mubr.bf16.mxu0 0
      %3239 = vmatmul.mubr.bf16.gmra.mrb[0].mxu0 %v3091
      %v3240 = vpop.f32.mrb[0].mxu0
      %v3241 = vadd.f32 0.0, %v3240
      %v3242 = vpop.f32.mrb[0].mxu0
      %v3243 = vpop.f32.mrb[0].mxu0
      %v3244 = vadd.f32 0.0, %v3243
      %v3245 = vpop.f32.mrb[0].mxu0
      %3246 = vmatprep.mubr.bf16.mxu0 0
      %3247 = vmatmul.mubr.bf16.gmra.mrb[0].mxu0 %v3094
      %v3248 = vpop.f32.mrb[0].mxu0
      %v3249 = vadd.f32 0.0, %v3248
      %v3250 = vpop.f32.mrb[0].mxu0
      %v3251 = vpop.f32.mrb[0].mxu0
      %v3252 = vadd.f32 0.0, %v3251
      %v3253 = vpop.f32.mrb[0].mxu0
      %3254 = vmatprep.mubr.bf16.mxu0 0
      %3255 = vmatmul.mubr.bf16.gmra.mrb[0].mxu0 %v3097
      %v3256 = vpop.f32.mrb[0].mxu0
      %v3257 = vadd.f32 0.0, %v3256
      %v3258 = vpop.f32.mrb[0].mxu0
      %v3259 = vpop.f32.mrb[0].mxu0
      %v3260 = vadd.f32 0.0, %v3259
      %v3261 = vpop.f32.mrb[0].mxu0
      %3262 = vdwg.mxu0
      %v3263 = vadd.f32 %v2793, %v3137
      %v3264 = vadd.f32 %v2794, %v3140
      %v3265 = vadd.f32 %v2795, %v3145
      %v3266 = vadd.f32 %v2796, %v3148
      %v3267 = vadd.f32 %v2797, %v3153
      %v3268 = vadd.f32 %v2798, %v3156
      %v3269 = vadd.f32 %v2799, %v3161
      %v3270 = vadd.f32 %v2800, %v3164
      %v3271 = vadd.f32 %v2801, %v3169
      %v3272 = vadd.f32 %v2802, %v3172
      %v3273 = vadd.f32 %v2803, %v3177
      %v3274 = vadd.f32 %v2804, %v3180
      %v3275 = vadd.f32 %v2805, %v3185
      %v3276 = vadd.f32 %v2806, %v3188
      %v3277 = vadd.f32 %v2807, %v3193
      %v3278 = vadd.f32 %v2808, %v3196
      %v3279 = vadd.f32 %v2809, %v3201
      %v3280 = vadd.f32 %v2810, %v3204
      %v3281 = vadd.f32 %v2811, %v3209
      %v3282 = vadd.f32 %v2812, %v3212
      %v3283 = vadd.f32 %v2813, %v3217
      %v3284 = vadd.f32 %v2814, %v3220
      %v3285 = vadd.f32 %v2815, %v3225
      %v3286 = vadd.f32 %v2816, %v3228
      %v3287 = vadd.f32 %v2817, %v3233
      %v3288 = vadd.f32 %v2818, %v3236
      %v3289 = vadd.f32 %v2819, %v3241
      %v3290 = vadd.f32 %v2820, %v3244
      %v3291 = vadd.f32 %v2821, %v3249
      %v3292 = vadd.f32 %v2822, %v3252
      %v3293 = vadd.f32 %v2823, %v3257
      %v3294 = vadd.f32 %v2824, %v3260
      %s3295 = scalar_lea.vmem %s271, 24
      %v3296 = vld [vmem:[%s3295] sm:$0xf]
      %v3297 = vld [vmem:[%s3295 + $0x4] sm:$0xf]
      %v3298 = vld [vmem:[%s3295 + $0xc] sm:$0xf]
      %v3299 = vld [vmem:[%s3295 + $0x10] sm:$0xf]
      %v3300 = vld [vmem:[%s3295 + $0x18] sm:$0xf]
      %v3301 = vld [vmem:[%s3295 + $0x1c] sm:$0xf]
      %v3302 = vld [vmem:[%s3295 + $0x24] sm:$0xf]
      %v3303 = vld [vmem:[%s3295 + $0x28] sm:$0xf]
      %v3304 = vld [vmem:[%s3295 + $0x30] sm:$0xf]
      %v3305 = vld [vmem:[%s3295 + $0x34] sm:$0xf]
      %v3306 = vld [vmem:[%s3295 + $0x3c] sm:$0xf]
      %v3307 = vld [vmem:[%s3295 + $0x40] sm:$0xf]
      %v3308 = vld [vmem:[%s3295 + $0x48] sm:$0xf]
      %v3309 = vld [vmem:[%s3295 + $0x4c] sm:$0xf]
      %v3310 = vld [vmem:[%s3295 + $0x54] sm:$0xf]
      %v3311 = vld [vmem:[%s3295 + $0x58] sm:$0xf]
      %v3312 = vld [vmem:[%s3295 + $0x60] sm:$0xf]
      %v3313 = vld [vmem:[%s3295 + $0x64] sm:$0xf]
      %v3314 = vld [vmem:[%s3295 + $0x6c] sm:$0xf]
      %v3315 = vld [vmem:[%s3295 + $0x70] sm:$0xf]
      %v3316 = vld [vmem:[%s3295 + $0x78] sm:$0xf]
      %v3317 = vld [vmem:[%s3295 + $0x7c] sm:$0xf]
      %v3318 = vld [vmem:[%s3295 + $0x84] sm:$0xf]
      %v3319 = vld [vmem:[%s3295 + $0x88] sm:$0xf]
      %v3320 = vld [vmem:[%s3295 + $0x90] sm:$0xf]
      %v3321 = vld [vmem:[%s3295 + $0x94] sm:$0xf]
      %v3322 = vld [vmem:[%s3295 + $0x9c] sm:$0xf]
      %v3323 = vld [vmem:[%s3295 + $0xa0] sm:$0xf]
      %v3324 = vld [vmem:[%s3295 + $0xa8] sm:$0xf]
      %v3325 = vld [vmem:[%s3295 + $0xac] sm:$0xf]
      %v3326 = vld [vmem:[%s3295 + $0xb4] sm:$0xf]
      %v3327 = vld [vmem:[%s3295 + $0xb8] sm:$0xf]
      %s3328 = scalar_lea.vmem %s275, 12
      %v3329 = vld [vmem:[%s3328] sm:$0x3]
      %v3362 = vunpack.c.l.b16 %v3296
      %v3363 = vunpack.c.l.b16 %v3297
      %v3364 = vunpack.c.l.b16 %v3298
      %v3365 = vunpack.c.l.b16 %v3299
      %v3366 = vunpack.c.l.b16 %v3300
      %v3367 = vunpack.c.l.b16 %v3301
      %v3368 = vunpack.c.l.b16 %v3302
      %v3369 = vunpack.c.l.b16 %v3303
      %v3370 = vunpack.c.l.b16 %v3304
      %v3371 = vunpack.c.l.b16 %v3305
      %v3372 = vunpack.c.l.b16 %v3306
      %v3373 = vunpack.c.l.b16 %v3307
      %v3374 = vunpack.c.l.b16 %v3308
      %v3375 = vunpack.c.l.b16 %v3309
      %v3376 = vunpack.c.l.b16 %v3310
      %v3377 = vunpack.c.l.b16 %v3311
      %v3378 = vunpack.c.l.b16 %v3312
      %v3379 = vunpack.c.l.b16 %v3313
      %v3380 = vunpack.c.l.b16 %v3314
      %v3381 = vunpack.c.l.b16 %v3315
      %v3382 = vunpack.c.l.b16 %v3316
      %v3383 = vunpack.c.l.b16 %v3317
      %v3384 = vunpack.c.l.b16 %v3318
      %v3385 = vunpack.c.l.b16 %v3319
      %v3386 = vunpack.c.l.b16 %v3320
      %v3387 = vunpack.c.l.b16 %v3321
      %v3388 = vunpack.c.l.b16 %v3322
      %v3389 = vunpack.c.l.b16 %v3323
      %v3390 = vunpack.c.l.b16 %v3324
      %v3391 = vunpack.c.l.b16 %v3325
      %v3392 = vunpack.c.l.b16 %v3326
      %v3393 = vunpack.c.l.b16 %v3327
      %v3394 = vpack.c.b16 %v3363, %v3362
      %v3395 = vpack.c.b16 %v3365, %v3364
      %v3396 = vpack.c.b16 %v3367, %v3366
      %v3397 = vpack.c.b16 %v3369, %v3368
      %v3398 = vpack.c.b16 %v3371, %v3370
      %v3399 = vpack.c.b16 %v3373, %v3372
      %v3400 = vpack.c.b16 %v3375, %v3374
      %v3401 = vpack.c.b16 %v3377, %v3376
      %v3402 = vpack.c.b16 %v3379, %v3378
      %v3403 = vpack.c.b16 %v3381, %v3380
      %v3404 = vpack.c.b16 %v3383, %v3382
      %v3405 = vpack.c.b16 %v3385, %v3384
      %v3406 = vpack.c.b16 %v3387, %v3386
      %v3407 = vpack.c.b16 %v3389, %v3388
      %v3408 = vpack.c.b16 %v3391, %v3390
      %v3409 = vpack.c.b16 %v3393, %v3392
      %v3411 = vsel %vm777, %v3394, 0
      %v3414 = vsel %vm777, %v3395, 0
      %v3417 = vsel %vm777, %v3396, 0
      %v3420 = vsel %vm777, %v3397, 0
      %v3423 = vsel %vm777, %v3398, 0
      %v3426 = vsel %vm777, %v3399, 0
      %v3429 = vsel %vm777, %v3400, 0
      %v3432 = vsel %vm777, %v3401, 0
      %v3435 = vsel %vm777, %v3402, 0
      %v3438 = vsel %vm777, %v3403, 0
      %v3441 = vsel %vm777, %v3404, 0
      %v3444 = vsel %vm777, %v3405, 0
      %v3447 = vsel %vm777, %v3406, 0
      %v3450 = vsel %vm777, %v3407, 0
      %v3453 = vsel %vm777, %v3408, 0
      %v3456 = vsel %vm777, %v3409, 0
      %v3459 = vsel %vm826, %v3329, 0
      %3461 = vmatprep.subr.bf16.mxu0 0
      %3462 = vmatpush1.bf16.msra.mxu0 %v3459
      %3463 = vmatprep.subr.bf16.mxu0 0
      %3464 = vmatpush1.bf16.msra.mxu0 0
      %3465 = vmatprep.subr.bf16.mxu0 0
      %3466 = vmatpush1.bf16.msra.mxu0 0
      %3467 = vmatprep.subr.bf16.mxu0 0
      %3468 = vmatpush1.bf16.msra.mxu0 0
      %3469 = vmatprep.subr.bf16.mxu0 0
      %3470 = vmatpush1.bf16.msra.mxu0 0
      %3471 = vmatprep.subr.bf16.mxu0 0
      %3472 = vmatpush1.bf16.msra.mxu0 0
      %3473 = vmatprep.subr.bf16.mxu0 0
      %3474 = vmatpush1.bf16.msra.mxu0 0
      %3475 = vmatprep.subr.bf16.mxu0 0
      %3476 = vmatpush1.bf16.msra.mxu0 0
      %3477 = vmatprep.subr.bf16.mxu0 0
      %3478 = vmatpush1.bf16.msra.mxu0 0
      %3479 = vmatprep.subr.bf16.mxu0 0
      %3480 = vmatpush1.bf16.msra.mxu0 0
      %3481 = vmatprep.subr.bf16.mxu0 0
      %3482 = vmatpush1.bf16.msra.mxu0 0
      %3483 = vmatprep.subr.bf16.mxu0 0
      %3484 = vmatpush1.bf16.msra.mxu0 0
      %3485 = vmatprep.subr.bf16.mxu0 0
      %3486 = vmatpush1.bf16.msra.mxu0 0
      %3487 = vmatprep.subr.bf16.mxu0 0
      %3488 = vmatpush1.bf16.msra.mxu0 0
      %3489 = vmatprep.subr.bf16.mxu0 0
      %3490 = vmatpush1.bf16.msra.mxu0 0
      %3491 = vmatprep.subr.bf16.mxu0 0
      %3492 = vmatpush1.bf16.msra.mxu0 0
      %3493 = vmatprep.mubr.bf16.mxu0 0
      %3494 = vmatmul.mubr.bf16.gmra.mrb[0].mxu0 %v3411
      %v3495 = vpop.f32.mrb[0].mxu0
      %v3496 = vadd.f32 0.0, %v3495
      %v3497 = vpop.f32.mrb[0].mxu0
      %v3498 = vpop.f32.mrb[0].mxu0
      %v3499 = vadd.f32 0.0, %v3498
      %v3500 = vpop.f32.mrb[0].mxu0
      %3501 = vmatprep.mubr.bf16.mxu0 0
      %3502 = vmatmul.mubr.bf16.gmra.mrb[0].mxu0 %v3414
      %v3503 = vpop.f32.mrb[0].mxu0
      %v3504 = vadd.f32 0.0, %v3503
      %v3505 = vpop.f32.mrb[0].mxu0
      %v3506 = vpop.f32.mrb[0].mxu0
      %v3507 = vadd.f32 0.0, %v3506
      %v3508 = vpop.f32.mrb[0].mxu0
      %3509 = vmatprep.mubr.bf16.mxu0 0
      %3510 = vmatmul.mubr.bf16.gmra.mrb[0].mxu0 %v3417
      %v3511 = vpop.f32.mrb[0].mxu0
      %v3512 = vadd.f32 0.0, %v3511
      %v3513 = vpop.f32.mrb[0].mxu0
      %v3514 = vpop.f32.mrb[0].mxu0
      %v3515 = vadd.f32 0.0, %v3514
      %v3516 = vpop.f32.mrb[0].mxu0
      %3517 = vmatprep.mubr.bf16.mxu0 0
      %3518 = vmatmul.mubr.bf16.gmra.mrb[0].mxu0 %v3420
      %v3519 = vpop.f32.mrb[0].mxu0
      %v3520 = vadd.f32 0.0, %v3519
      %v3521 = vpop.f32.mrb[0].mxu0
      %v3522 = vpop.f32.mrb[0].mxu0
      %v3523 = vadd.f32 0.0, %v3522
      %v3524 = vpop.f32.mrb[0].mxu0
      %3525 = vmatprep.mubr.bf16.mxu0 0
      %3526 = vmatmul.mubr.bf16.gmra.mrb[0].mxu0 %v3423
      %v3527 = vpop.f32.mrb[0].mxu0
      %v3528 = vadd.f32 0.0, %v3527
      %v3529 = vpop.f32.mrb[0].mxu0
      %v3530 = vpop.f32.mrb[0].mxu0
      %v3531 = vadd.f32 0.0, %v3530
      %v3532 = vpop.f32.mrb[0].mxu0
      %3533 = vmatprep.mubr.bf16.mxu0 0
      %3534 = vmatmul.mubr.bf16.gmra.mrb[0].mxu0 %v3426
      %v3535 = vpop.f32.mrb[0].mxu0
      %v3536 = vadd.f32 0.0, %v3535
      %v3537 = vpop.f32.mrb[0].mxu0
      %v3538 = vpop.f32.mrb[0].mxu0
      %v3539 = vadd.f32 0.0, %v3538
      %v3540 = vpop.f32.mrb[0].mxu0
      %3541 = vmatprep.mubr.bf16.mxu0 0
      %3542 = vmatmul.mubr.bf16.gmra.mrb[0].mxu0 %v3429
      %v3543 = vpop.f32.mrb[0].mxu0
      %v3544 = vadd.f32 0.0, %v3543
      %v3545 = vpop.f32.mrb[0].mxu0
      %v3546 = vpop.f32.mrb[0].mxu0
      %v3547 = vadd.f32 0.0, %v3546
      %v3548 = vpop.f32.mrb[0].mxu0
      %3549 = vmatprep.mubr.bf16.mxu0 0
      %3550 = vmatmul.mubr.bf16.gmra.mrb[0].mxu0 %v3432
      %v3551 = vpop.f32.mrb[0].mxu0
      %v3552 = vadd.f32 0.0, %v3551
      %v3553 = vpop.f32.mrb[0].mxu0
      %v3554 = vpop.f32.mrb[0].mxu0
      %v3555 = vadd.f32 0.0, %v3554
      %v3556 = vpop.f32.mrb[0].mxu0
      %3557 = vmatprep.mubr.bf16.mxu0 0
      %3558 = vmatmul.mubr.bf16.gmra.mrb[0].mxu0 %v3435
      %v3559 = vpop.f32.mrb[0].mxu0
      %v3560 = vadd.f32 0.0, %v3559
      %v3561 = vpop.f32.mrb[0].mxu0
      %v3562 = vpop.f32.mrb[0].mxu0
      %v3563 = vadd.f32 0.0, %v3562
      %v3564 = vpop.f32.mrb[0].mxu0
      %3565 = vmatprep.mubr.bf16.mxu0 0
      %3566 = vmatmul.mubr.bf16.gmra.mrb[0].mxu0 %v3438
      %v3567 = vpop.f32.mrb[0].mxu0
      %v3568 = vadd.f32 0.0, %v3567
      %v3569 = vpop.f32.mrb[0].mxu0
      %v3570 = vpop.f32.mrb[0].mxu0
      %v3571 = vadd.f32 0.0, %v3570
      %v3572 = vpop.f32.mrb[0].mxu0
      %3573 = vmatprep.mubr.bf16.mxu0 0
      %3574 = vmatmul.mubr.bf16.gmra.mrb[0].mxu0 %v3441
      %v3575 = vpop.f32.mrb[0].mxu0
      %v3576 = vadd.f32 0.0, %v3575
      %v3577 = vpop.f32.mrb[0].mxu0
      %v3578 = vpop.f32.mrb[0].mxu0
      %v3579 = vadd.f32 0.0, %v3578
      %v3580 = vpop.f32.mrb[0].mxu0
      %3581 = vmatprep.mubr.bf16.mxu0 0
      %3582 = vmatmul.mubr.bf16.gmra.mrb[0].mxu0 %v3444
      %v3583 = vpop.f32.mrb[0].mxu0
      %v3584 = vadd.f32 0.0, %v3583
      %v3585 = vpop.f32.mrb[0].mxu0
      %v3586 = vpop.f32.mrb[0].mxu0
      %v3587 = vadd.f32 0.0, %v3586
      %v3588 = vpop.f32.mrb[0].mxu0
      %3589 = vmatprep.mubr.bf16.mxu0 0
      %3590 = vmatmul.mubr.bf16.gmra.mrb[0].mxu0 %v3447
      %v3591 = vpop.f32.mrb[0].mxu0
      %v3592 = vadd.f32 0.0, %v3591
      %v3593 = vpop.f32.mrb[0].mxu0
      %v3594 = vpop.f32.mrb[0].mxu0
      %v3595 = vadd.f32 0.0, %v3594
      %v3596 = vpop.f32.mrb[0].mxu0
      %3597 = vmatprep.mubr.bf16.mxu0 0
      %3598 = vmatmul.mubr.bf16.gmra.mrb[0].mxu0 %v3450
      %v3599 = vpop.f32.mrb[0].mxu0
      %v3600 = vadd.f32 0.0, %v3599
      %v3601 = vpop.f32.mrb[0].mxu0
      %v3602 = vpop.f32.mrb[0].mxu0
      %v3603 = vadd.f32 0.0, %v3602
      %v3604 = vpop.f32.mrb[0].mxu0
      %3605 = vmatprep.mubr.bf16.mxu0 0
      %3606 = vmatmul.mubr.bf16.gmra.mrb[0].mxu0 %v3453
      %v3607 = vpop.f32.mrb[0].mxu0
      %v3608 = vadd.f32 0.0, %v3607
      %v3609 = vpop.f32.mrb[0].mxu0
      %v3610 = vpop.f32.mrb[0].mxu0
      %v3611 = vadd.f32 0.0, %v3610
      %v3612 = vpop.f32.mrb[0].mxu0
      %3613 = vmatprep.mubr.bf16.mxu0 0
      %3614 = vmatmul.mubr.bf16.gmra.mrb[0].mxu0 %v3456
      %v3615 = vpop.f32.mrb[0].mxu0
      %v3616 = vadd.f32 0.0, %v3615
      %v3617 = vpop.f32.mrb[0].mxu0
      %v3618 = vpop.f32.mrb[0].mxu0
      %v3619 = vadd.f32 0.0, %v3618
      %v3620 = vpop.f32.mrb[0].mxu0
      %3621 = vdwg.mxu0
      %v3622 = vadd.f32 %v3263, %v3496
      %v3623 = vadd.f32 %v3264, %v3499
      %v3624 = vadd.f32 %v3265, %v3504
      %v3625 = vadd.f32 %v3266, %v3507
      %v3626 = vadd.f32 %v3267, %v3512
      %v3627 = vadd.f32 %v3268, %v3515
      %v3628 = vadd.f32 %v3269, %v3520
      %v3629 = vadd.f32 %v3270, %v3523
      %v3630 = vadd.f32 %v3271, %v3528
      %v3631 = vadd.f32 %v3272, %v3531
      %v3632 = vadd.f32 %v3273, %v3536
      %v3633 = vadd.f32 %v3274, %v3539
      %v3634 = vadd.f32 %v3275, %v3544
      %v3635 = vadd.f32 %v3276, %v3547
      %v3636 = vadd.f32 %v3277, %v3552
      %v3637 = vadd.f32 %v3278, %v3555
      %v3638 = vadd.f32 %v3279, %v3560
      %v3639 = vadd.f32 %v3280, %v3563
      %v3640 = vadd.f32 %v3281, %v3568
      %v3641 = vadd.f32 %v3282, %v3571
      %v3642 = vadd.f32 %v3283, %v3576
      %v3643 = vadd.f32 %v3284, %v3579
      %v3644 = vadd.f32 %v3285, %v3584
      %v3645 = vadd.f32 %v3286, %v3587
      %v3646 = vadd.f32 %v3287, %v3592
      %v3647 = vadd.f32 %v3288, %v3595
      %v3648 = vadd.f32 %v3289, %v3600
      %v3649 = vadd.f32 %v3290, %v3603
      %v3650 = vadd.f32 %v3291, %v3608
      %v3651 = vadd.f32 %v3292, %v3611
      %v3652 = vadd.f32 %v3293, %v3616
      %v3653 = vadd.f32 %v3294, %v3619
      %v3654 = vld [vmem:[%s3295] sm:$0xf]
      %v3655 = vld [vmem:[%s3295 + $0x4] sm:$0xf]
      %v3656 = vld [vmem:[%s3295 + $0x8] sm:$0x1]
      %v3657 = vld [vmem:[%s3295 + $0xc] sm:$0xf]
      %v3658 = vld [vmem:[%s3295 + $0x10] sm:$0xf]
      %v3659 = vld [vmem:[%s3295 + $0x14] sm:$0x1]
      %v3660 = vld [vmem:[%s3295 + $0x18] sm:$0xf]
      %v3661 = vld [vmem:[%s3295 + $0x1c] sm:$0xf]
      %v3662 = vld [vmem:[%s3295 + $0x20] sm:$0x1]
      %v3663 = vld [vmem:[%s3295 + $0x24] sm:$0xf]
      %v3664 = vld [vmem:[%s3295 + $0x28] sm:$0xf]
      %v3665 = vld [vmem:[%s3295 + $0x2c] sm:$0x1]
      %v3666 = vld [vmem:[%s3295 + $0x30] sm:$0xf]
      %v3667 = vld [vmem:[%s3295 + $0x34] sm:$0xf]
      %v3668 = vld [vmem:[%s3295 + $0x38] sm:$0x1]
      %v3669 = vld [vmem:[%s3295 + $0x3c] sm:$0xf]
      %v3670 = vld [vmem:[%s3295 + $0x40] sm:$0xf]
      %v3671 = vld [vmem:[%s3295 + $0x44] sm:$0x1]
      %v3672 = vld [vmem:[%s3295 + $0x48] sm:$0xf]
      %v3673 = vld [vmem:[%s3295 + $0x4c] sm:$0xf]
      %v3674 = vld [vmem:[%s3295 + $0x50] sm:$0x1]
      %v3675 = vld [vmem:[%s3295 + $0x54] sm:$0xf]
      %v3676 = vld [vmem:[%s3295 + $0x58] sm:$0xf]
      %v3677 = vld [vmem:[%s3295 + $0x5c] sm:$0x1]
      %v3678 = vld [vmem:[%s3295 + $0x60] sm:$0xf]
      %v3679 = vld [vmem:[%s3295 + $0x64] sm:$0xf]
      %v3680 = vld [vmem:[%s3295 + $0x68] sm:$0x1]
      %v3681 = vld [vmem:[%s3295 + $0x6c] sm:$0xf]
      %v3682 = vld [vmem:[%s3295 + $0x70] sm:$0xf]
      %v3683 = vld [vmem:[%s3295 + $0x74] sm:$0x1]
      %v3684 = vld [vmem:[%s3295 + $0x78] sm:$0xf]
      %v3685 = vld [vmem:[%s3295 + $0x7c] sm:$0xf]
      %v3686 = vld [vmem:[%s3295 + $0x80] sm:$0x1]
      %v3687 = vld [vmem:[%s3295 + $0x84] sm:$0xf]
      %v3688 = vld [vmem:[%s3295 + $0x88] sm:$0xf]
      %v3689 = vld [vmem:[%s3295 + $0x8c] sm:$0x1]
      %v3690 = vld [vmem:[%s3295 + $0x90] sm:$0xf]
      %v3691 = vld [vmem:[%s3295 + $0x94] sm:$0xf]
      %v3692 = vld [vmem:[%s3295 + $0x98] sm:$0x1]
      %v3693 = vld [vmem:[%s3295 + $0x9c] sm:$0xf]
      %v3694 = vld [vmem:[%s3295 + $0xa0] sm:$0xf]
      %v3695 = vld [vmem:[%s3295 + $0xa4] sm:$0x1]
      %v3696 = vld [vmem:[%s3295 + $0xa8] sm:$0xf]
      %v3697 = vld [vmem:[%s3295 + $0xac] sm:$0xf]
      %v3698 = vld [vmem:[%s3295 + $0xb0] sm:$0x1]
      %v3699 = vld [vmem:[%s3295 + $0xb4] sm:$0xf]
      %v3700 = vld [vmem:[%s3295 + $0xb8] sm:$0xf]
      %v3701 = vld [vmem:[%s3295 + $0xbc] sm:$0x1]
      %v3703 = vshrl.u32 %v3654, 16
      %v3705 = vrot.slane %v3703, 4
      %v3706 = vshll.u32 %v3654, 16
      %v3708 = vrot.slane %v3706, 5
      %v3709 = vor.u32 %v3705, %v3708
      %v3710 = vrot.slane %v3709, 4
      %v3712 = vshll.u32 %v3655, 16
      %v3714 = vrot.slane %v3712, 5
      %v3715 = vsel %vm342, %v3710, %v3714
      %v3716 = vshrl.u32 %v3655, 16
      %v3718 = vrot.slane %v3716, 4
      %v3719 = vor.u32 %v3718, %v3714
      %v3720 = vrot.slane %v3719, 4
      %v3722 = vshll.u32 %v3656, 16
      %v3724 = vrot.slane %v3722, 5
      %v3725 = vsel %vm342, %v3720, %v3724
      %v3727 = vshrl.u32 %v3657, 16
      %v3729 = vrot.slane %v3727, 4
      %v3730 = vshll.u32 %v3657, 16
      %v3732 = vrot.slane %v3730, 5
      %v3733 = vor.u32 %v3729, %v3732
      %v3734 = vrot.slane %v3733, 4
      %v3736 = vshll.u32 %v3658, 16
      %v3738 = vrot.slane %v3736, 5
      %v3739 = vsel %vm342, %v3734, %v3738
      %v3740 = vshrl.u32 %v3658, 16
      %v3742 = vrot.slane %v3740, 4
      %v3743 = vor.u32 %v3742, %v3738
      %v3744 = vrot.slane %v3743, 4
      %v3746 = vshll.u32 %v3659, 16
      %v3748 = vrot.slane %v3746, 5
      %v3749 = vsel %vm342, %v3744, %v3748
      %v3751 = vshrl.u32 %v3660, 16
      %v3753 = vrot.slane %v3751, 4
      %v3754 = vshll.u32 %v3660, 16
      %v3756 = vrot.slane %v3754, 5
      %v3757 = vor.u32 %v3753, %v3756
      %v3758 = vrot.slane %v3757, 4
      %v3760 = vshll.u32 %v3661, 16
      %v3762 = vrot.slane %v3760, 5
      %v3763 = vsel %vm342, %v3758, %v3762
      %v3764 = vshrl.u32 %v3661, 16
      %v3766 = vrot.slane %v3764, 4
      %v3767 = vor.u32 %v3766, %v3762
      %v3768 = vrot.slane %v3767, 4
      %v3770 = vshll.u32 %v3662, 16
      %v3772 = vrot.slane %v3770, 5
      %v3773 = vsel %vm342, %v3768, %v3772
      %v3775 = vshrl.u32 %v3663, 16
      %v3777 = vrot.slane %v3775, 4
      %v3778 = vshll.u32 %v3663, 16
      %v3780 = vrot.slane %v3778, 5
      %v3781 = vor.u32 %v3777, %v3780
      %v3782 = vrot.slane %v3781, 4
      %v3784 = vshll.u32 %v3664, 16
      %v3786 = vrot.slane %v3784, 5
      %v3787 = vsel %vm342, %v3782, %v3786
      %v3788 = vshrl.u32 %v3664, 16
      %v3790 = vrot.slane %v3788, 4
      %v3791 = vor.u32 %v3790, %v3786
      %v3792 = vrot.slane %v3791, 4
      %v3794 = vshll.u32 %v3665, 16
      %v3796 = vrot.slane %v3794, 5
      %v3797 = vsel %vm342, %v3792, %v3796
      %v3799 = vshrl.u32 %v3666, 16
      %v3801 = vrot.slane %v3799, 4
      %v3802 = vshll.u32 %v3666, 16
      %v3804 = vrot.slane %v3802, 5
      %v3805 = vor.u32 %v3801, %v3804
      %v3806 = vrot.slane %v3805, 4
      %v3808 = vshll.u32 %v3667, 16
      %v3810 = vrot.slane %v3808, 5
      %v3811 = vsel %vm342, %v3806, %v3810
      %v3812 = vshrl.u32 %v3667, 16
      %v3814 = vrot.slane %v3812, 4
      %v3815 = vor.u32 %v3814, %v3810
      %v3816 = vrot.slane %v3815, 4
      %v3818 = vshll.u32 %v3668, 16
      %v3820 = vrot.slane %v3818, 5
      %v3821 = vsel %vm342, %v3816, %v3820
      %v3823 = vshrl.u32 %v3669, 16
      %v3825 = vrot.slane %v3823, 4
      %v3826 = vshll.u32 %v3669, 16
      %v3828 = vrot.slane %v3826, 5
      %v3829 = vor.u32 %v3825, %v3828
      %v3830 = vrot.slane %v3829, 4
      %v3832 = vshll.u32 %v3670, 16
      %v3834 = vrot.slane %v3832, 5
      %v3835 = vsel %vm342, %v3830, %v3834
      %v3836 = vshrl.u32 %v3670, 16
      %v3838 = vrot.slane %v3836, 4
      %v3839 = vor.u32 %v3838, %v3834
      %v3840 = vrot.slane %v3839, 4
      %v3842 = vshll.u32 %v3671, 16
      %v3844 = vrot.slane %v3842, 5
      %v3845 = vsel %vm342, %v3840, %v3844
      %v3847 = vshrl.u32 %v3672, 16
      %v3849 = vrot.slane %v3847, 4
      %v3850 = vshll.u32 %v3672, 16
      %v3852 = vrot.slane %v3850, 5
      %v3853 = vor.u32 %v3849, %v3852
      %v3854 = vrot.slane %v3853, 4
      %v3856 = vshll.u32 %v3673, 16
      %v3858 = vrot.slane %v3856, 5
      %v3859 = vsel %vm342, %v3854, %v3858
      %v3860 = vshrl.u32 %v3673, 16
      %v3862 = vrot.slane %v3860, 4
      %v3863 = vor.u32 %v3862, %v3858
      %v3864 = vrot.slane %v3863, 4
      %v3866 = vshll.u32 %v3674, 16
      %v3868 = vrot.slane %v3866, 5
      %v3869 = vsel %vm342, %v3864, %v3868
      %v3871 = vshrl.u32 %v3675, 16
      %v3873 = vrot.slane %v3871, 4
      %v3874 = vshll.u32 %v3675, 16
      %v3876 = vrot.slane %v3874, 5
      %v3877 = vor.u32 %v3873, %v3876
      %v3878 = vrot.slane %v3877, 4
      %v3880 = vshll.u32 %v3676, 16
      %v3882 = vrot.slane %v3880, 5
      %v3883 = vsel %vm342, %v3878, %v3882
      %v3884 = vshrl.u32 %v3676, 16
      %v3886 = vrot.slane %v3884, 4
      %v3887 = vor.u32 %v3886, %v3882
      %v3888 = vrot.slane %v3887, 4
      %v3890 = vshll.u32 %v3677, 16
      %v3892 = vrot.slane %v3890, 5
      %v3893 = vsel %vm342, %v3888, %v3892
      %v3895 = vshrl.u32 %v3678, 16
      %v3897 = vrot.slane %v3895, 4
      %v3898 = vshll.u32 %v3678, 16
      %v3900 = vrot.slane %v3898, 5
      %v3901 = vor.u32 %v3897, %v3900
      %v3902 = vrot.slane %v3901, 4
      %v3904 = vshll.u32 %v3679, 16
      %v3906 = vrot.slane %v3904, 5
      %v3907 = vsel %vm342, %v3902, %v3906
      %v3908 = vshrl.u32 %v3679, 16
      %v3910 = vrot.slane %v3908, 4
      %v3911 = vor.u32 %v3910, %v3906
      %v3912 = vrot.slane %v3911, 4
      %v3914 = vshll.u32 %v3680, 16
      %v3916 = vrot.slane %v3914, 5
      %v3917 = vsel %vm342, %v3912, %v3916
      %v3919 = vshrl.u32 %v3681, 16
      %v3921 = vrot.slane %v3919, 4
      %v3922 = vshll.u32 %v3681, 16
      %v3924 = vrot.slane %v3922, 5
      %v3925 = vor.u32 %v3921, %v3924
      %v3926 = vrot.slane %v3925, 4
      %v3928 = vshll.u32 %v3682, 16
      %v3930 = vrot.slane %v3928, 5
      %v3931 = vsel %vm342, %v3926, %v3930
      %v3932 = vshrl.u32 %v3682, 16
      %v3934 = vrot.slane %v3932, 4
      %v3935 = vor.u32 %v3934, %v3930
      %v3936 = vrot.slane %v3935, 4
      %v3938 = vshll.u32 %v3683, 16
      %v3940 = vrot.slane %v3938, 5
      %v3941 = vsel %vm342, %v3936, %v3940
      %v3943 = vshrl.u32 %v3684, 16
      %v3945 = vrot.slane %v3943, 4
      %v3946 = vshll.u32 %v3684, 16
      %v3948 = vrot.slane %v3946, 5
      %v3949 = vor.u32 %v3945, %v3948
      %v3950 = vrot.slane %v3949, 4
      %v3952 = vshll.u32 %v3685, 16
      %v3954 = vrot.slane %v3952, 5
      %v3955 = vsel %vm342, %v3950, %v3954
      %v3956 = vshrl.u32 %v3685, 16
      %v3958 = vrot.slane %v3956, 4
      %v3959 = vor.u32 %v3958, %v3954
      %v3960 = vrot.slane %v3959, 4
      %v3962 = vshll.u32 %v3686, 16
      %v3964 = vrot.slane %v3962, 5
      %v3965 = vsel %vm342, %v3960, %v3964
      %v3967 = vshrl.u32 %v3687, 16
      %v3969 = vrot.slane %v3967, 4
      %v3970 = vshll.u32 %v3687, 16
      %v3972 = vrot.slane %v3970, 5
      %v3973 = vor.u32 %v3969, %v3972
      %v3974 = vrot.slane %v3973, 4
      %v3976 = vshll.u32 %v3688, 16
      %v3978 = vrot.slane %v3976, 5
      %v3979 = vsel %vm342, %v3974, %v3978
      %v3980 = vshrl.u32 %v3688, 16
      %v3982 = vrot.slane %v3980, 4
      %v3983 = vor.u32 %v3982, %v3978
      %v3984 = vrot.slane %v3983, 4
      %v3986 = vshll.u32 %v3689, 16
      %v3988 = vrot.slane %v3986, 5
      %v3989 = vsel %vm342, %v3984, %v3988
      %v3991 = vshrl.u32 %v3690, 16
      %v3993 = vrot.slane %v3991, 4
      %v3994 = vshll.u32 %v3690, 16
      %v3996 = vrot.slane %v3994, 5
      %v3997 = vor.u32 %v3993, %v3996
      %v3998 = vrot.slane %v3997, 4
      %v4000 = vshll.u32 %v3691, 16
      %v4002 = vrot.slane %v4000, 5
      %v4003 = vsel %vm342, %v3998, %v4002
      %v4004 = vshrl.u32 %v3691, 16
      %v4006 = vrot.slane %v4004, 4
      %v4007 = vor.u32 %v4006, %v4002
      %v4008 = vrot.slane %v4007, 4
      %v4010 = vshll.u32 %v3692, 16
      %v4012 = vrot.slane %v4010, 5
      %v4013 = vsel %vm342, %v4008, %v4012
      %v4015 = vshrl.u32 %v3693, 16
      %v4017 = vrot.slane %v4015, 4
      %v4018 = vshll.u32 %v3693, 16
      %v4020 = vrot.slane %v4018, 5
      %v4021 = vor.u32 %v4017, %v4020
      %v4022 = vrot.slane %v4021, 4
      %v4024 = vshll.u32 %v3694, 16
      %v4026 = vrot.slane %v4024, 5
      %v4027 = vsel %vm342, %v4022, %v4026
      %v4028 = vshrl.u32 %v3694, 16
      %v4030 = vrot.slane %v4028, 4
      %v4031 = vor.u32 %v4030, %v4026
      %v4032 = vrot.slane %v4031, 4
      %v4034 = vshll.u32 %v3695, 16
      %v4036 = vrot.slane %v4034, 5
      %v4037 = vsel %vm342, %v4032, %v4036
      %v4039 = vshrl.u32 %v3696, 16
      %v4041 = vrot.slane %v4039, 4
      %v4042 = vshll.u32 %v3696, 16
      %v4044 = vrot.slane %v4042, 5
      %v4045 = vor.u32 %v4041, %v4044
      %v4046 = vrot.slane %v4045, 4
      %v4048 = vshll.u32 %v3697, 16
      %v4050 = vrot.slane %v4048, 5
      %v4051 = vsel %vm342, %v4046, %v4050
      %v4052 = vshrl.u32 %v3697, 16
      %v4054 = vrot.slane %v4052, 4
      %v4055 = vor.u32 %v4054, %v4050
      %v4056 = vrot.slane %v4055, 4
      %v4058 = vshll.u32 %v3698, 16
      %v4060 = vrot.slane %v4058, 5
      %v4061 = vsel %vm342, %v4056, %v4060
      %v4063 = vshrl.u32 %v3699, 16
      %v4065 = vrot.slane %v4063, 4
      %v4066 = vshll.u32 %v3699, 16
      %v4068 = vrot.slane %v4066, 5
      %v4069 = vor.u32 %v4065, %v4068
      %v4070 = vrot.slane %v4069, 4
      %v4072 = vshll.u32 %v3700, 16
      %v4074 = vrot.slane %v4072, 5
      %v4075 = vsel %vm342, %v4070, %v4074
      %v4076 = vshrl.u32 %v3700, 16
      %v4078 = vrot.slane %v4076, 4
      %v4079 = vor.u32 %v4078, %v4074
      %v4080 = vrot.slane %v4079, 4
      %v4082 = vshll.u32 %v3701, 16
      %v4084 = vrot.slane %v4082, 5
      %v4085 = vsel %vm342, %v4080, %v4084
      %s4086 = scalar_lea.vmem %s275, 14
      %v4087 = vld [vmem:[%s4086] sm:$0x3]
      %v4088 = vunpack.c.l.b16 %v3715
      %v4089 = vunpack.c.l.b16 %v3725
      %v4090 = vunpack.c.l.b16 %v3739
      %v4091 = vunpack.c.l.b16 %v3749
      %v4092 = vunpack.c.l.b16 %v3763
      %v4093 = vunpack.c.l.b16 %v3773
      %v4094 = vunpack.c.l.b16 %v3787
      %v4095 = vunpack.c.l.b16 %v3797
      %v4096 = vunpack.c.l.b16 %v3811
      %v4097 = vunpack.c.l.b16 %v3821
      %v4098 = vunpack.c.l.b16 %v3835
      %v4099 = vunpack.c.l.b16 %v3845
      %v4100 = vunpack.c.l.b16 %v3859
      %v4101 = vunpack.c.l.b16 %v3869
      %v4102 = vunpack.c.l.b16 %v3883
      %v4103 = vunpack.c.l.b16 %v3893
      %v4104 = vunpack.c.l.b16 %v3907
      %v4105 = vunpack.c.l.b16 %v3917
      %v4106 = vunpack.c.l.b16 %v3931
      %v4107 = vunpack.c.l.b16 %v3941
      %v4108 = vunpack.c.l.b16 %v3955
      %v4109 = vunpack.c.l.b16 %v3965
      %v4110 = vunpack.c.l.b16 %v3979
      %v4111 = vunpack.c.l.b16 %v3989
      %v4112 = vunpack.c.l.b16 %v4003
      %v4113 = vunpack.c.l.b16 %v4013
      %v4114 = vunpack.c.l.b16 %v4027
      %v4115 = vunpack.c.l.b16 %v4037
      %v4116 = vunpack.c.l.b16 %v4051
      %v4117 = vunpack.c.l.b16 %v4061
      %v4118 = vunpack.c.l.b16 %v4075
      %v4119 = vunpack.c.l.b16 %v4085
      %v4120 = vpack.c.b16 %v4089, %v4088
      %v4121 = vpack.c.b16 %v4091, %v4090
      %v4122 = vpack.c.b16 %v4093, %v4092
      %v4123 = vpack.c.b16 %v4095, %v4094
      %v4124 = vpack.c.b16 %v4097, %v4096
      %v4125 = vpack.c.b16 %v4099, %v4098
      %v4126 = vpack.c.b16 %v4101, %v4100
      %v4127 = vpack.c.b16 %v4103, %v4102
      %v4128 = vpack.c.b16 %v4105, %v4104
      %v4129 = vpack.c.b16 %v4107, %v4106
      %v4130 = vpack.c.b16 %v4109, %v4108
      %v4131 = vpack.c.b16 %v4111, %v4110
      %v4132 = vpack.c.b16 %v4113, %v4112
      %v4133 = vpack.c.b16 %v4115, %v4114
      %v4134 = vpack.c.b16 %v4117, %v4116
      %v4135 = vpack.c.b16 %v4119, %v4118
      %v4137 = vsel %vm777, %v4120, 0
      %v4140 = vsel %vm777, %v4121, 0
      %v4143 = vsel %vm777, %v4122, 0
      %v4146 = vsel %vm777, %v4123, 0
      %v4149 = vsel %vm777, %v4124, 0
      %v4152 = vsel %vm777, %v4125, 0
      %v4155 = vsel %vm777, %v4126, 0
      %v4158 = vsel %vm777, %v4127, 0
      %v4161 = vsel %vm777, %v4128, 0
      %v4164 = vsel %vm777, %v4129, 0
      %v4167 = vsel %vm777, %v4130, 0
      %v4170 = vsel %vm777, %v4131, 0
      %v4173 = vsel %vm777, %v4132, 0
      %v4176 = vsel %vm777, %v4133, 0
      %v4179 = vsel %vm777, %v4134, 0
      %v4182 = vsel %vm777, %v4135, 0
      %v4185 = vsel %vm826, %v4087, 0
      %4187 = vmatprep.subr.bf16.mxu0 0
      %4188 = vmatpush1.bf16.msra.mxu0 %v4185
      %4189 = vmatprep.subr.bf16.mxu0 0
      %4190 = vmatpush1.bf16.msra.mxu0 0
      %4191 = vmatprep.subr.bf16.mxu0 0
      %4192 = vmatpush1.bf16.msra.mxu0 0
      %4193 = vmatprep.subr.bf16.mxu0 0
      %4194 = vmatpush1.bf16.msra.mxu0 0
      %4195 = vmatprep.subr.bf16.mxu0 0
      %4196 = vmatpush1.bf16.msra.mxu0 0
      %4197 = vmatprep.subr.bf16.mxu0 0
      %4198 = vmatpush1.bf16.msra.mxu0 0
      %4199 = vmatprep.subr.bf16.mxu0 0
      %4200 = vmatpush1.bf16.msra.mxu0 0
      %4201 = vmatprep.subr.bf16.mxu0 0
      %4202 = vmatpush1.bf16.msra.mxu0 0
      %4203 = vmatprep.subr.bf16.mxu0 0
      %4204 = vmatpush1.bf16.msra.mxu0 0
      %4205 = vmatprep.subr.bf16.mxu0 0
      %4206 = vmatpush1.bf16.msra.mxu0 0
      %4207 = vmatprep.subr.bf16.mxu0 0
      %4208 = vmatpush1.bf16.msra.mxu0 0
      %4209 = vmatprep.subr.bf16.mxu0 0
      %4210 = vmatpush1.bf16.msra.mxu0 0
      %4211 = vmatprep.subr.bf16.mxu0 0
      %4212 = vmatpush1.bf16.msra.mxu0 0
      %4213 = vmatprep.subr.bf16.mxu0 0
      %4214 = vmatpush1.bf16.msra.mxu0 0
      %4215 = vmatprep.subr.bf16.mxu0 0
      %4216 = vmatpush1.bf16.msra.mxu0 0
      %4217 = vmatprep.subr.bf16.mxu0 0
      %4218 = vmatpush1.bf16.msra.mxu0 0
      %4219 = vmatprep.mubr.bf16.mxu0 0
      %4220 = vmatmul.mubr.bf16.gmra.mrb[0].mxu0 %v4137
      %v4221 = vpop.f32.mrb[0].mxu0
      %v4222 = vadd.f32 0.0, %v4221
      %v4223 = vpop.f32.mrb[0].mxu0
      %v4224 = vpop.f32.mrb[0].mxu0
      %v4225 = vadd.f32 0.0, %v4224
      %v4226 = vpop.f32.mrb[0].mxu0
      %4227 = vmatprep.mubr.bf16.mxu0 0
      %4228 = vmatmul.mubr.bf16.gmra.mrb[0].mxu0 %v4140
      %v4229 = vpop.f32.mrb[0].mxu0
      %v4230 = vadd.f32 0.0, %v4229
      %v4231 = vpop.f32.mrb[0].mxu0
      %v4232 = vpop.f32.mrb[0].mxu0
      %v4233 = vadd.f32 0.0, %v4232
      %v4234 = vpop.f32.mrb[0].mxu0
      %4235 = vmatprep.mubr.bf16.mxu0 0
      %4236 = vmatmul.mubr.bf16.gmra.mrb[0].mxu0 %v4143
      %v4237 = vpop.f32.mrb[0].mxu0
      %v4238 = vadd.f32 0.0, %v4237
      %v4239 = vpop.f32.mrb[0].mxu0
      %v4240 = vpop.f32.mrb[0].mxu0
      %v4241 = vadd.f32 0.0, %v4240
      %v4242 = vpop.f32.mrb[0].mxu0
      %4243 = vmatprep.mubr.bf16.mxu0 0
      %4244 = vmatmul.mubr.bf16.gmra.mrb[0].mxu0 %v4146
      %v4245 = vpop.f32.mrb[0].mxu0
      %v4246 = vadd.f32 0.0, %v4245
      %v4247 = vpop.f32.mrb[0].mxu0
      %v4248 = vpop.f32.mrb[0].mxu0
      %v4249 = vadd.f32 0.0, %v4248
      %v4250 = vpop.f32.mrb[0].mxu0
      %4251 = vmatprep.mubr.bf16.mxu0 0
      %4252 = vmatmul.mubr.bf16.gmra.mrb[0].mxu0 %v4149
      %v4253 = vpop.f32.mrb[0].mxu0
      %v4254 = vadd.f32 0.0, %v4253
      %v4255 = vpop.f32.mrb[0].mxu0
      %v4256 = vpop.f32.mrb[0].mxu0
      %v4257 = vadd.f32 0.0, %v4256
      %v4258 = vpop.f32.mrb[0].mxu0
      %4259 = vmatprep.mubr.bf16.mxu0 0
      %4260 = vmatmul.mubr.bf16.gmra.mrb[0].mxu0 %v4152
      %v4261 = vpop.f32.mrb[0].mxu0
      %v4262 = vadd.f32 0.0, %v4261
      %v4263 = vpop.f32.mrb[0].mxu0
      %v4264 = vpop.f32.mrb[0].mxu0
      %v4265 = vadd.f32 0.0, %v4264
      %v4266 = vpop.f32.mrb[0].mxu0
      %4267 = vmatprep.mubr.bf16.mxu0 0
      %4268 = vmatmul.mubr.bf16.gmra.mrb[0].mxu0 %v4155
      %v4269 = vpop.f32.mrb[0].mxu0
      %v4270 = vadd.f32 0.0, %v4269
      %v4271 = vpop.f32.mrb[0].mxu0
      %v4272 = vpop.f32.mrb[0].mxu0
      %v4273 = vadd.f32 0.0, %v4272
      %v4274 = vpop.f32.mrb[0].mxu0
      %4275 = vmatprep.mubr.bf16.mxu0 0
      %4276 = vmatmul.mubr.bf16.gmra.mrb[0].mxu0 %v4158
      %v4277 = vpop.f32.mrb[0].mxu0
      %v4278 = vadd.f32 0.0, %v4277
      %v4279 = vpop.f32.mrb[0].mxu0
      %v4280 = vpop.f32.mrb[0].mxu0
      %v4281 = vadd.f32 0.0, %v4280
      %v4282 = vpop.f32.mrb[0].mxu0
      %4283 = vmatprep.mubr.bf16.mxu0 0
      %4284 = vmatmul.mubr.bf16.gmra.mrb[0].mxu0 %v4161
      %v4285 = vpop.f32.mrb[0].mxu0
      %v4286 = vadd.f32 0.0, %v4285
      %v4287 = vpop.f32.mrb[0].mxu0
      %v4288 = vpop.f32.mrb[0].mxu0
      %v4289 = vadd.f32 0.0, %v4288
      %v4290 = vpop.f32.mrb[0].mxu0
      %4291 = vmatprep.mubr.bf16.mxu0 0
      %4292 = vmatmul.mubr.bf16.gmra.mrb[0].mxu0 %v4164
      %v4293 = vpop.f32.mrb[0].mxu0
      %v4294 = vadd.f32 0.0, %v4293
      %v4295 = vpop.f32.mrb[0].mxu0
      %v4296 = vpop.f32.mrb[0].mxu0
      %v4297 = vadd.f32 0.0, %v4296
      %v4298 = vpop.f32.mrb[0].mxu0
      %4299 = vmatprep.mubr.bf16.mxu0 0
      %4300 = vmatmul.mubr.bf16.gmra.mrb[0].mxu0 %v4167
      %v4301 = vpop.f32.mrb[0].mxu0
      %v4302 = vadd.f32 0.0, %v4301
      %v4303 = vpop.f32.mrb[0].mxu0
      %v4304 = vpop.f32.mrb[0].mxu0
      %v4305 = vadd.f32 0.0, %v4304
      %v4306 = vpop.f32.mrb[0].mxu0
      %4307 = vmatprep.mubr.bf16.mxu0 0
      %4308 = vmatmul.mubr.bf16.gmra.mrb[0].mxu0 %v4170
      %v4309 = vpop.f32.mrb[0].mxu0
      %v4310 = vadd.f32 0.0, %v4309
      %v4311 = vpop.f32.mrb[0].mxu0
      %v4312 = vpop.f32.mrb[0].mxu0
      %v4313 = vadd.f32 0.0, %v4312
      %v4314 = vpop.f32.mrb[0].mxu0
      %4315 = vmatprep.mubr.bf16.mxu0 0
      %4316 = vmatmul.mubr.bf16.gmra.mrb[0].mxu0 %v4173
      %v4317 = vpop.f32.mrb[0].mxu0
      %v4318 = vadd.f32 0.0, %v4317
      %v4319 = vpop.f32.mrb[0].mxu0
      %v4320 = vpop.f32.mrb[0].mxu0
      %v4321 = vadd.f32 0.0, %v4320
      %v4322 = vpop.f32.mrb[0].mxu0
      %4323 = vmatprep.mubr.bf16.mxu0 0
      %4324 = vmatmul.mubr.bf16.gmra.mrb[0].mxu0 %v4176
      %v4325 = vpop.f32.mrb[0].mxu0
      %v4326 = vadd.f32 0.0, %v4325
      %v4327 = vpop.f32.mrb[0].mxu0
      %v4328 = vpop.f32.mrb[0].mxu0
      %v4329 = vadd.f32 0.0, %v4328
      %v4330 = vpop.f32.mrb[0].mxu0
      %4331 = vmatprep.mubr.bf16.mxu0 0
      %4332 = vmatmul.mubr.bf16.gmra.mrb[0].mxu0 %v4179
      %v4333 = vpop.f32.mrb[0].mxu0
      %v4334 = vadd.f32 0.0, %v4333
      %v4335 = vpop.f32.mrb[0].mxu0
      %v4336 = vpop.f32.mrb[0].mxu0
      %v4337 = vadd.f32 0.0, %v4336
      %v4338 = vpop.f32.mrb[0].mxu0
      %4339 = vmatprep.mubr.bf16.mxu0 0
      %4340 = vmatmul.mubr.bf16.gmra.mrb[0].mxu0 %v4182
      %v4341 = vpop.f32.mrb[0].mxu0
      %v4342 = vadd.f32 0.0, %v4341
      %v4343 = vpop.f32.mrb[0].mxu0
      %v4344 = vpop.f32.mrb[0].mxu0
      %v4345 = vadd.f32 0.0, %v4344
      %v4346 = vpop.f32.mrb[0].mxu0
      %4347 = vdwg.mxu0
      %v4348 = vadd.f32 %v3622, %v4222
      %v4349 = vadd.f32 %v3623, %v4225
      %v4350 = vadd.f32 %v3624, %v4230
      %v4351 = vadd.f32 %v3625, %v4233
      %v4352 = vadd.f32 %v3626, %v4238
      %v4353 = vadd.f32 %v3627, %v4241
      %v4354 = vadd.f32 %v3628, %v4246
      %v4355 = vadd.f32 %v3629, %v4249
      %v4356 = vadd.f32 %v3630, %v4254
      %v4357 = vadd.f32 %v3631, %v4257
      %v4358 = vadd.f32 %v3632, %v4262
      %v4359 = vadd.f32 %v3633, %v4265
      %v4360 = vadd.f32 %v3634, %v4270
      %v4361 = vadd.f32 %v3635, %v4273
      %v4362 = vadd.f32 %v3636, %v4278
      %v4363 = vadd.f32 %v3637, %v4281
      %v4364 = vadd.f32 %v3638, %v4286
      %v4365 = vadd.f32 %v3639, %v4289
      %v4366 = vadd.f32 %v3640, %v4294
      %v4367 = vadd.f32 %v3641, %v4297
      %v4368 = vadd.f32 %v3642, %v4302
      %v4369 = vadd.f32 %v3643, %v4305
      %v4370 = vadd.f32 %v3644, %v4310
      %v4371 = vadd.f32 %v3645, %v4313
      %v4372 = vadd.f32 %v3646, %v4318
      %v4373 = vadd.f32 %v3647, %v4321
      %v4374 = vadd.f32 %v3648, %v4326
      %v4375 = vadd.f32 %v3649, %v4329
      %v4376 = vadd.f32 %v3650, %v4334
      %v4377 = vadd.f32 %v3651, %v4337
      %v4378 = vadd.f32 %v3652, %v4342
      %v4379 = vadd.f32 %v3653, %v4345
      %v4380 = vld [vmem:[%s3295] sm:$0xe]
      %v4381 = vld [vmem:[%s3295 + $0xc] sm:$0xe]
      %v4382 = vld [vmem:[%s3295 + $0x18] sm:$0xe]
      %v4383 = vld [vmem:[%s3295 + $0x24] sm:$0xe]
      %v4384 = vld [vmem:[%s3295 + $0x30] sm:$0xe]
      %v4385 = vld [vmem:[%s3295 + $0x3c] sm:$0xe]
      %v4386 = vld [vmem:[%s3295 + $0x48] sm:$0xe]
      %v4387 = vld [vmem:[%s3295 + $0x54] sm:$0xe]
      %v4388 = vld [vmem:[%s3295 + $0x60] sm:$0xe]
      %v4389 = vld [vmem:[%s3295 + $0x6c] sm:$0xe]
      %v4390 = vld [vmem:[%s3295 + $0x78] sm:$0xe]
      %v4391 = vld [vmem:[%s3295 + $0x84] sm:$0xe]
      %v4392 = vld [vmem:[%s3295 + $0x90] sm:$0xe]
      %v4393 = vld [vmem:[%s3295 + $0x9c] sm:$0xe]
      %v4394 = vld [vmem:[%s3295 + $0xa8] sm:$0xe]
      %v4395 = vld [vmem:[%s3295 + $0xb4] sm:$0xe]
      %v4444 = vrot.slane %v4380, 5
      %v4445 = vrot.slane %v4444, 4
      %v4446 = vrot.slane %v3655, 5
      %v4447 = vsel %vm1333, %v4445, %v4446
      %v4448 = vrot.slane %v4446, 4
      %v4449 = vrot.slane %v3656, 5
      %v4450 = vsel %vm1333, %v4448, %v4449
      %v4451 = vrot.slane %v4381, 5
      %v4452 = vrot.slane %v4451, 4
      %v4453 = vrot.slane %v3658, 5
      %v4454 = vsel %vm1333, %v4452, %v4453
      %v4455 = vrot.slane %v4453, 4
      %v4456 = vrot.slane %v3659, 5
      %v4457 = vsel %vm1333, %v4455, %v4456
      %v4458 = vrot.slane %v4382, 5
      %v4459 = vrot.slane %v4458, 4
      %v4460 = vrot.slane %v3661, 5
      %v4461 = vsel %vm1333, %v4459, %v4460
      %v4462 = vrot.slane %v4460, 4
      %v4463 = vrot.slane %v3662, 5
      %v4464 = vsel %vm1333, %v4462, %v4463
      %v4465 = vrot.slane %v4383, 5
      %v4466 = vrot.slane %v4465, 4
      %v4467 = vrot.slane %v3664, 5
      %v4468 = vsel %vm1333, %v4466, %v4467
      %v4469 = vrot.slane %v4467, 4
      %v4470 = vrot.slane %v3665, 5
      %v4471 = vsel %vm1333, %v4469, %v4470
      %v4472 = vrot.slane %v4384, 5
      %v4473 = vrot.slane %v4472, 4
      %v4474 = vrot.slane %v3667, 5
      %v4475 = vsel %vm1333, %v4473, %v4474
      %v4476 = vrot.slane %v4474, 4
      %v4477 = vrot.slane %v3668, 5
      %v4478 = vsel %vm1333, %v4476, %v4477
      %v4479 = vrot.slane %v4385, 5
      %v4480 = vrot.slane %v4479, 4
      %v4481 = vrot.slane %v3670, 5
      %v4482 = vsel %vm1333, %v4480, %v4481
      %v4483 = vrot.slane %v4481, 4
      %v4484 = vrot.slane %v3671, 5
      %v4485 = vsel %vm1333, %v4483, %v4484
      %v4486 = vrot.slane %v4386, 5
      %v4487 = vrot.slane %v4486, 4
      %v4488 = vrot.slane %v3673, 5
      %v4489 = vsel %vm1333, %v4487, %v4488
      %v4490 = vrot.slane %v4488, 4
      %v4491 = vrot.slane %v3674, 5
      %v4492 = vsel %vm1333, %v4490, %v4491
      %v4493 = vrot.slane %v4387, 5
      %v4494 = vrot.slane %v4493, 4
      %v4495 = vrot.slane %v3676, 5
      %v4496 = vsel %vm1333, %v4494, %v4495
      %v4497 = vrot.slane %v4495, 4
      %v4498 = vrot.slane %v3677, 5
      %v4499 = vsel %vm1333, %v4497, %v4498
      %v4500 = vrot.slane %v4388, 5
      %v4501 = vrot.slane %v4500, 4
      %v4502 = vrot.slane %v3679, 5
      %v4503 = vsel %vm1333, %v4501, %v4502
      %v4504 = vrot.slane %v4502, 4
      %v4505 = vrot.slane %v3680, 5
      %v4506 = vsel %vm1333, %v4504, %v4505
      %v4507 = vrot.slane %v4389, 5
      %v4508 = vrot.slane %v4507, 4
      %v4509 = vrot.slane %v3682, 5
      %v4510 = vsel %vm1333, %v4508, %v4509
      %v4511 = vrot.slane %v4509, 4
      %v4512 = vrot.slane %v3683, 5
      %v4513 = vsel %vm1333, %v4511, %v4512
      %v4514 = vrot.slane %v4390, 5
      %v4515 = vrot.slane %v4514, 4
      %v4516 = vrot.slane %v3685, 5
      %v4517 = vsel %vm1333, %v4515, %v4516
      %v4518 = vrot.slane %v4516, 4
      %v4519 = vrot.slane %v3686, 5
      %v4520 = vsel %vm1333, %v4518, %v4519
      %v4521 = vrot.slane %v4391, 5
      %v4522 = vrot.slane %v4521, 4
      %v4523 = vrot.slane %v3688, 5
      %v4524 = vsel %vm1333, %v4522, %v4523
      %v4525 = vrot.slane %v4523, 4
      %v4526 = vrot.slane %v3689, 5
      %v4527 = vsel %vm1333, %v4525, %v4526
      %v4528 = vrot.slane %v4392, 5
      %v4529 = vrot.slane %v4528, 4
      %v4530 = vrot.slane %v3691, 5
      %v4531 = vsel %vm1333, %v4529, %v4530
      %v4532 = vrot.slane %v4530, 4
      %v4533 = vrot.slane %v3692, 5
      %v4534 = vsel %vm1333, %v4532, %v4533
      %v4535 = vrot.slane %v4393, 5
      %v4536 = vrot.slane %v4535, 4
      %v4537 = vrot.slane %v3694, 5
      %v4538 = vsel %vm1333, %v4536, %v4537
      %v4539 = vrot.slane %v4537, 4
      %v4540 = vrot.slane %v3695, 5
      %v4541 = vsel %vm1333, %v4539, %v4540
      %v4542 = vrot.slane %v4394, 5
      %v4543 = vrot.slane %v4542, 4
      %v4544 = vrot.slane %v3697, 5
      %v4545 = vsel %vm1333, %v4543, %v4544
      %v4546 = vrot.slane %v4544, 4
      %v4547 = vrot.slane %v3698, 5
      %v4548 = vsel %vm1333, %v4546, %v4547
      %v4549 = vrot.slane %v4395, 5
      %v4550 = vrot.slane %v4549, 4
      %v4551 = vrot.slane %v3700, 5
      %v4552 = vsel %vm1333, %v4550, %v4551
      %v4553 = vrot.slane %v4551, 4
      %v4554 = vrot.slane %v3701, 5
      %v4555 = vsel %vm1333, %v4553, %v4554
      %s4556 = scalar_lea.vmem %s275, 16
      %v4557 = vld [vmem:[%s4556] sm:$0x3]
      %v4558 = vunpack.c.l.b16 %v4447
      %v4559 = vunpack.c.l.b16 %v4450
      %v4560 = vunpack.c.l.b16 %v4454
      %v4561 = vunpack.c.l.b16 %v4457
      %v4562 = vunpack.c.l.b16 %v4461
      %v4563 = vunpack.c.l.b16 %v4464
      %v4564 = vunpack.c.l.b16 %v4468
      %v4565 = vunpack.c.l.b16 %v4471
      %v4566 = vunpack.c.l.b16 %v4475
      %v4567 = vunpack.c.l.b16 %v4478
      %v4568 = vunpack.c.l.b16 %v4482
      %v4569 = vunpack.c.l.b16 %v4485
      %v4570 = vunpack.c.l.b16 %v4489
      %v4571 = vunpack.c.l.b16 %v4492
      %v4572 = vunpack.c.l.b16 %v4496
      %v4573 = vunpack.c.l.b16 %v4499
      %v4574 = vunpack.c.l.b16 %v4503
      %v4575 = vunpack.c.l.b16 %v4506
      %v4576 = vunpack.c.l.b16 %v4510
      %v4577 = vunpack.c.l.b16 %v4513
      %v4578 = vunpack.c.l.b16 %v4517
      %v4579 = vunpack.c.l.b16 %v4520
      %v4580 = vunpack.c.l.b16 %v4524
      %v4581 = vunpack.c.l.b16 %v4527
      %v4582 = vunpack.c.l.b16 %v4531
      %v4583 = vunpack.c.l.b16 %v4534
      %v4584 = vunpack.c.l.b16 %v4538
      %v4585 = vunpack.c.l.b16 %v4541
      %v4586 = vunpack.c.l.b16 %v4545
      %v4587 = vunpack.c.l.b16 %v4548
      %v4588 = vunpack.c.l.b16 %v4552
      %v4589 = vunpack.c.l.b16 %v4555
      %v4590 = vpack.c.b16 %v4559, %v4558
      %v4591 = vpack.c.b16 %v4561, %v4560
      %v4592 = vpack.c.b16 %v4563, %v4562
      %v4593 = vpack.c.b16 %v4565, %v4564
      %v4594 = vpack.c.b16 %v4567, %v4566
      %v4595 = vpack.c.b16 %v4569, %v4568
      %v4596 = vpack.c.b16 %v4571, %v4570
      %v4597 = vpack.c.b16 %v4573, %v4572
      %v4598 = vpack.c.b16 %v4575, %v4574
      %v4599 = vpack.c.b16 %v4577, %v4576
      %v4600 = vpack.c.b16 %v4579, %v4578
      %v4601 = vpack.c.b16 %v4581, %v4580
      %v4602 = vpack.c.b16 %v4583, %v4582
      %v4603 = vpack.c.b16 %v4585, %v4584
      %v4604 = vpack.c.b16 %v4587, %v4586
      %v4605 = vpack.c.b16 %v4589, %v4588
      %v4607 = vsel %vm777, %v4590, 0
      %v4610 = vsel %vm777, %v4591, 0
      %v4613 = vsel %vm777, %v4592, 0
      %v4616 = vsel %vm777, %v4593, 0
      %v4619 = vsel %vm777, %v4594, 0
      %v4622 = vsel %vm777, %v4595, 0
      %v4625 = vsel %vm777, %v4596, 0
      %v4628 = vsel %vm777, %v4597, 0
      %v4631 = vsel %vm777, %v4598, 0
      %v4634 = vsel %vm777, %v4599, 0
      %v4637 = vsel %vm777, %v4600, 0
      %v4640 = vsel %vm777, %v4601, 0
      %v4643 = vsel %vm777, %v4602, 0
      %v4646 = vsel %vm777, %v4603, 0
      %v4649 = vsel %vm777, %v4604, 0
      %v4652 = vsel %vm777, %v4605, 0
      %v4655 = vsel %vm826, %v4557, 0
      %4657 = vmatprep.subr.bf16.mxu0 0
      %4658 = vmatpush1.bf16.msra.mxu0 %v4655
      %4659 = vmatprep.subr.bf16.mxu0 0
      %4660 = vmatpush1.bf16.msra.mxu0 0
      %4661 = vmatprep.subr.bf16.mxu0 0
      %4662 = vmatpush1.bf16.msra.mxu0 0
      %4663 = vmatprep.subr.bf16.mxu0 0
      %4664 = vmatpush1.bf16.msra.mxu0 0
      %4665 = vmatprep.subr.bf16.mxu0 0
      %4666 = vmatpush1.bf16.msra.mxu0 0
      %4667 = vmatprep.subr.bf16.mxu0 0
      %4668 = vmatpush1.bf16.msra.mxu0 0
      %4669 = vmatprep.subr.bf16.mxu0 0
      %4670 = vmatpush1.bf16.msra.mxu0 0
      %4671 = vmatprep.subr.bf16.mxu0 0
      %4672 = vmatpush1.bf16.msra.mxu0 0
      %4673 = vmatprep.subr.bf16.mxu0 0
      %4674 = vmatpush1.bf16.msra.mxu0 0
      %4675 = vmatprep.subr.bf16.mxu0 0
      %4676 = vmatpush1.bf16.msra.mxu0 0
      %4677 = vmatprep.subr.bf16.mxu0 0
      %4678 = vmatpush1.bf16.msra.mxu0 0
      %4679 = vmatprep.subr.bf16.mxu0 0
      %4680 = vmatpush1.bf16.msra.mxu0 0
      %4681 = vmatprep.subr.bf16.mxu0 0
      %4682 = vmatpush1.bf16.msra.mxu0 0
      %4683 = vmatprep.subr.bf16.mxu0 0
      %4684 = vmatpush1.bf16.msra.mxu0 0
      %4685 = vmatprep.subr.bf16.mxu0 0
      %4686 = vmatpush1.bf16.msra.mxu0 0
      %4687 = vmatprep.subr.bf16.mxu0 0
      %4688 = vmatpush1.bf16.msra.mxu0 0
      %4689 = vmatprep.mubr.bf16.mxu0 0
      %4690 = vmatmul.mubr.bf16.gmra.mrb[0].mxu0 %v4607
      %v4691 = vpop.f32.mrb[0].mxu0
      %v4692 = vadd.f32 0.0, %v4691
      %v4693 = vpop.f32.mrb[0].mxu0
      %v4694 = vpop.f32.mrb[0].mxu0
      %v4695 = vadd.f32 0.0, %v4694
      %v4696 = vpop.f32.mrb[0].mxu0
      %4697 = vmatprep.mubr.bf16.mxu0 0
      %4698 = vmatmul.mubr.bf16.gmra.mrb[0].mxu0 %v4610
      %v4699 = vpop.f32.mrb[0].mxu0
      %v4700 = vadd.f32 0.0, %v4699
      %v4701 = vpop.f32.mrb[0].mxu0
      %v4702 = vpop.f32.mrb[0].mxu0
      %v4703 = vadd.f32 0.0, %v4702
      %v4704 = vpop.f32.mrb[0].mxu0
      %4705 = vmatprep.mubr.bf16.mxu0 0
      %4706 = vmatmul.mubr.bf16.gmra.mrb[0].mxu0 %v4613
      %v4707 = vpop.f32.mrb[0].mxu0
      %v4708 = vadd.f32 0.0, %v4707
      %v4709 = vpop.f32.mrb[0].mxu0
      %v4710 = vpop.f32.mrb[0].mxu0
      %v4711 = vadd.f32 0.0, %v4710
      %v4712 = vpop.f32.mrb[0].mxu0
      %4713 = vmatprep.mubr.bf16.mxu0 0
      %4714 = vmatmul.mubr.bf16.gmra.mrb[0].mxu0 %v4616
      %v4715 = vpop.f32.mrb[0].mxu0
      %v4716 = vadd.f32 0.0, %v4715
      %v4717 = vpop.f32.mrb[0].mxu0
      %v4718 = vpop.f32.mrb[0].mxu0
      %v4719 = vadd.f32 0.0, %v4718
      %v4720 = vpop.f32.mrb[0].mxu0
      %4721 = vmatprep.mubr.bf16.mxu0 0
      %4722 = vmatmul.mubr.bf16.gmra.mrb[0].mxu0 %v4619
      %v4723 = vpop.f32.mrb[0].mxu0
      %v4724 = vadd.f32 0.0, %v4723
      %v4725 = vpop.f32.mrb[0].mxu0
      %v4726 = vpop.f32.mrb[0].mxu0
      %v4727 = vadd.f32 0.0, %v4726
      %v4728 = vpop.f32.mrb[0].mxu0
      %4729 = vmatprep.mubr.bf16.mxu0 0
      %4730 = vmatmul.mubr.bf16.gmra.mrb[0].mxu0 %v4622
      %v4731 = vpop.f32.mrb[0].mxu0
      %v4732 = vadd.f32 0.0, %v4731
      %v4733 = vpop.f32.mrb[0].mxu0
      %v4734 = vpop.f32.mrb[0].mxu0
      %v4735 = vadd.f32 0.0, %v4734
      %v4736 = vpop.f32.mrb[0].mxu0
      %4737 = vmatprep.mubr.bf16.mxu0 0
      %4738 = vmatmul.mubr.bf16.gmra.mrb[0].mxu0 %v4625
      %v4739 = vpop.f32.mrb[0].mxu0
      %v4740 = vadd.f32 0.0, %v4739
      %v4741 = vpop.f32.mrb[0].mxu0
      %v4742 = vpop.f32.mrb[0].mxu0
      %v4743 = vadd.f32 0.0, %v4742
      %v4744 = vpop.f32.mrb[0].mxu0
      %4745 = vmatprep.mubr.bf16.mxu0 0
      %4746 = vmatmul.mubr.bf16.gmra.mrb[0].mxu0 %v4628
      %v4747 = vpop.f32.mrb[0].mxu0
      %v4748 = vadd.f32 0.0, %v4747
      %v4749 = vpop.f32.mrb[0].mxu0
      %v4750 = vpop.f32.mrb[0].mxu0
      %v4751 = vadd.f32 0.0, %v4750
      %v4752 = vpop.f32.mrb[0].mxu0
      %4753 = vmatprep.mubr.bf16.mxu0 0
      %4754 = vmatmul.mubr.bf16.gmra.mrb[0].mxu0 %v4631
      %v4755 = vpop.f32.mrb[0].mxu0
      %v4756 = vadd.f32 0.0, %v4755
      %v4757 = vpop.f32.mrb[0].mxu0
      %v4758 = vpop.f32.mrb[0].mxu0
      %v4759 = vadd.f32 0.0, %v4758
      %v4760 = vpop.f32.mrb[0].mxu0
      %4761 = vmatprep.mubr.bf16.mxu0 0
      %4762 = vmatmul.mubr.bf16.gmra.mrb[0].mxu0 %v4634
      %v4763 = vpop.f32.mrb[0].mxu0
      %v4764 = vadd.f32 0.0, %v4763
      %v4765 = vpop.f32.mrb[0].mxu0
      %v4766 = vpop.f32.mrb[0].mxu0
      %v4767 = vadd.f32 0.0, %v4766
      %v4768 = vpop.f32.mrb[0].mxu0
      %4769 = vmatprep.mubr.bf16.mxu0 0
      %4770 = vmatmul.mubr.bf16.gmra.mrb[0].mxu0 %v4637
      %v4771 = vpop.f32.mrb[0].mxu0
      %v4772 = vadd.f32 0.0, %v4771
      %v4773 = vpop.f32.mrb[0].mxu0
      %v4774 = vpop.f32.mrb[0].mxu0
      %v4775 = vadd.f32 0.0, %v4774
      %v4776 = vpop.f32.mrb[0].mxu0
      %4777 = vmatprep.mubr.bf16.mxu0 0
      %4778 = vmatmul.mubr.bf16.gmra.mrb[0].mxu0 %v4640
      %v4779 = vpop.f32.mrb[0].mxu0
      %v4780 = vadd.f32 0.0, %v4779
      %v4781 = vpop.f32.mrb[0].mxu0
      %v4782 = vpop.f32.mrb[0].mxu0
      %v4783 = vadd.f32 0.0, %v4782
      %v4784 = vpop.f32.mrb[0].mxu0
      %4785 = vmatprep.mubr.bf16.mxu0 0
      %4786 = vmatmul.mubr.bf16.gmra.mrb[0].mxu0 %v4643
      %v4787 = vpop.f32.mrb[0].mxu0
      %v4788 = vadd.f32 0.0, %v4787
      %v4789 = vpop.f32.mrb[0].mxu0
      %v4790 = vpop.f32.mrb[0].mxu0
      %v4791 = vadd.f32 0.0, %v4790
      %v4792 = vpop.f32.mrb[0].mxu0
      %4793 = vmatprep.mubr.bf16.mxu0 0
      %4794 = vmatmul.mubr.bf16.gmra.mrb[0].mxu0 %v4646
      %v4795 = vpop.f32.mrb[0].mxu0
      %v4796 = vadd.f32 0.0, %v4795
      %v4797 = vpop.f32.mrb[0].mxu0
      %v4798 = vpop.f32.mrb[0].mxu0
      %v4799 = vadd.f32 0.0, %v4798
      %v4800 = vpop.f32.mrb[0].mxu0
      %4801 = vmatprep.mubr.bf16.mxu0 0
      %4802 = vmatmul.mubr.bf16.gmra.mrb[0].mxu0 %v4649
      %v4803 = vpop.f32.mrb[0].mxu0
      %v4804 = vadd.f32 0.0, %v4803
      %v4805 = vpop.f32.mrb[0].mxu0
      %v4806 = vpop.f32.mrb[0].mxu0
      %v4807 = vadd.f32 0.0, %v4806
      %v4808 = vpop.f32.mrb[0].mxu0
      %4809 = vmatprep.mubr.bf16.mxu0 0
      %4810 = vmatmul.mubr.bf16.gmra.mrb[0].mxu0 %v4652
      %v4811 = vpop.f32.mrb[0].mxu0
      %v4812 = vadd.f32 0.0, %v4811
      %v4813 = vpop.f32.mrb[0].mxu0
      %v4814 = vpop.f32.mrb[0].mxu0
      %v4815 = vadd.f32 0.0, %v4814
      %v4816 = vpop.f32.mrb[0].mxu0
      %4817 = vdwg.mxu0
      %v4818 = vadd.f32 %v4348, %v4692
      %v4819 = vadd.f32 %v4349, %v4695
      %v4820 = vadd.f32 %v4350, %v4700
      %v4821 = vadd.f32 %v4351, %v4703
      %v4822 = vadd.f32 %v4352, %v4708
      %v4823 = vadd.f32 %v4353, %v4711
      %v4824 = vadd.f32 %v4354, %v4716
      %v4825 = vadd.f32 %v4355, %v4719
      %v4826 = vadd.f32 %v4356, %v4724
      %v4827 = vadd.f32 %v4357, %v4727
      %v4828 = vadd.f32 %v4358, %v4732
      %v4829 = vadd.f32 %v4359, %v4735
      %v4830 = vadd.f32 %v4360, %v4740
      %v4831 = vadd.f32 %v4361, %v4743
      %v4832 = vadd.f32 %v4362, %v4748
      %v4833 = vadd.f32 %v4363, %v4751
      %v4834 = vadd.f32 %v4364, %v4756
      %v4835 = vadd.f32 %v4365, %v4759
      %v4836 = vadd.f32 %v4366, %v4764
      %v4837 = vadd.f32 %v4367, %v4767
      %v4838 = vadd.f32 %v4368, %v4772
      %v4839 = vadd.f32 %v4369, %v4775
      %v4840 = vadd.f32 %v4370, %v4780
      %v4841 = vadd.f32 %v4371, %v4783
      %v4842 = vadd.f32 %v4372, %v4788
      %v4843 = vadd.f32 %v4373, %v4791
      %v4844 = vadd.f32 %v4374, %v4796
      %v4845 = vadd.f32 %v4375, %v4799
      %v4846 = vadd.f32 %v4376, %v4804
      %v4847 = vadd.f32 %v4377, %v4807
      %v4848 = vadd.f32 %v4378, %v4812
      %v4849 = vadd.f32 %v4379, %v4815
      %vm4850 = vcmask 261120
      %v4851 = vsel %vm4850, %v4818, 0.0
      %v4852 = vsel %vm4850, %v4819, 0.0
      %v4853 = vadd.f32 %v4851, %v4852
      %v4854 = vsel %vm4850, %v4820, 0.0
      %v4855 = vadd.f32 %v4853, %v4854
      %v4856 = vsel %vm4850, %v4821, 0.0
      %v4857 = vadd.f32 %v4855, %v4856
      %v4858 = vsel %vm4850, %v4822, 0.0
      %v4859 = vadd.f32 %v4857, %v4858
      %v4860 = vsel %vm4850, %v4823, 0.0
      %v4861 = vadd.f32 %v4859, %v4860
      %v4862 = vsel %vm4850, %v4824, 0.0
      %v4863 = vadd.f32 %v4861, %v4862
      %v4864 = vsel %vm4850, %v4825, 0.0
      %v4865 = vadd.f32 %v4863, %v4864
      %v4866 = vsel %vm4850, %v4826, 0.0
      %v4867 = vadd.f32 %v4865, %v4866
      %v4868 = vsel %vm4850, %v4827, 0.0
      %v4869 = vadd.f32 %v4867, %v4868
      %v4870 = vsel %vm4850, %v4828, 0.0
      %v4871 = vadd.f32 %v4869, %v4870
      %v4872 = vsel %vm4850, %v4829, 0.0
      %v4873 = vadd.f32 %v4871, %v4872
      %v4874 = vsel %vm4850, %v4830, 0.0
      %v4875 = vadd.f32 %v4873, %v4874
      %v4876 = vsel %vm4850, %v4831, 0.0
      %v4877 = vadd.f32 %v4875, %v4876
      %v4878 = vsel %vm4850, %v4832, 0.0
      %v4879 = vadd.f32 %v4877, %v4878
      %v4880 = vsel %vm4850, %v4833, 0.0
      %v4881 = vadd.f32 %v4879, %v4880
      %v4882 = vsel %vm4850, %v4834, 0.0
      %v4883 = vadd.f32 %v4881, %v4882
      %v4884 = vsel %vm4850, %v4835, 0.0
      %v4885 = vadd.f32 %v4883, %v4884
      %v4886 = vsel %vm4850, %v4836, 0.0
      %v4887 = vadd.f32 %v4885, %v4886
      %v4888 = vsel %vm4850, %v4837, 0.0
      %v4889 = vadd.f32 %v4887, %v4888
      %v4890 = vsel %vm4850, %v4838, 0.0
      %v4891 = vadd.f32 %v4889, %v4890
      %v4892 = vsel %vm4850, %v4839, 0.0
      %v4893 = vadd.f32 %v4891, %v4892
      %v4894 = vsel %vm4850, %v4840, 0.0
      %v4895 = vadd.f32 %v4893, %v4894
      %v4896 = vsel %vm4850, %v4841, 0.0
      %v4897 = vadd.f32 %v4895, %v4896
      %v4898 = vsel %vm4850, %v4842, 0.0
      %v4899 = vadd.f32 %v4897, %v4898
      %v4900 = vsel %vm4850, %v4843, 0.0
      %v4901 = vadd.f32 %v4899, %v4900
      %v4902 = vsel %vm4850, %v4844, 0.0
      %v4903 = vadd.f32 %v4901, %v4902
      %v4904 = vsel %vm4850, %v4845, 0.0
      %v4905 = vadd.f32 %v4903, %v4904
      %v4906 = vsel %vm4850, %v4846, 0.0
      %v4907 = vadd.f32 %v4905, %v4906
      %v4908 = vsel %vm4850, %v4847, 0.0
      %v4909 = vadd.f32 %v4907, %v4908
      %v4910 = vsel %vm4850, %v4848, 0.0
      %v4911 = vadd.f32 %v4909, %v4910
      %v4912 = vsel %vm4850, %v4849, 0.0
      %v4913 = vadd.f32 %v4911, %v4912
      %v4914 = vrot.slane %v4913, 4
      %v4915 = vadd.f32 %v4913, %v4914
      %v4916 = vrot.slane %v4915, 2
      %v4917 = vadd.f32 %v4915, %v4916
      %v4918 = vrot.slane %v4917, 1
      %v4919 = vadd.f32 %v4917, %v4918
      %v4920 = vmul.f32 %v4818, %v4818
      %v4921 = vmul.f32 %v4819, %v4819
      %v4922 = vmul.f32 %v4820, %v4820
      %v4923 = vmul.f32 %v4821, %v4821
      %v4924 = vmul.f32 %v4822, %v4822
      %v4925 = vmul.f32 %v4823, %v4823
      %v4926 = vmul.f32 %v4824, %v4824
      %v4927 = vmul.f32 %v4825, %v4825
      %v4928 = vmul.f32 %v4826, %v4826
      %v4929 = vmul.f32 %v4827, %v4827
      %v4930 = vmul.f32 %v4828, %v4828
      %v4931 = vmul.f32 %v4829, %v4829
      %v4932 = vmul.f32 %v4830, %v4830
      %v4933 = vmul.f32 %v4831, %v4831
      %v4934 = vmul.f32 %v4832, %v4832
      %v4935 = vmul.f32 %v4833, %v4833
      %v4936 = vmul.f32 %v4834, %v4834
      %v4937 = vmul.f32 %v4835, %v4835
      %v4938 = vmul.f32 %v4836, %v4836
      %v4939 = vmul.f32 %v4837, %v4837
      %v4940 = vmul.f32 %v4838, %v4838
      %v4941 = vmul.f32 %v4839, %v4839
      %v4942 = vmul.f32 %v4840, %v4840
      %v4943 = vmul.f32 %v4841, %v4841
      %v4944 = vmul.f32 %v4842, %v4842
      %v4945 = vmul.f32 %v4843, %v4843
      %v4946 = vmul.f32 %v4844, %v4844
      %v4947 = vmul.f32 %v4845, %v4845
      %v4948 = vmul.f32 %v4846, %v4846
      %v4949 = vmul.f32 %v4847, %v4847
      %v4950 = vmul.f32 %v4848, %v4848
      %v4951 = vmul.f32 %v4849, %v4849
      %v4952 = vsel %vm4850, %v4920, 0.0
      %v4953 = vsel %vm4850, %v4921, 0.0
      %v4954 = vadd.f32 %v4952, %v4953
      %v4955 = vsel %vm4850, %v4922, 0.0
      %v4956 = vadd.f32 %v4954, %v4955
      %v4957 = vsel %vm4850, %v4923, 0.0
      %v4958 = vadd.f32 %v4956, %v4957
      %v4959 = vsel %vm4850, %v4924, 0.0
      %v4960 = vadd.f32 %v4958, %v4959
      %v4961 = vsel %vm4850, %v4925, 0.0
      %v4962 = vadd.f32 %v4960, %v4961
      %v4963 = vsel %vm4850, %v4926, 0.0
      %v4964 = vadd.f32 %v4962, %v4963
      %v4965 = vsel %vm4850, %v4927, 0.0
      %v4966 = vadd.f32 %v4964, %v4965
      %v4967 = vsel %vm4850, %v4928, 0.0
      %v4968 = vadd.f32 %v4966, %v4967
      %v4969 = vsel %vm4850, %v4929, 0.0
      %v4970 = vadd.f32 %v4968, %v4969
      %v4971 = vsel %vm4850, %v4930, 0.0
      %v4972 = vadd.f32 %v4970, %v4971
      %v4973 = vsel %vm4850, %v4931, 0.0
      %v4974 = vadd.f32 %v4972, %v4973
      %v4975 = vsel %vm4850, %v4932, 0.0
      %v4976 = vadd.f32 %v4974, %v4975
      %v4977 = vsel %vm4850, %v4933, 0.0
      %v4978 = vadd.f32 %v4976, %v4977
      %v4979 = vsel %vm4850, %v4934, 0.0
      %v4980 = vadd.f32 %v4978, %v4979
      %v4981 = vsel %vm4850, %v4935, 0.0
      %v4982 = vadd.f32 %v4980, %v4981
      %v4983 = vsel %vm4850, %v4936, 0.0
      %v4984 = vadd.f32 %v4982, %v4983
      %v4985 = vsel %vm4850, %v4937, 0.0
      %v4986 = vadd.f32 %v4984, %v4985
      %v4987 = vsel %vm4850, %v4938, 0.0
      %v4988 = vadd.f32 %v4986, %v4987
      %v4989 = vsel %vm4850, %v4939, 0.0
      %v4990 = vadd.f32 %v4988, %v4989
      %v4991 = vsel %vm4850, %v4940, 0.0
      %v4992 = vadd.f32 %v4990, %v4991
      %v4993 = vsel %vm4850, %v4941, 0.0
      %v4994 = vadd.f32 %v4992, %v4993
      %v4995 = vsel %vm4850, %v4942, 0.0
      %v4996 = vadd.f32 %v4994, %v4995
      %v4997 = vsel %vm4850, %v4943, 0.0
      %v4998 = vadd.f32 %v4996, %v4997
      %v4999 = vsel %vm4850, %v4944, 0.0
      %v5000 = vadd.f32 %v4998, %v4999
      %v5001 = vsel %vm4850, %v4945, 0.0
      %v5002 = vadd.f32 %v5000, %v5001
      %v5003 = vsel %vm4850, %v4946, 0.0
      %v5004 = vadd.f32 %v5002, %v5003
      %v5005 = vsel %vm4850, %v4947, 0.0
      %v5006 = vadd.f32 %v5004, %v5005
      %v5007 = vsel %vm4850, %v4948, 0.0
      %v5008 = vadd.f32 %v5006, %v5007
      %v5009 = vsel %vm4850, %v4949, 0.0
      %v5010 = vadd.f32 %v5008, %v5009
      %v5011 = vsel %vm4850, %v4950, 0.0
      %v5012 = vadd.f32 %v5010, %v5011
      %v5013 = vsel %vm4850, %v4951, 0.0
      %v5014 = vadd.f32 %v5012, %v5013
      %v5015 = vrot.slane %v5014, 4
      %v5016 = vadd.f32 %v5014, %v5015
      %v5017 = vrot.slane %v5016, 2
      %v5018 = vadd.f32 %v5016, %v5017
      %v5019 = vrot.slane %v5018, 1
      %v5020 = vadd.f32 %v5018, %v5019
      %vm5021 = vcmask 1040384
      %v5022 = vsel %vm5021, %v4919, %v5020
      %v5023 = vld [vmem:[%s4] sm:$0xff]
      %v5024 = vld [vmem:[%s4 + $0x8] sm:$0xff]
      %v5025 = vld [vmem:[%s4 + $0x10] sm:$0xff]
      %v5026 = vld [vmem:[%s4 + $0x18] sm:$0xff]
      %v5028 = vsel %vm4850, %v5022, 0
      %5030 = vmatprep.subr.mxu0 0.0
      %5031 = vmatpush1.msra.mxu0 %v5023
      %5032 = vmatprep.subr.mxu0 0.0
      %5033 = vmatpush1.msra.mxu0 %v5024
      %5034 = vmatprep.subr.mxu0 0.0
      %5035 = vmatpush1.msra.mxu0 %v5025
      %5036 = vmatprep.subr.mxu0 0.0
      %5037 = vmatpush1.msra.mxu0 %v5026
      %5038 = vmatprep.subr.mxu0 0.0
      %5039 = vmatpush1.msra.mxu0 0.0
      %5040 = vmatprep.subr.mxu0 0.0
      %5041 = vmatpush1.msra.mxu0 0.0
      %5042 = vmatprep.subr.mxu0 0.0
      %5043 = vmatpush1.msra.mxu0 0.0
      %5044 = vmatprep.subr.mxu0 0.0
      %5045 = vmatpush1.msra.mxu0 0.0
      %5046 = vmatprep.subr.mxu0 0.0
      %5047 = vmatpush1.msra.mxu0 0.0
      %5048 = vmatprep.subr.mxu0 0.0
      %5049 = vmatpush1.msra.mxu0 0.0
      %5050 = vmatprep.subr.mxu0 0.0
      %5051 = vmatpush1.msra.mxu0 0.0
      %5052 = vmatprep.subr.mxu0 0.0
      %5053 = vmatpush1.msra.mxu0 0.0
      %5054 = vmatprep.subr.mxu0 0.0
      %5055 = vmatpush1.msra.mxu0 0.0
      %5056 = vmatprep.subr.mxu0 0.0
      %5057 = vmatpush1.msra.mxu0 0.0
      %5058 = vmatprep.subr.mxu0 0.0
      %5059 = vmatpush1.msra.mxu0 0.0
      %5060 = vmatprep.subr.mxu0 0.0
      %5061 = vmatpush1.msra.mxu0 0.0
      %5062 = vmatprep.subr.mxu0 0.0
      %5063 = vmatpush1.msra.mxu0 0.0
      %5064 = vmatprep.subr.mxu0 0.0
      %5065 = vmatpush1.msra.mxu0 0.0
      %5066 = vmatprep.subr.mxu0 0.0
      %5067 = vmatpush1.msra.mxu0 0.0
      %5068 = vmatprep.subr.mxu0 0.0
      %5069 = vmatpush1.msra.mxu0 0.0
      %5070 = vmatprep.subr.mxu0 0.0
      %5071 = vmatpush1.msra.mxu0 0.0
      %5072 = vmatprep.subr.mxu0 0.0
      %5073 = vmatpush1.msra.mxu0 0.0
      %5074 = vmatprep.subr.mxu0 0.0
      %5075 = vmatpush1.msra.mxu0 0.0
      %5076 = vmatprep.subr.mxu0 0.0
      %5077 = vmatpush1.msra.mxu0 0.0
      %5078 = vmatprep.subr.mxu0 0.0
      %5079 = vmatpush1.msra.mxu0 0.0
      %5080 = vmatprep.subr.mxu0 0.0
      %5081 = vmatpush1.msra.mxu0 0.0
      %5082 = vmatprep.subr.mxu0 0.0
      %5083 = vmatpush1.msra.mxu0 0.0
      %5084 = vmatprep.subr.mxu0 0.0
      %5085 = vmatpush1.msra.mxu0 0.0
      %5086 = vmatprep.subr.mxu0 0.0
      %5087 = vmatpush1.msra.mxu0 0.0
      %5088 = vmatprep.subr.mxu0 0.0
      %5089 = vmatpush1.msra.mxu0 0.0
      %5090 = vmatprep.subr.mxu0 0.0
      %5091 = vmatpush1.msra.mxu0 0.0
      %5092 = vmatprep.subr.mxu0 0.0
      %5093 = vmatpush1.msra.mxu0 0.0
      %5094 = vmatprep.mubr.f32.mxu0 0.0
      %5095 = vmatmul.mubr.f32.gmra.mrb[0].mxu0 %v5028
      %v5096 = vpop.f32.mrb[0].mxu0
      %v5097 = vadd.f32 0.0, %v5096
      %v5098 = vpop.f32.mrb[0].mxu0
      %5099 = vdwg.mxu0
      %v5100 = vmul.f32 %v5097, 0.0009765625
      %v5101 = vmul.f32 %v5100, %v5100
      %v5103 = vrot.slane %v5101, 7
      %v5105 = vsub.f32 %v5100, %v5103
      %v5106 = vadd.f32 %v5105, 1e-05
      %v5107 = vrsqrt.pop %v5106
      %v5108 = vld [vmem:[%s278] sm:$0x1]
      %v5111 = vunpack.c.l.s4 1966171168
      %v5112 = vunpack.c.0.s8 %v5111
      %v5113 = vlaneseq
      %v5114 = vshrl.u32 %v5113, 7
      %v5115 = vsub.s32 %v5112, %v5114
      %v5116 = vrot.slane %v5107, %v5115
      %v5117 = vcombine.high %v5116, %v5116
      %v5119 = vunpack.c.l.s4 1966171168
      %v5120 = vunpack.c.0.s8 %v5119
      %v5121 = vlaneseq
      %v5122 = vshrl.u32 %v5121, 7
      %v5123 = vsub.s32 %v5120, %v5122
      %v5124 = vrot.slane %v5117, %v5123
      %v5126 = vmul.f32 %v5108, %v5124
      %v5127 = vld [vmem:[%s281] sm:$0x1]
      %v5128 = vmul.f32 %v5100, %v5126
      %v5129 = vsub.f32 %v5127, %v5128
      %v5131 = vlaneseq
      %v5132 = vshrl.u32 %v5131, 7
      %v5133 = vsub.s32 0, %v5132
      %v5134 = vrot.slane %v5126, %v5133
      %v5136 = vmul.f32 %v4818, %v5134
      %v5137 = vmul.f32 %v4819, %v5134
      %v5138 = vmul.f32 %v4820, %v5134
      %v5139 = vmul.f32 %v4821, %v5134
      %v5140 = vmul.f32 %v4822, %v5134
      %v5141 = vmul.f32 %v4823, %v5134
      %v5142 = vmul.f32 %v4824, %v5134
      %v5143 = vmul.f32 %v4825, %v5134
      %v5144 = vmul.f32 %v4826, %v5134
      %v5145 = vmul.f32 %v4827, %v5134
      %v5146 = vmul.f32 %v4828, %v5134
      %v5147 = vmul.f32 %v4829, %v5134
      %v5148 = vmul.f32 %v4830, %v5134
      %v5149 = vmul.f32 %v4831, %v5134
      %v5150 = vmul.f32 %v4832, %v5134
      %v5151 = vmul.f32 %v4833, %v5134
      %v5152 = vmul.f32 %v4834, %v5134
      %v5153 = vmul.f32 %v4835, %v5134
      %v5154 = vmul.f32 %v4836, %v5134
      %v5155 = vmul.f32 %v4837, %v5134
      %v5156 = vmul.f32 %v4838, %v5134
      %v5157 = vmul.f32 %v4839, %v5134
      %v5158 = vmul.f32 %v4840, %v5134
      %v5159 = vmul.f32 %v4841, %v5134
      %v5160 = vmul.f32 %v4842, %v5134
      %v5161 = vmul.f32 %v4843, %v5134
      %v5162 = vmul.f32 %v4844, %v5134
      %v5163 = vmul.f32 %v4845, %v5134
      %v5164 = vmul.f32 %v4846, %v5134
      %v5165 = vmul.f32 %v4847, %v5134
      %v5166 = vmul.f32 %v4848, %v5134
      %v5167 = vmul.f32 %v4849, %v5134
      %v5169 = vlaneseq
      %v5170 = vshrl.u32 %v5169, 7
      %v5171 = vsub.s32 0, %v5170
      %v5172 = vrot.slane %v5129, %v5171
      %v5174 = vadd.f32 %v5136, %v5172
      %v5175 = vadd.f32 %v5137, %v5172
      %v5176 = vadd.f32 %v5138, %v5172
      %v5177 = vadd.f32 %v5139, %v5172
      %v5178 = vadd.f32 %v5140, %v5172
      %v5179 = vadd.f32 %v5141, %v5172
      %v5180 = vadd.f32 %v5142, %v5172
      %v5181 = vadd.f32 %v5143, %v5172
      %v5182 = vadd.f32 %v5144, %v5172
      %v5183 = vadd.f32 %v5145, %v5172
      %v5184 = vadd.f32 %v5146, %v5172
      %v5185 = vadd.f32 %v5147, %v5172
      %v5186 = vadd.f32 %v5148, %v5172
      %v5187 = vadd.f32 %v5149, %v5172
      %v5188 = vadd.f32 %v5150, %v5172
      %v5189 = vadd.f32 %v5151, %v5172
      %v5190 = vadd.f32 %v5152, %v5172
      %v5191 = vadd.f32 %v5153, %v5172
      %v5192 = vadd.f32 %v5154, %v5172
      %v5193 = vadd.f32 %v5155, %v5172
      %v5194 = vadd.f32 %v5156, %v5172
      %v5195 = vadd.f32 %v5157, %v5172
      %v5196 = vadd.f32 %v5158, %v5172
      %v5197 = vadd.f32 %v5159, %v5172
      %v5198 = vadd.f32 %v5160, %v5172
      %v5199 = vadd.f32 %v5161, %v5172
      %v5200 = vadd.f32 %v5162, %v5172
      %v5201 = vadd.f32 %v5163, %v5172
      %v5202 = vadd.f32 %v5164, %v5172
      %v5203 = vadd.f32 %v5165, %v5172
      %v5204 = vadd.f32 %v5166, %v5172
      %v5205 = vadd.f32 %v5167, %v5172
      %vm5206 = vcmp.gt.f32.partialorder %v5174, 0.0
      %vm5207 = vcmp.gt.f32.partialorder %v5175, 0.0
      %vm5208 = vcmp.gt.f32.partialorder %v5176, 0.0
      %vm5209 = vcmp.gt.f32.partialorder %v5177, 0.0
      %vm5210 = vcmp.gt.f32.partialorder %v5178, 0.0
      %vm5211 = vcmp.gt.f32.partialorder %v5179, 0.0
      %vm5212 = vcmp.gt.f32.partialorder %v5180, 0.0
      %vm5213 = vcmp.gt.f32.partialorder %v5181, 0.0
      %vm5214 = vcmp.gt.f32.partialorder %v5182, 0.0
      %vm5215 = vcmp.gt.f32.partialorder %v5183, 0.0
      %vm5216 = vcmp.gt.f32.partialorder %v5184, 0.0
      %vm5217 = vcmp.gt.f32.partialorder %v5185, 0.0
      %vm5218 = vcmp.gt.f32.partialorder %v5186, 0.0
      %vm5219 = vcmp.gt.f32.partialorder %v5187, 0.0
      %vm5220 = vcmp.gt.f32.partialorder %v5188, 0.0
      %vm5221 = vcmp.gt.f32.partialorder %v5189, 0.0
      %vm5222 = vcmp.gt.f32.partialorder %v5190, 0.0
      %vm5223 = vcmp.gt.f32.partialorder %v5191, 0.0
      %vm5224 = vcmp.gt.f32.partialorder %v5192, 0.0
      %vm5225 = vcmp.gt.f32.partialorder %v5193, 0.0
      %vm5226 = vcmp.gt.f32.partialorder %v5194, 0.0
      %vm5227 = vcmp.gt.f32.partialorder %v5195, 0.0
      %vm5228 = vcmp.gt.f32.partialorder %v5196, 0.0
      %vm5229 = vcmp.gt.f32.partialorder %v5197, 0.0
      %vm5230 = vcmp.gt.f32.partialorder %v5198, 0.0
      %vm5231 = vcmp.gt.f32.partialorder %v5199, 0.0
      %vm5232 = vcmp.gt.f32.partialorder %v5200, 0.0
      %vm5233 = vcmp.gt.f32.partialorder %v5201, 0.0
      %vm5234 = vcmp.gt.f32.partialorder %v5202, 0.0
      %vm5235 = vcmp.gt.f32.partialorder %v5203, 0.0
      %vm5236 = vcmp.gt.f32.partialorder %v5204, 0.0
      %vm5237 = vcmp.gt.f32.partialorder %v5205, 0.0
      %v5238 = vmul.f32 %v5174, 0.2
      %v5239 = vmul.f32 %v5175, 0.2
      %v5240 = vmul.f32 %v5176, 0.2
      %v5241 = vmul.f32 %v5177, 0.2
      %v5242 = vmul.f32 %v5178, 0.2
      %v5243 = vmul.f32 %v5179, 0.2
      %v5244 = vmul.f32 %v5180, 0.2
      %v5245 = vmul.f32 %v5181, 0.2
      %v5246 = vmul.f32 %v5182, 0.2
      %v5247 = vmul.f32 %v5183, 0.2
      %v5248 = vmul.f32 %v5184, 0.2
      %v5249 = vmul.f32 %v5185, 0.2
      %v5250 = vmul.f32 %v5186, 0.2
      %v5251 = vmul.f32 %v5187, 0.2
      %v5252 = vmul.f32 %v5188, 0.2
      %v5253 = vmul.f32 %v5189, 0.2
      %v5254 = vmul.f32 %v5190, 0.2
      %v5255 = vmul.f32 %v5191, 0.2
      %v5256 = vmul.f32 %v5192, 0.2
      %v5257 = vmul.f32 %v5193, 0.2
      %v5258 = vmul.f32 %v5194, 0.2
      %v5259 = vmul.f32 %v5195, 0.2
      %v5260 = vmul.f32 %v5196, 0.2
      %v5261 = vmul.f32 %v5197, 0.2
      %v5262 = vmul.f32 %v5198, 0.2
      %v5263 = vmul.f32 %v5199, 0.2
      %v5264 = vmul.f32 %v5200, 0.2
      %v5265 = vmul.f32 %v5201, 0.2
      %v5266 = vmul.f32 %v5202, 0.2
      %v5267 = vmul.f32 %v5203, 0.2
      %v5268 = vmul.f32 %v5204, 0.2
      %v5269 = vmul.f32 %v5205, 0.2
      %v5270 = vsel %vm5206, %v5174, %v5238
      %v5271 = vsel %vm5207, %v5175, %v5239
      %v5272 = vsel %vm5208, %v5176, %v5240
      %v5273 = vsel %vm5209, %v5177, %v5241
      %v5274 = vsel %vm5210, %v5178, %v5242
      %v5275 = vsel %vm5211, %v5179, %v5243
      %v5276 = vsel %vm5212, %v5180, %v5244
      %v5277 = vsel %vm5213, %v5181, %v5245
      %v5278 = vsel %vm5214, %v5182, %v5246
      %v5279 = vsel %vm5215, %v5183, %v5247
      %v5280 = vsel %vm5216, %v5184, %v5248
      %v5281 = vsel %vm5217, %v5185, %v5249
      %v5282 = vsel %vm5218, %v5186, %v5250
      %v5283 = vsel %vm5219, %v5187, %v5251
      %v5284 = vsel %vm5220, %v5188, %v5252
      %v5285 = vsel %vm5221, %v5189, %v5253
      %v5286 = vsel %vm5222, %v5190, %v5254
      %v5287 = vsel %vm5223, %v5191, %v5255
      %v5288 = vsel %vm5224, %v5192, %v5256
      %v5289 = vsel %vm5225, %v5193, %v5257
      %v5290 = vsel %vm5226, %v5194, %v5258
      %v5291 = vsel %vm5227, %v5195, %v5259
      %v5292 = vsel %vm5228, %v5196, %v5260
      %v5293 = vsel %vm5229, %v5197, %v5261
      %v5294 = vsel %vm5230, %v5198, %v5262
      %v5295 = vsel %vm5231, %v5199, %v5263
      %v5296 = vsel %vm5232, %v5200, %v5264
      %v5297 = vsel %vm5233, %v5201, %v5265
      %v5298 = vsel %vm5234, %v5202, %v5266
      %v5299 = vsel %vm5235, %v5203, %v5267
      %v5300 = vsel %vm5236, %v5204, %v5268
      %v5301 = vsel %vm5237, %v5205, %v5269
      %v5302 = vpack.c.bf16 %v5271, %v5270
      %v5303 = vpack.c.bf16 %v5273, %v5272
      %v5304 = vpack.c.bf16 %v5275, %v5274
      %v5305 = vpack.c.bf16 %v5277, %v5276
      %v5306 = vpack.c.bf16 %v5279, %v5278
      %v5307 = vpack.c.bf16 %v5281, %v5280
      %v5308 = vpack.c.bf16 %v5283, %v5282
      %v5309 = vpack.c.bf16 %v5285, %v5284
      %v5310 = vpack.c.bf16 %v5287, %v5286
      %v5311 = vpack.c.bf16 %v5289, %v5288
      %v5312 = vpack.c.bf16 %v5291, %v5290
      %v5313 = vpack.c.bf16 %v5293, %v5292
      %v5314 = vpack.c.bf16 %v5295, %v5294
      %v5315 = vpack.c.bf16 %v5297, %v5296
      %v5316 = vpack.c.bf16 %v5299, %v5298
      %v5317 = vpack.c.bf16 %v5301, %v5300
      %v5334 = vunpack.c.l.b16 %v5302
      %v5335 = vunpack.c.h.b16 %v5302
      %v5336 = vunpack.c.l.b16 %v5303
      %v5337 = vunpack.c.h.b16 %v5303
      %v5338 = vunpack.c.l.b16 %v5304
      %v5339 = vunpack.c.h.b16 %v5304
      %v5340 = vunpack.c.l.b16 %v5305
      %v5341 = vunpack.c.h.b16 %v5305
      %v5342 = vunpack.c.l.b16 %v5306
      %v5343 = vunpack.c.h.b16 %v5306
      %v5344 = vunpack.c.l.b16 %v5307
      %v5345 = vunpack.c.h.b16 %v5307
      %v5346 = vunpack.c.l.b16 %v5308
      %v5347 = vunpack.c.h.b16 %v5308
      %v5348 = vunpack.c.l.b16 %v5309
      %v5349 = vunpack.c.h.b16 %v5309
      %v5350 = vunpack.c.l.b16 %v5310
      %v5351 = vunpack.c.h.b16 %v5310
      %v5352 = vunpack.c.l.b16 %v5311
      %v5353 = vunpack.c.h.b16 %v5311
      %v5354 = vunpack.c.l.b16 %v5312
      %v5355 = vunpack.c.h.b16 %v5312
      %v5356 = vunpack.c.l.b16 %v5313
      %v5357 = vunpack.c.h.b16 %v5313
      %v5358 = vunpack.c.l.b16 %v5314
      %v5359 = vunpack.c.h.b16 %v5314
      %v5360 = vunpack.c.l.b16 %v5315
      %v5361 = vunpack.c.h.b16 %v5315
      %v5362 = vunpack.c.l.b16 %v5316
      %v5363 = vunpack.c.h.b16 %v5316
      %v5364 = vunpack.c.l.b16 %v5317
      %v5365 = vunpack.c.h.b16 %v5317
      %v5366 = vpack.c.b16 %v5334, %v5334
      %v5367 = vpack.c.b16 %v5335, %v5335
      %v5368 = vpack.c.b16 %v5336, %v5336
      %v5369 = vpack.c.b16 %v5337, %v5337
      %v5370 = vpack.c.b16 %v5338, %v5338
      %v5371 = vpack.c.b16 %v5339, %v5339
      %v5372 = vpack.c.b16 %v5340, %v5340
      %v5373 = vpack.c.b16 %v5341, %v5341
      %v5374 = vpack.c.b16 %v5342, %v5342
      %v5375 = vpack.c.b16 %v5343, %v5343
      %v5376 = vpack.c.b16 %v5344, %v5344
      %v5377 = vpack.c.b16 %v5345, %v5345
      %v5378 = vpack.c.b16 %v5346, %v5346
      %v5379 = vpack.c.b16 %v5347, %v5347
      %v5380 = vpack.c.b16 %v5348, %v5348
      %v5381 = vpack.c.b16 %v5349, %v5349
      %v5382 = vpack.c.b16 %v5350, %v5350
      %v5383 = vpack.c.b16 %v5351, %v5351
      %v5384 = vpack.c.b16 %v5352, %v5352
      %v5385 = vpack.c.b16 %v5353, %v5353
      %v5386 = vpack.c.b16 %v5354, %v5354
      %v5387 = vpack.c.b16 %v5355, %v5355
      %v5388 = vpack.c.b16 %v5356, %v5356
      %v5389 = vpack.c.b16 %v5357, %v5357
      %v5390 = vpack.c.b16 %v5358, %v5358
      %v5391 = vpack.c.b16 %v5359, %v5359
      %v5392 = vpack.c.b16 %v5360, %v5360
      %v5393 = vpack.c.b16 %v5361, %v5361
      %v5394 = vpack.c.b16 %v5362, %v5362
      %v5395 = vpack.c.b16 %v5363, %v5363
      %v5396 = vpack.c.b16 %v5364, %v5364
      %v5397 = vpack.c.b16 %v5365, %v5365
      %vm5430 = vcmask 257024
      %5431 = vst.msk [vmem:[%s289] sm:$0xf] %vm5430, %v5366
      %5432 = vst.msk [vmem:[%s289 + $0x4] sm:$0xf] %vm5430, %v5367
      %5433 = vst.msk [vmem:[%s289 + $0x8] sm:$0xf] %vm5430, %v5368
      %5434 = vst.msk [vmem:[%s289 + $0xc] sm:$0xf] %vm5430, %v5369
      %5435 = vst.msk [vmem:[%s289 + $0x10] sm:$0xf] %vm5430, %v5370
      %5436 = vst.msk [vmem:[%s289 + $0x14] sm:$0xf] %vm5430, %v5371
      %5437 = vst.msk [vmem:[%s289 + $0x18] sm:$0xf] %vm5430, %v5372
      %5438 = vst.msk [vmem:[%s289 + $0x1c] sm:$0xf] %vm5430, %v5373
      %5439 = vst.msk [vmem:[%s289 + $0x20] sm:$0xf] %vm5430, %v5374
      %5440 = vst.msk [vmem:[%s289 + $0x24] sm:$0xf] %vm5430, %v5375
      %5441 = vst.msk [vmem:[%s289 + $0x28] sm:$0xf] %vm5430, %v5376
      %5442 = vst.msk [vmem:[%s289 + $0x2c] sm:$0xf] %vm5430, %v5377
      %5443 = vst.msk [vmem:[%s289 + $0x30] sm:$0xf] %vm5430, %v5378
      %5444 = vst.msk [vmem:[%s289 + $0x34] sm:$0xf] %vm5430, %v5379
      %5445 = vst.msk [vmem:[%s289 + $0x38] sm:$0xf] %vm5430, %v5380
      %5446 = vst.msk [vmem:[%s289 + $0x3c] sm:$0xf] %vm5430, %v5381
      %5447 = vst.msk [vmem:[%s289 + $0x40] sm:$0xf] %vm5430, %v5382
      %5448 = vst.msk [vmem:[%s289 + $0x44] sm:$0xf] %vm5430, %v5383
      %5449 = vst.msk [vmem:[%s289 + $0x48] sm:$0xf] %vm5430, %v5384
      %5450 = vst.msk [vmem:[%s289 + $0x4c] sm:$0xf] %vm5430, %v5385
      %5451 = vst.msk [vmem:[%s289 + $0x50] sm:$0xf] %vm5430, %v5386
      %5452 = vst.msk [vmem:[%s289 + $0x54] sm:$0xf] %vm5430, %v5387
      %5453 = vst.msk [vmem:[%s289 + $0x58] sm:$0xf] %vm5430, %v5388
      %5454 = vst.msk [vmem:[%s289 + $0x5c] sm:$0xf] %vm5430, %v5389
      %5455 = vst.msk [vmem:[%s289 + $0x60] sm:$0xf] %vm5430, %v5390
      %5456 = vst.msk [vmem:[%s289 + $0x64] sm:$0xf] %vm5430, %v5391
      %5457 = vst.msk [vmem:[%s289 + $0x68] sm:$0xf] %vm5430, %v5392
      %5458 = vst.msk [vmem:[%s289 + $0x6c] sm:$0xf] %vm5430, %v5393
      %5459 = vst.msk [vmem:[%s289 + $0x70] sm:$0xf] %vm5430, %v5394
      %5460 = vst.msk [vmem:[%s289 + $0x74] sm:$0xf] %vm5430, %v5395
      %5461 = vst.msk [vmem:[%s289 + $0x78] sm:$0xf] %vm5430, %v5396
      %5462 = vst.msk [vmem:[%s289 + $0x7c] sm:$0xf] %vm5430, %v5397
      %p5463 = scmp.lt.s32.totalorder %s20, 1
      %s5464 = scalar_select %p5463, %s20, 1
      %p5465 = scmp.lt.s32.totalorder %s21, 0
      %s5466 = scalar_select %p5465, %s21, 0
      %s5467 = smul.addr %s5464, 32
      %s5468 = sadd.s32 %s5466, %s5467
      %s5469 = smul.addr %s5468, 4
      %s5470 = scalar_lea.vmem %s5, %s5469
      // Predicated region
      $region41: #{upconv_forward.1} parent=39 // pred_check
        %p5471 = pneg %p173
      $region42: #{upconv_forward.1} parent=39 // pred_check_branch
        %5473 = sbr.rel (%p5471) target = $region44
      $region43: #{upconv_forward.1} parent=39 // pred_region
        _
      $region44: #{upconv_forward.1} parent=39 // pred_fallthru
        _
    $region40: #{upconv_forward.1} parent=5 // pred_fallthru
      _
    %p5474 = scmp.le.s32.totalorder 2, %s11
    // Predicated region
    $region45: #{upconv_forward.1} parent=5 // pred_check
      %p5475 = pneg %p5474
    $region46: #{upconv_forward.1} parent=5 // pred_check_branch
      %5477 = sbr.rel (%p5475) target = $region48
    $region47: #{upconv_forward.1} parent=5 // pred_region
      %s5478 = ssub.s32 %s11, 2
      // Predicated region
      $region49: #{upconv_forward.1} parent=47 // pred_check
        %p5479 = pneg %p179
      $region50: #{upconv_forward.1} parent=47 // pred_check_branch
        %5481 = sbr.rel (%p5479) target = $region52
      $region51: #{upconv_forward.1} parent=47 // pred_region
        %p5482 = scmp.lt.s32.totalorder %s22, 1
        %s5483 = scalar_select %p5482, %s22, 1
        %p5484 = scmp.lt.s32.totalorder %s23, 0
        %s5485 = scalar_select %p5484, %s23, 0
        %s5486 = smul.addr %s5483, 32
        %s5487 = sadd.s32 %s5485, %s5486
        %s5488 = smul.addr %s5487, 4
        %s5489 = scalar_lea.vmem %s5, %s5488
      $region52: #{upconv_forward.1} parent=47 // pred_fallthru
        _
    $region48: #{upconv_forward.1} parent=5 // pred_fallthru
      _
  $region6: #{upconv_forward.1} parent=0 // loop_footer
    %s15 = sadd.s32 1, %s11
  $region7: #{upconv_forward.1} parent=0 // loop_footer_branch
    %10 = sbr.rel target = $region3
  $region8: #{upconv_forward.1} parent=0 // loop_exit
    _

</llo_original>
